<compile_context>
chip_gen: v5e
topology: v5e:2x2
jax: 0.10.0
libtpu: 0.0.40
codegen_flags: <defaults>
</compile_context>

<pallas_src>
import functools

import jax
import jax.numpy as jnp
from jax.experimental import pallas as pl
from jax.experimental.pallas import tpu as pltpu

NEG_SLOPE = 0.2
BN_EPS = 1e-5
LANE = 128
W_SLAB_BYTES = 4 * 1024 * 1024       # cap on one bf16 weight K-slab in VMEM


def _round_up(x, m):
    return ((x + m - 1) // m) * m


@functools.lru_cache(None)
def _vmem_capacity_bytes():
    try:
        return int(pltpu.get_tpu_info().vmem_capacity_bytes)
    except Exception:                 # interpret mode / older jax: assume 128 MiB
        return 128 * 1024 * 1024


@functools.lru_cache(None)
def _vmem_limit_bytes():
    # ~48 MiB on v7x (64 MiB/TC), ~96 MiB on v5e/v6e (128 MiB physical).
    return int(min(_vmem_capacity_bytes() * 3 // 4, 96 * 1024 * 1024))


@functools.lru_cache(None)
def _tm_cap():
    return 2048 if _vmem_capacity_bytes() >= 96 * 1024 * 1024 else 1024


def _pick_tm(M, cap):
    """tm multiple of 16 (bf16 sublane packing) with Mp % tm == 0, preferring
    an even number of M tiles (>= 4 when affordable) for megacore sharding."""
    Mp = _round_up(max(M, 16), 16)
    best = None
    for tm in range(min(cap, Mp), 15, -16):
        if Mp % tm:
            continue
        n = Mp // tm
        key = (n % 2 == 0 and n >= 4, n % 2 == 0, tm)
        if best is None or key > best[0]:
            best = (key, tm)
    return best[1], Mp


def _pick_tk(K, Cpad):
    """Split K so one bf16 weight slab stays under W_SLAB_BYTES (v7x VMEM)."""
    if K % 128 != 0 or K * Cpad * 2 <= W_SLAB_BYTES:
        return K, 1
    max_tk = max(128, (W_SLAB_BYTES // (Cpad * 2)) // 128 * 128)
    for tk in range(min(max_tk, K), 127, -128):
        if K % tk == 0:
            return tk, K // tk
    return K, 1


# ----------------------------------------------------------------------------
# Pallas kernels
# ----------------------------------------------------------------------------
def _conv_kernel(a_ref, b_ref, y_ref, *rest, neg_slope, with_stats, n_k):
    """One (M, K) tile of (patches @ weight) with optional K-axis accumulation,
    fused LeakyReLU, and per-tile BatchNorm sum / sum-of-squares epilogue."""
    idx = 0
    s_ref = None
    if with_stats:
        s_ref = rest[idx]
        idx += 1
    acc_ref = rest[idx] if n_k > 1 else None

    def finalize(y):
        if with_stats:
            s_ref[0, 0:1, :] = jnp.sum(y, axis=0, keepdims=True)
            s_ref[0, 1:2, :] = jnp.sum(y * y, axis=0, keepdims=True)
        if neg_slope is not None:
            y = jnp.maximum(y, neg_slope * y)        # LeakyReLU, 2 VALU ops
        y_ref[...] = y.astype(y_ref.dtype)

    part = jnp.dot(a_ref[...], b_ref[...], preferred_element_type=jnp.float32)

    if n_k == 1:
        finalize(part)
    else:
        k = pl.program_id(1)

        @pl.when(k == 0)
        def _():
            acc_ref[...] = jnp.zeros_like(acc_ref)

        acc_ref[...] += part

        @pl.when(k == n_k - 1)
        def _():
            finalize(acc_ref[...])


def pallas_conv(patches, w_mat, *, neg_slope=None, with_stats=False,
                out_dtype=jnp.float32):
    """patches [M, K] (bf16) @ w_mat [K, Cout] -> (y [Mp, Cpad], stats | None).

    Cout is zero-padded to a multiple of 128 lanes; K is optionally tiled with
    an accumulator scratch.  stats is [n_m_tiles, 2, Cpad]: row 0 = per-channel
    sum, row 1 = sum of squares (f32, computed before the activation)."""
    M, K = patches.shape
    Cout = w_mat.shape[1]
    Cpad = _round_up(Cout, LANE)

    a = patches.astype(jnp.bfloat16)   # no-op: producer already emits bf16
    b = jnp.pad(w_mat, ((0, 0), (0, Cpad - Cout))).astype(jnp.bfloat16)

    tm, Mp = _pick_tm(M, _tm_cap())
    if Mp != M:
        a = jnp.pad(a, ((0, Mp - M), (0, 0)))   # zero rows: stats stay exact
    n_m = Mp // tm
    tk, n_k = _pick_tk(K, Cpad)

    out_shape = [jax.ShapeDtypeStruct((Mp, Cpad), out_dtype)]
    out_specs = [pl.BlockSpec((tm, Cpad), lambda i, k: (i, 0))]
    if with_stats:
        out_shape.append(jax.ShapeDtypeStruct((n_m, 2, Cpad), jnp.float32))
        out_specs.append(pl.BlockSpec((1, 2, Cpad), lambda i, k: (i, 0, 0)))

    scratch_shapes = []
    if n_k > 1:
        scratch_shapes.append(pltpu.VMEM((tm, Cpad), jnp.float32))

    outs = pl.pallas_call(
        functools.partial(_conv_kernel, neg_slope=neg_slope,
                          with_stats=with_stats, n_k=n_k),
        out_shape=out_shape,
        grid=(n_m, n_k),
        in_specs=[
            pl.BlockSpec((tm, tk), lambda i, k: (i, k)),     # bf16 patch tile
            pl.BlockSpec((tk, Cpad), lambda i, k: (k, 0)),   # bf16 weight slab
        ],
        out_specs=out_specs,
        scratch_shapes=scratch_shapes,
        compiler_params=pltpu.CompilerParams(
            dimension_semantics=("parallel", "arbitrary"),
            vmem_limit_bytes=_vmem_limit_bytes()),
    )(a, b)
    y = outs[0]
    stats = outs[1] if with_stats else None
    return y, stats


def _affine_lrelu_kernel(y_ref, s_ref, b_ref, o_ref, *, neg_slope):
    z = y_ref[...] * s_ref[...] + b_ref[...]
    o_ref[...] = jnp.maximum(z, neg_slope * z).astype(o_ref.dtype)


def pallas_affine_lrelu(y, scale, shift):
    """Per-channel affine (BatchNorm normalize) + LeakyReLU over [M, Cpad];
    reads f32, writes bf16 (the next conv layer's operand dtype)."""
    M, Cpad = y.shape
    tm, Mp = _pick_tm(M, _tm_cap())
    if Mp != M:                        # not hit: M is already a multiple of 16
        y = jnp.pad(y, ((0, Mp - M), (0, 0)))
    return pl.pallas_call(
        functools.partial(_affine_lrelu_kernel, neg_slope=NEG_SLOPE),
        out_shape=jax.ShapeDtypeStruct((Mp, Cpad), jnp.bfloat16),
        grid=(Mp // tm,),
        in_specs=[
            pl.BlockSpec((tm, Cpad), lambda i: (i, 0)),
            pl.BlockSpec((1, Cpad), lambda i: (0, 0)),
            pl.BlockSpec((1, Cpad), lambda i: (0, 0)),
        ],
        out_specs=pl.BlockSpec((tm, Cpad), lambda i: (i, 0)),
        compiler_params=pltpu.CompilerParams(
            dimension_semantics=("parallel",),
            vmem_limit_bytes=_vmem_limit_bytes()),
    )(y, scale.reshape(1, Cpad), shift.reshape(1, Cpad))


# ----------------------------------------------------------------------------
# Plain-JAX glue: NHWC im2col, weight layout, spectral norm, init
# ----------------------------------------------------------------------------
def im2col_nhwc(x, kh, kw, stride, pad):
    """x [N, H, W, C] -> patches [N*OH*OW, kh*kw*C] ((kh,kw) major, C minor).
    The slab is built in x's dtype (bf16 from the producer)."""
    N, H, W, C = x.shape
    xp = jnp.pad(x, ((0, 0), (pad, pad), (pad, pad), (0, 0))) if pad else x
    OH = (H + 2 * pad - kh) // stride + 1
    OW = (W + 2 * pad - kw) // stride + 1
    cols = []
    for i in range(kh):
        for j in range(kw):
            cols.append(xp[:, i:i + stride * OH:stride,
                           j:j + stride * OW:stride, :])
    p = jnp.stack(cols, axis=3)                      # [N, OH, OW, kh*kw, C]
    return p.reshape(N * OH * OW, kh * kw * C), OH, OW


def _w_to_mat(w):
    """[Cout, Cin, kh, kw] -> [kh*kw*Cin, Cout] matching NHWC im2col order."""
    cout, cin, kh, kw = w.shape
    return w.transpose(2, 3, 1, 0).reshape(kh * kw * cin, cout)


def spectral_normalize(w, u0, n_iters=8, eps=1e-12):
    """Divide conv weight by its spectral norm (power iteration, eval-style)."""
    cout = w.shape[0]
    w_mat = w.reshape(cout, -1)
    u = u0 / (jnp.linalg.norm(u0) + eps)
    v = None
    for _ in range(n_iters):
        v = w_mat.T @ u
        v = v / (jnp.linalg.norm(v) + eps)
        u = w_mat @ v
        u = u / (jnp.linalg.norm(u) + eps)
    sigma = u @ (w_mat @ v)
    return w / sigma


def init_params(key, ndf):
    shapes = [
        (ndf, 1, 4, 4),
        (ndf * 2, ndf, 4, 4),
        (ndf * 4, ndf * 2, 4, 4),
        (ndf * 8, ndf * 4, 4, 4),
        (1, ndf * 8, 4, 4),
    ]
    keys = jax.random.split(key, 2 * len(shapes))
    params = {}
    for i, s in enumerate(shapes):
        raw = 0.02 * jax.random.normal(keys[2 * i], s, jnp.float32)
        u0 = jax.random.normal(keys[2 * i + 1], (s[0],), jnp.float32)
        params[f"w{i + 1}"] = spectral_normalize(raw, u0)
    for i, c in zip((2, 3, 4), (ndf * 2, ndf * 4, ndf * 8)):
        params[f"g{i}"] = jnp.ones((c,), jnp.float32)    # BN weight
        params[f"b{i}"] = jnp.zeros((c,), jnp.float32)   # BN bias
    return params


# ----------------------------------------------------------------------------
# Forward pass (NHWC / bf16 internally, NCHW f32 external input like PyTorch)
# ----------------------------------------------------------------------------
def conv_lrelu(x, w):
    """conv(k=4, s=2, p=1, no bias) + LeakyReLU fused in the matmul epilogue."""
    N = x.shape[0]
    cout = w.shape[0]
    patches, OH, OW = im2col_nhwc(x.astype(jnp.bfloat16), 4, 4, 2, 1)
    M = patches.shape[0]
    y, _ = pallas_conv(patches, _w_to_mat(w), neg_slope=NEG_SLOPE,
                       out_dtype=jnp.bfloat16)
    return y[:M, :cout].reshape(N, OH, OW, cout)


def conv_bn_lrelu(x, w, gamma, beta):
    """conv(k=4,s=2,p=1) -> BatchNorm2d (batch stats, biased var) -> LeakyReLU."""
    N = x.shape[0]
    cout = w.shape[0]
    patches, OH, OW = im2col_nhwc(x.astype(jnp.bfloat16), 4, 4, 2, 1)
    M = patches.shape[0]
    # Pre-BN conv output stays f32 so BN normalizes un-rounded values.
    y, stats = pallas_conv(patches, _w_to_mat(w), with_stats=True,
                           out_dtype=jnp.float32)
    Cpad = y.shape[1]
    # Reduce tiny per-tile partial sums; zero-padded rows/channels contribute 0.
    s = jnp.sum(stats[:, 0, :], axis=0)
    sq = jnp.sum(stats[:, 1, :], axis=0)
    mean = s / M
    var = jnp.maximum(sq / M - mean * mean, 0.0)          # biased variance
    inv = jax.lax.rsqrt(var + BN_EPS)
    scale = jnp.pad(gamma, (0, Cpad - cout)) * inv
    shift = jnp.pad(beta, (0, Cpad - cout)) - mean * scale
    z = pallas_affine_lrelu(y, scale, shift)
    return z[:M, :cout].reshape(N, OH, OW, cout)


def conv5_scores(x, w):
    """conv(k=4, s=1, p=0, Cout=1) + adaptive_avg_pool2d(1) + view(-1), as a
    sum over the 16 (kh, kw) taps — no im2col slab; bf16 taps, f32 accumulate.
    A [M,K]@[K,1] Pallas matmul would use <1% of the MXU width, so plain JAX."""
    N, H, W, _ = x.shape
    OH, OW = H - 3, W - 3
    wt = w[0].astype(jnp.bfloat16)                        # [Cin, 4, 4]
    acc = jnp.zeros((N, OH, OW), jnp.float32)
    for i in range(4):
        for j in range(4):
            tap = x[:, i:i + OH, j:j + OW, :].astype(jnp.bfloat16)
            acc = acc + jnp.einsum("nhwc,c->nhw", tap, wt[:, i, j],
                                   preferred_element_type=jnp.float32)
    return jnp.mean(acc.reshape(N, OH * OW), axis=1)


def discriminator_forward(x_nchw, params):
    # Single NCHW->NHWC transpose + bf16 cast at entry (producer-side dtype).
    x = jnp.transpose(x_nchw, (0, 2, 3, 1)).astype(jnp.bfloat16)
    x = conv_lrelu(x, params["w1"])
    for i in (2, 3, 4):
        x = conv_bn_lrelu(x, params[f"w{i}"], params[f"g{i}"], params[f"b{i}"])
    return conv5_scores(x, params["w5"])


if __name__ == "__main__":
    key = jax.random.PRNGKey(0)
    pkey, xkey = jax.random.split(key)

    ndf = 8
    params = init_params(pkey, ndf)
    # Smallest spatial size the 4x stride-2 + final k=4 conv stack admits.
    x = jax.random.normal(xkey, (2, 1, 64, 64), jnp.float32)   # NCHW like PyTorch

    fwd = jax.jit(discriminator_forward)
    out = fwd(x, params)
    jax.block_until_ready(out)

    assert out.shape == (2,) and out.dtype == jnp.float32
    assert bool(jnp.all(jnp.isfinite(out)))
    print("KERNEL_OK")
</pallas_src>

<mosaic_0001>
module attributes {stable_mosaic.version = 11 : i64} {
  func.func @_conv_kernel(%arg0: i32, %arg1: i32, %arg2: memref<512x16xbf16, #tpu.memory_space<vmem>>, %arg3: memref<16x128xbf16, #tpu.memory_space<vmem>>, %arg4: memref<512x128xbf16, #tpu.memory_space<vmem>>) attributes {dimension_semantics = [#tpu.dimension_semantics<parallel>, #tpu.dimension_semantics<arbitrary>], iteration_bounds = array<i64: 4, 1>, scalar_prefetch = 0 : i64, scratch_operands = 0 : i64, tpu.core_type = #tpu.core_type<tc>, window_params = [{transform_indices = @transform_0, window_bounds = array<i64: 512, 16>}, {transform_indices = @transform_1, window_bounds = array<i64: 16, 128>}, {transform_indices = @transform_2, window_bounds = array<i64: 512, 128>}]} {
    %c0 = arith.constant 0 : index
    %c0_0 = arith.constant 0 : index
    %0 = vector.load %arg2[%c0, %c0_0] : memref<512x16xbf16, #tpu.memory_space<vmem>>, vector<512x16xbf16>
    %c0_1 = arith.constant 0 : index
    %c0_2 = arith.constant 0 : index
    %1 = vector.load %arg3[%c0_1, %c0_2] : memref<16x128xbf16, #tpu.memory_space<vmem>>, vector<16x128xbf16>
    %cst = arith.constant dense<0.000000e+00> : vector<512x128xf32>
    %2 = tpu.matmul %0, %1, %cst {dimension_numbers = #tpu.dot_dimension_numbers<[1], [0], [0], [1], [0, 0, 1, 1], [], []>} : vector<512x16xbf16>, vector<16x128xbf16>, vector<512x128xf32> -> vector<512x128xf32>
    %cst_3 = arith.constant 2.000000e-01 : f32
    %3 = vector.broadcast %cst_3 : f32 to vector<512x128xf32>
    %4 = arith.mulf %3, %2 : vector<512x128xf32>
    %5 = arith.maximumf %2, %4 : vector<512x128xf32>
    %6 = arith.truncf %5 : vector<512x128xf32> to vector<512x128xbf16>
    %c0_4 = arith.constant 0 : index
    %c0_5 = arith.constant 0 : index
    %7 = vector.load %arg4[%c0_4, %c0_5] : memref<512x128xbf16, #tpu.memory_space<vmem>>, vector<512x128xbf16>
    tpu.vector_store %arg4[%c0_4, %c0_5], %6 {strides = array<i32>} : memref<512x128xbf16, #tpu.memory_space<vmem>>, vector<512x128xbf16>,
    return
  }
  func.func @transform_0(%arg0: i32, %arg1: i32) -> (i32, i32) {
    %c0_i32 = arith.constant 0 : i32
    return %arg0, %arg1 : i32, i32
  }
  func.func @transform_1(%arg0: i32, %arg1: i32) -> (i32, i32) {
    %c0_i32 = arith.constant 0 : i32
    %c0_i32_0 = arith.constant 0 : i32
    return %arg1, %c0_i32 : i32, i32
  }
  func.func @transform_2(%arg0: i32, %arg1: i32) -> (i32, i32) {
    %c0_i32 = arith.constant 0 : i32
    %c0_i32_0 = arith.constant 0 : i32
    return %arg0, %c0_i32 : i32, i32
  }
}

module attributes {stable_mosaic.version = 11 : i64} {
  func.func @_conv_kernel(%arg0: i32, %arg1: i32, %arg2: memref<128x128xbf16, #tpu.memory_space<vmem>>, %arg3: memref<128x128xbf16, #tpu.memory_space<vmem>>, %arg4: memref<128x128xf32, #tpu.memory_space<vmem>>, %arg5: memref<1x2x128xf32, #tpu.memory_space<vmem>>) attributes {dimension_semantics = [#tpu.dimension_semantics<parallel>, #tpu.dimension_semantics<arbitrary>], iteration_bounds = array<i64: 4, 1>, scalar_prefetch = 0 : i64, scratch_operands = 0 : i64, tpu.core_type = #tpu.core_type<tc>, window_params = [{transform_indices = @transform_0, window_bounds = array<i64: 128, 128>}, {transform_indices = @transform_1, window_bounds = array<i64: 128, 128>}, {transform_indices = @transform_2, window_bounds = array<i64: 128, 128>}, {transform_indices = @transform_3, window_bounds = array<i64: 1, 2, 128>}]} {
    %c0 = arith.constant 0 : index
    %c0_0 = arith.constant 0 : index
    %0 = vector.load %arg2[%c0, %c0_0] : memref<128x128xbf16, #tpu.memory_space<vmem>>, vector<128x128xbf16>
    %c0_1 = arith.constant 0 : index
    %c0_2 = arith.constant 0 : index
    %1 = vector.load %arg3[%c0_1, %c0_2] : memref<128x128xbf16, #tpu.memory_space<vmem>>, vector<128x128xbf16>
    %cst = arith.constant dense<0.000000e+00> : vector<128x128xf32>
    %2 = tpu.matmul %0, %1, %cst {dimension_numbers = #tpu.dot_dimension_numbers<[1], [0], [0], [1], [0, 0, 1, 1], [], []>} : vector<128x128xbf16>, vector<128x128xbf16>, vector<128x128xf32> -> vector<128x128xf32>
    %cst_3 = arith.constant dense<0.000000e+00> : vector<128xf32>
    %3 = vector.multi_reduction <add>, %2, %cst_3 [0] : vector<128x128xf32> to vector<128xf32>
    %4 = vector.shape_cast %3 : vector<128xf32> to vector<1x128xf32>
    %c0_4 = arith.constant 0 : index
    %c0_5 = arith.constant 0 : index
    %c0_6 = arith.constant 0 : index
    %5 = vector.load %arg5[%c0_4, %c0_5, %c0_6] : memref<1x2x128xf32, #tpu.memory_space<vmem>>, vector<1x1x128xf32>
    %6 = vector.shape_cast %5 : vector<1x1x128xf32> to vector<1x128xf32>
    %7 = vector.shape_cast %4 : vector<1x128xf32> to vector<1x1x128xf32>
    tpu.vector_store %arg5[%c0_4, %c0_5, %c0_6], %7 {strides = array<i32>} : memref<1x2x128xf32, #tpu.memory_space<vmem>>, vector<1x1x128xf32>,
    %8 = arith.mulf %2, %2 : vector<128x128xf32>
    %cst_7 = arith.constant dense<0.000000e+00> : vector<128xf32>
    %9 = vector.multi_reduction <add>, %8, %cst_7 [0] : vector<128x128xf32> to vector<128xf32>
    %10 = vector.shape_cast %9 : vector<128xf32> to vector<1x128xf32>
    %c0_8 = arith.constant 0 : index
    %c1 = arith.constant 1 : index
    %c0_9 = arith.constant 0 : index
    %11 = vector.load %arg5[%c0_8, %c1, %c0_9] : memref<1x2x128xf32, #tpu.memory_space<vmem>>, vector<1x1x128xf32>
    %12 = vector.shape_cast %11 : vector<1x1x128xf32> to vector<1x128xf32>
    %13 = vector.shape_cast %10 : vector<1x128xf32> to vector<1x1x128xf32>
    tpu.vector_store %arg5[%c0_8, %c1, %c0_9], %13 {strides = array<i32>} : memref<1x2x128xf32, #tpu.memory_space<vmem>>, vector<1x1x128xf32>,
    %c0_10 = arith.constant 0 : index
    %c0_11 = arith.constant 0 : index
    %14 = vector.load %arg4[%c0_10, %c0_11] : memref<128x128xf32, #tpu.memory_space<vmem>>, vector<128x128xf32>
    tpu.vector_store %arg4[%c0_10, %c0_11], %2 {strides = array<i32>} : memref<128x128xf32, #tpu.memory_space<vmem>>, vector<128x128xf32>,
    return
  }
  func.func @transform_0(%arg0: i32, %arg1: i32) -> (i32, i32) {
    %c0_i32 = arith.constant 0 : i32
    return %arg0, %arg1 : i32, i32
  }
  func.func @transform_1(%arg0: i32, %arg1: i32) -> (i32, i32) {
    %c0_i32 = arith.constant 0 : i32
    %c0_i32_0 = arith.constant 0 : i32
    return %arg1, %c0_i32 : i32, i32
  }
  func.func @transform_2(%arg0: i32, %arg1: i32) -> (i32, i32) {
    %c0_i32 = arith.constant 0 : i32
    %c0_i32_0 = arith.constant 0 : i32
    return %arg0, %c0_i32 : i32, i32
  }
  func.func @transform_3(%arg0: i32, %arg1: i32) -> (i32, i32, i32) {
    %c0_i32 = arith.constant 0 : i32
    %c0_i32_0 = arith.constant 0 : i32
    %c0_i32_1 = arith.constant 0 : i32
    return %arg0, %c0_i32, %c0_i32_0 : i32, i32, i32
  }
}

module attributes {stable_mosaic.version = 11 : i64} {
  func.func @_affine_lrelu_kernel(%arg0: i32, %arg1: memref<128x128xf32, #tpu.memory_space<vmem>>, %arg2: memref<1x128xf32, #tpu.memory_space<vmem>>, %arg3: memref<1x128xf32, #tpu.memory_space<vmem>>, %arg4: memref<128x128xbf16, #tpu.memory_space<vmem>>) attributes {dimension_semantics = [#tpu.dimension_semantics<parallel>], iteration_bounds = array<i64: 4>, scalar_prefetch = 0 : i64, scratch_operands = 0 : i64, tpu.core_type = #tpu.core_type<tc>, window_params = [{transform_indices = @transform_0, window_bounds = array<i64: 128, 128>}, {pipeline_mode = #tpu.pipeline_mode<synchronous>, transform_indices = @transform_1, window_bounds = array<i64: 1, 128>}, {pipeline_mode = #tpu.pipeline_mode<synchronous>, transform_indices = @transform_2, window_bounds = array<i64: 1, 128>}, {transform_indices = @transform_3, window_bounds = array<i64: 128, 128>}]} {
    %c0 = arith.constant 0 : index
    %c0_0 = arith.constant 0 : index
    %0 = vector.load %arg1[%c0, %c0_0] : memref<128x128xf32, #tpu.memory_space<vmem>>, vector<128x128xf32>
    %c0_1 = arith.constant 0 : index
    %c0_2 = arith.constant 0 : index
    %1 = vector.load %arg2[%c0_1, %c0_2] : memref<1x128xf32, #tpu.memory_space<vmem>>, vector<1x128xf32>
    %2 = vector.broadcast %1 : vector<1x128xf32> to vector<128x128xf32>
    %3 = arith.mulf %0, %2 : vector<128x128xf32>
    %c0_3 = arith.constant 0 : index
    %c0_4 = arith.constant 0 : index
    %4 = vector.load %arg3[%c0_3, %c0_4] : memref<1x128xf32, #tpu.memory_space<vmem>>, vector<1x128xf32>
    %5 = vector.broadcast %4 : vector<1x128xf32> to vector<128x128xf32>
    %6 = arith.addf %3, %5 : vector<128x128xf32>
    %cst = arith.constant 2.000000e-01 : f32
    %7 = vector.broadcast %cst : f32 to vector<128x128xf32>
    %8 = arith.mulf %7, %6 : vector<128x128xf32>
    %9 = arith.maximumf %6, %8 : vector<128x128xf32>
    %10 = arith.truncf %9 : vector<128x128xf32> to vector<128x128xbf16>
    %c0_5 = arith.constant 0 : index
    %c0_6 = arith.constant 0 : index
    %11 = vector.load %arg4[%c0_5, %c0_6] : memref<128x128xbf16, #tpu.memory_space<vmem>>, vector<128x128xbf16>
    tpu.vector_store %arg4[%c0_5, %c0_6], %10 {strides = array<i32>} : memref<128x128xbf16, #tpu.memory_space<vmem>>, vector<128x128xbf16>,
    return
  }
  func.func @transform_0(%arg0: i32) -> (i32, i32) {
    %c0_i32 = arith.constant 0 : i32
    %c0_i32_0 = arith.constant 0 : i32
    return %arg0, %c0_i32 : i32, i32
  }
  func.func @transform_1(%arg0: i32) -> (i32, i32) {
    %c0_i32 = arith.constant 0 : i32
    %c0_i32_0 = arith.constant 0 : i32
    %c0_i32_1 = arith.constant 0 : i32
    return %c0_i32, %c0_i32_0 : i32, i32
  }
  func.func @transform_2(%arg0: i32) -> (i32, i32) {
    %c0_i32 = arith.constant 0 : i32
    %c0_i32_0 = arith.constant 0 : i32
    %c0_i32_1 = arith.constant 0 : i32
    return %c0_i32, %c0_i32_0 : i32, i32
  }
  func.func @transform_3(%arg0: i32) -> (i32, i32) {
    %c0_i32 = arith.constant 0 : i32
    %c0_i32_0 = arith.constant 0 : i32
    return %arg0, %c0_i32 : i32, i32
  }
}

module attributes {stable_mosaic.version = 11 : i64} {
  func.func @_conv_kernel(%arg0: i32, %arg1: i32, %arg2: memref<32x256xbf16, #tpu.memory_space<vmem>>, %arg3: memref<256x128xbf16, #tpu.memory_space<vmem>>, %arg4: memref<32x128xf32, #tpu.memory_space<vmem>>, %arg5: memref<1x2x128xf32, #tpu.memory_space<vmem>>) attributes {dimension_semantics = [#tpu.dimension_semantics<parallel>, #tpu.dimension_semantics<arbitrary>], iteration_bounds = array<i64: 4, 1>, scalar_prefetch = 0 : i64, scratch_operands = 0 : i64, tpu.core_type = #tpu.core_type<tc>, window_params = [{transform_indices = @transform_0, window_bounds = array<i64: 32, 256>}, {transform_indices = @transform_1, window_bounds = array<i64: 256, 128>}, {transform_indices = @transform_2, window_bounds = array<i64: 32, 128>}, {transform_indices = @transform_3, window_bounds = array<i64: 1, 2, 128>}]} {
    %c0 = arith.constant 0 : index
    %c0_0 = arith.constant 0 : index
    %0 = vector.load %arg2[%c0, %c0_0] : memref<32x256xbf16, #tpu.memory_space<vmem>>, vector<32x256xbf16>
    %c0_1 = arith.constant 0 : index
    %c0_2 = arith.constant 0 : index
    %1 = vector.load %arg3[%c0_1, %c0_2] : memref<256x128xbf16, #tpu.memory_space<vmem>>, vector<256x128xbf16>
    %cst = arith.constant dense<0.000000e+00> : vector<32x128xf32>
    %2 = tpu.matmul %0, %1, %cst {dimension_numbers = #tpu.dot_dimension_numbers<[1], [0], [0], [1], [0, 0, 1, 1], [], []>} : vector<32x256xbf16>, vector<256x128xbf16>, vector<32x128xf32> -> vector<32x128xf32>
    %cst_3 = arith.constant dense<0.000000e+00> : vector<128xf32>
    %3 = vector.multi_reduction <add>, %2, %cst_3 [0] : vector<32x128xf32> to vector<128xf32>
    %4 = vector.shape_cast %3 : vector<128xf32> to vector<1x128xf32>
    %c0_4 = arith.constant 0 : index
    %c0_5 = arith.constant 0 : index
    %c0_6 = arith.constant 0 : index
    %5 = vector.load %arg5[%c0_4, %c0_5, %c0_6] : memref<1x2x128xf32, #tpu.memory_space<vmem>>, vector<1x1x128xf32>
    %6 = vector.shape_cast %5 : vector<1x1x128xf32> to vector<1x128xf32>
    %7 = vector.shape_cast %4 : vector<1x128xf32> to vector<1x1x128xf32>
    tpu.vector_store %arg5[%c0_4, %c0_5, %c0_6], %7 {strides = array<i32>} : memref<1x2x128xf32, #tpu.memory_space<vmem>>, vector<1x1x128xf32>,
    %8 = arith.mulf %2, %2 : vector<32x128xf32>
    %cst_7 = arith.constant dense<0.000000e+00> : vector<128xf32>
    %9 = vector.multi_reduction <add>, %8, %cst_7 [0] : vector<32x128xf32> to vector<128xf32>
    %10 = vector.shape_cast %9 : vector<128xf32> to vector<1x128xf32>
    %c0_8 = arith.constant 0 : index
    %c1 = arith.constant 1 : index
    %c0_9 = arith.constant 0 : index
    %11 = vector.load %arg5[%c0_8, %c1, %c0_9] : memref<1x2x128xf32, #tpu.memory_space<vmem>>, vector<1x1x128xf32>
    %12 = vector.shape_cast %11 : vector<1x1x128xf32> to vector<1x128xf32>
    %13 = vector.shape_cast %10 : vector<1x128xf32> to vector<1x1x128xf32>
    tpu.vector_store %arg5[%c0_8, %c1, %c0_9], %13 {strides = array<i32>} : memref<1x2x128xf32, #tpu.memory_space<vmem>>, vector<1x1x128xf32>,
    %c0_10 = arith.constant 0 : index
    %c0_11 = arith.constant 0 : index
    %14 = vector.load %arg4[%c0_10, %c0_11] : memref<32x128xf32, #tpu.memory_space<vmem>>, vector<32x128xf32>
    tpu.vector_store %arg4[%c0_10, %c0_11], %2 {strides = array<i32>} : memref<32x128xf32, #tpu.memory_space<vmem>>, vector<32x128xf32>,
    return
  }
  func.func @transform_0(%arg0: i32, %arg1: i32) -> (i32, i32) {
    %c0_i32 = arith.constant 0 : i32
    return %arg0, %arg1 : i32, i32
  }
  func.func @transform_1(%arg0: i32, %arg1: i32) -> (i32, i32) {
    %c0_i32 = arith.constant 0 : i32
    %c0_i32_0 = arith.constant 0 : i32
    return %arg1, %c0_i32 : i32, i32
  }
  func.func @transform_2(%arg0: i32, %arg1: i32) -> (i32, i32) {
    %c0_i32 = arith.constant 0 : i32
    %c0_i32_0 = arith.constant 0 : i32
    return %arg0, %c0_i32 : i32, i32
  }
  func.func @transform_3(%arg0: i32, %arg1: i32) -> (i32, i32, i32) {
    %c0_i32 = arith.constant 0 : i32
    %c0_i32_0 = arith.constant 0 : i32
    %c0_i32_1 = arith.constant 0 : i32
    return %arg0, %c0_i32, %c0_i32_0 : i32, i32, i32
  }
}

module attributes {stable_mosaic.version = 11 : i64} {
  func.func @_affine_lrelu_kernel(%arg0: i32, %arg1: memref<32x128xf32, #tpu.memory_space<vmem>>, %arg2: memref<1x128xf32, #tpu.memory_space<vmem>>, %arg3: memref<1x128xf32, #tpu.memory_space<vmem>>, %arg4: memref<32x128xbf16, #tpu.memory_space<vmem>>) attributes {dimension_semantics = [#tpu.dimension_semantics<parallel>], iteration_bounds = array<i64: 4>, scalar_prefetch = 0 : i64, scratch_operands = 0 : i64, tpu.core_type = #tpu.core_type<tc>, window_params = [{transform_indices = @transform_0, window_bounds = array<i64: 32, 128>}, {pipeline_mode = #tpu.pipeline_mode<synchronous>, transform_indices = @transform_1, window_bounds = array<i64: 1, 128>}, {pipeline_mode = #tpu.pipeline_mode<synchronous>, transform_indices = @transform_2, window_bounds = array<i64: 1, 128>}, {transform_indices = @transform_3, window_bounds = array<i64: 32, 128>}]} {
    %c0 = arith.constant 0 : index
    %c0_0 = arith.constant 0 : index
    %0 = vector.load %arg1[%c0, %c0_0] : memref<32x128xf32, #tpu.memory_space<vmem>>, vector<32x128xf32>
    %c0_1 = arith.constant 0 : index
    %c0_2 = arith.constant 0 : index
    %1 = vector.load %arg2[%c0_1, %c0_2] : memref<1x128xf32, #tpu.memory_space<vmem>>, vector<1x128xf32>
    %2 = vector.broadcast %1 : vector<1x128xf32> to vector<32x128xf32>
    %3 = arith.mulf %0, %2 : vector<32x128xf32>
    %c0_3 = arith.constant 0 : index
    %c0_4 = arith.constant 0 : index
    %4 = vector.load %arg3[%c0_3, %c0_4] : memref<1x128xf32, #tpu.memory_space<vmem>>, vector<1x128xf32>
    %5 = vector.broadcast %4 : vector<1x128xf32> to vector<32x128xf32>
    %6 = arith.addf %3, %5 : vector<32x128xf32>
    %cst = arith.constant 2.000000e-01 : f32
    %7 = vector.broadcast %cst : f32 to vector<32x128xf32>
    %8 = arith.mulf %7, %6 : vector<32x128xf32>
    %9 = arith.maximumf %6, %8 : vector<32x128xf32>
    %10 = arith.truncf %9 : vector<32x128xf32> to vector<32x128xbf16>
    %c0_5 = arith.constant 0 : index
    %c0_6 = arith.constant 0 : index
    %11 = vector.load %arg4[%c0_5, %c0_6] : memref<32x128xbf16, #tpu.memory_space<vmem>>, vector<32x128xbf16>
    tpu.vector_store %arg4[%c0_5, %c0_6], %10 {strides = array<i32>} : memref<32x128xbf16, #tpu.memory_space<vmem>>, vector<32x128xbf16>,
    return
  }
  func.func @transform_0(%arg0: i32) -> (i32, i32) {
    %c0_i32 = arith.constant 0 : i32
    %c0_i32_0 = arith.constant 0 : i32
    return %arg0, %c0_i32 : i32, i32
  }
  func.func @transform_1(%arg0: i32) -> (i32, i32) {
    %c0_i32 = arith.constant 0 : i32
    %c0_i32_0 = arith.constant 0 : i32
    %c0_i32_1 = arith.constant 0 : i32
    return %c0_i32, %c0_i32_0 : i32, i32
  }
  func.func @transform_2(%arg0: i32) -> (i32, i32) {
    %c0_i32 = arith.constant 0 : i32
    %c0_i32_0 = arith.constant 0 : i32
    %c0_i32_1 = arith.constant 0 : i32
    return %c0_i32, %c0_i32_0 : i32, i32
  }
  func.func @transform_3(%arg0: i32) -> (i32, i32) {
    %c0_i32 = arith.constant 0 : i32
    %c0_i32_0 = arith.constant 0 : i32
    return %arg0, %c0_i32 : i32, i32
  }
}

module attributes {stable_mosaic.version = 11 : i64} {
  func.func @_affine_lrelu_kernel(%arg0: i32, %arg1: memref<16x128xf32, #tpu.memory_space<vmem>>, %arg2: memref<1x128xf32, #tpu.memory_space<vmem>>, %arg3: memref<1x128xf32, #tpu.memory_space<vmem>>, %arg4: memref<16x128xbf16, #tpu.memory_space<vmem>>) attributes {dimension_semantics = [#tpu.dimension_semantics<parallel>], iteration_bounds = array<i64: 2>, scalar_prefetch = 0 : i64, scratch_operands = 0 : i64, tpu.core_type = #tpu.core_type<tc>, window_params = [{transform_indices = @transform_0, window_bounds = array<i64: 16, 128>}, {pipeline_mode = #tpu.pipeline_mode<synchronous>, transform_indices = @transform_1, window_bounds = array<i64: 1, 128>}, {pipeline_mode = #tpu.pipeline_mode<synchronous>, transform_indices = @transform_2, window_bounds = array<i64: 1, 128>}, {transform_indices = @transform_3, window_bounds = array<i64: 16, 128>}]} {
    %c0 = arith.constant 0 : index
    %c0_0 = arith.constant 0 : index
    %0 = vector.load %arg1[%c0, %c0_0] : memref<16x128xf32, #tpu.memory_space<vmem>>, vector<16x128xf32>
    %c0_1 = arith.constant 0 : index
    %c0_2 = arith.constant 0 : index
    %1 = vector.load %arg2[%c0_1, %c0_2] : memref<1x128xf32, #tpu.memory_space<vmem>>, vector<1x128xf32>
    %2 = vector.broadcast %1 : vector<1x128xf32> to vector<16x128xf32>
    %3 = arith.mulf %0, %2 : vector<16x128xf32>
    %c0_3 = arith.constant 0 : index
    %c0_4 = arith.constant 0 : index
    %4 = vector.load %arg3[%c0_3, %c0_4] : memref<1x128xf32, #tpu.memory_space<vmem>>, vector<1x128xf32>
    %5 = vector.broadcast %4 : vector<1x128xf32> to vector<16x128xf32>
    %6 = arith.addf %3, %5 : vector<16x128xf32>
    %cst = arith.constant 2.000000e-01 : f32
    %7 = vector.broadcast %cst : f32 to vector<16x128xf32>
    %8 = arith.mulf %7, %6 : vector<16x128xf32>
    %9 = arith.maximumf %6, %8 : vector<16x128xf32>
    %10 = arith.truncf %9 : vector<16x128xf32> to vector<16x128xbf16>
    %c0_5 = arith.constant 0 : index
    %c0_6 = arith.constant 0 : index
    %11 = vector.load %arg4[%c0_5, %c0_6] : memref<16x128xbf16, #tpu.memory_space<vmem>>, vector<16x128xbf16>
    tpu.vector_store %arg4[%c0_5, %c0_6], %10 {strides = array<i32>} : memref<16x128xbf16, #tpu.memory_space<vmem>>, vector<16x128xbf16>,
    return
  }
  func.func @transform_0(%arg0: i32) -> (i32, i32) {
    %c0_i32 = arith.constant 0 : i32
    %c0_i32_0 = arith.constant 0 : i32
    return %arg0, %c0_i32 : i32, i32
  }
  func.func @transform_1(%arg0: i32) -> (i32, i32) {
    %c0_i32 = arith.constant 0 : i32
    %c0_i32_0 = arith.constant 0 : i32
    %c0_i32_1 = arith.constant 0 : i32
    return %c0_i32, %c0_i32_0 : i32, i32
  }
  func.func @transform_2(%arg0: i32) -> (i32, i32) {
    %c0_i32 = arith.constant 0 : i32
    %c0_i32_0 = arith.constant 0 : i32
    %c0_i32_1 = arith.constant 0 : i32
    return %c0_i32, %c0_i32_0 : i32, i32
  }
  func.func @transform_3(%arg0: i32) -> (i32, i32) {
    %c0_i32 = arith.constant 0 : i32
    %c0_i32_0 = arith.constant 0 : i32
    return %arg0, %c0_i32 : i32, i32
  }
}

module attributes {stable_mosaic.version = 11 : i64} {
  func.func @_conv_kernel(%arg0: i32, %arg1: i32, %arg2: memref<16x512xbf16, #tpu.memory_space<vmem>>, %arg3: memref<512x128xbf16, #tpu.memory_space<vmem>>, %arg4: memref<16x128xf32, #tpu.memory_space<vmem>>, %arg5: memref<1x2x128xf32, #tpu.memory_space<vmem>>) attributes {dimension_semantics = [#tpu.dimension_semantics<parallel>, #tpu.dimension_semantics<arbitrary>], iteration_bounds = array<i64: 2, 1>, scalar_prefetch = 0 : i64, scratch_operands = 0 : i64, tpu.core_type = #tpu.core_type<tc>, window_params = [{transform_indices = @transform_0, window_bounds = array<i64: 16, 512>}, {transform_indices = @transform_1, window_bounds = array<i64: 512, 128>}, {transform_indices = @transform_2, window_bounds = array<i64: 16, 128>}, {transform_indices = @transform_3, window_bounds = array<i64: 1, 2, 128>}]} {
    %c0 = arith.constant 0 : index
    %c0_0 = arith.constant 0 : index
    %0 = vector.load %arg2[%c0, %c0_0] : memref<16x512xbf16, #tpu.memory_space<vmem>>, vector<16x512xbf16>
    %c0_1 = arith.constant 0 : index
    %c0_2 = arith.constant 0 : index
    %1 = vector.load %arg3[%c0_1, %c0_2] : memref<512x128xbf16, #tpu.memory_space<vmem>>, vector<512x128xbf16>
    %cst = arith.constant dense<0.000000e+00> : vector<16x128xf32>
    %2 = tpu.matmul %0, %1, %cst {dimension_numbers = #tpu.dot_dimension_numbers<[1], [0], [0], [1], [0, 0, 1, 1], [], []>} : vector<16x512xbf16>, vector<512x128xbf16>, vector<16x128xf32> -> vector<16x128xf32>
    %cst_3 = arith.constant dense<0.000000e+00> : vector<128xf32>
    %3 = vector.multi_reduction <add>, %2, %cst_3 [0] : vector<16x128xf32> to vector<128xf32>
    %4 = vector.shape_cast %3 : vector<128xf32> to vector<1x128xf32>
    %c0_4 = arith.constant 0 : index
    %c0_5 = arith.constant 0 : index
    %c0_6 = arith.constant 0 : index
    %5 = vector.load %arg5[%c0_4, %c0_5, %c0_6] : memref<1x2x128xf32, #tpu.memory_space<vmem>>, vector<1x1x128xf32>
    %6 = vector.shape_cast %5 : vector<1x1x128xf32> to vector<1x128xf32>
    %7 = vector.shape_cast %4 : vector<1x128xf32> to vector<1x1x128xf32>
    tpu.vector_store %arg5[%c0_4, %c0_5, %c0_6], %7 {strides = array<i32>} : memref<1x2x128xf32, #tpu.memory_space<vmem>>, vector<1x1x128xf32>,
    %8 = arith.mulf %2, %2 : vector<16x128xf32>
    %cst_7 = arith.constant dense<0.000000e+00> : vector<128xf32>
    %9 = vector.multi_reduction <add>, %8, %cst_7 [0] : vector<16x128xf32> to vector<128xf32>
    %10 = vector.shape_cast %9 : vector<128xf32> to vector<1x128xf32>
    %c0_8 = arith.constant 0 : index
    %c1 = arith.constant 1 : index
    %c0_9 = arith.constant 0 : index
    %11 = vector.load %arg5[%c0_8, %c1, %c0_9] : memref<1x2x128xf32, #tpu.memory_space<vmem>>, vector<1x1x128xf32>
    %12 = vector.shape_cast %11 : vector<1x1x128xf32> to vector<1x128xf32>
    %13 = vector.shape_cast %10 : vector<1x128xf32> to vector<1x1x128xf32>
    tpu.vector_store %arg5[%c0_8, %c1, %c0_9], %13 {strides = array<i32>} : memref<1x2x128xf32, #tpu.memory_space<vmem>>, vector<1x1x128xf32>,
    %c0_10 = arith.constant 0 : index
    %c0_11 = arith.constant 0 : index
    %14 = vector.load %arg4[%c0_10, %c0_11] : memref<16x128xf32, #tpu.memory_space<vmem>>, vector<16x128xf32>
    tpu.vector_store %arg4[%c0_10, %c0_11], %2 {strides = array<i32>} : memref<16x128xf32, #tpu.memory_space<vmem>>, vector<16x128xf32>,
    return
  }
  func.func @transform_0(%arg0: i32, %arg1: i32) -> (i32, i32) {
    %c0_i32 = arith.constant 0 : i32
    return %arg0, %arg1 : i32, i32
  }
  func.func @transform_1(%arg0: i32, %arg1: i32) -> (i32, i32) {
    %c0_i32 = arith.constant 0 : i32
    %c0_i32_0 = arith.constant 0 : i32
    return %arg1, %c0_i32 : i32, i32
  }
  func.func @transform_2(%arg0: i32, %arg1: i32) -> (i32, i32) {
    %c0_i32 = arith.constant 0 : i32
    %c0_i32_0 = arith.constant 0 : i32
    return %arg0, %c0_i32 : i32, i32
  }
  func.func @transform_3(%arg0: i32, %arg1: i32) -> (i32, i32, i32) {
    %c0_i32 = arith.constant 0 : i32
    %c0_i32_0 = arith.constant 0 : i32
    %c0_i32_1 = arith.constant 0 : i32
    return %arg0, %c0_i32, %c0_i32_0 : i32, i32, i32
  }
}

</mosaic_0001>

<llo_original>
// kernel: discriminator_forward.7
$region0: #{discriminator_forward.7}
  #allocation0 [shape = 'u32[]', space=smem, size = 0x4, offset = 0x4, fixed_abs, tag = 'smem constant byte address 0x4 - core index']
  #allocation1 [shape = 'u32[72,128]{1,0:T(1,128)}', space=vmem, size = 0x9000, scoped, tag = 'internal scratch']
  %s0 = inlined_call_operand.vmem [shape: bf16[2048,16], index: 0, kind: input, shape index: {}]
  %s1 = inlined_call_operand.vmem [shape: bf16[16,128], index: 1, kind: input, shape index: {}]
  %s2 = inlined_call_operand.vmem [shape: bf16[2048,128], index: 2, kind: output, shape index: {}]
  %s3 = sld [smem:[#allocation0]]
  $region41: #{discriminator_forward.7} parent=0
    _
  %s5 = ssub.s32 1, %s3
  %s6 = scalar_select 0, %s5, %s3
  loop: start=0, step=1, limit=6
  $region2: #{discriminator_forward.7} parent=0 // loop_pre_header
    _
  $region3: #{discriminator_forward.7} parent=0 // loop_header
    %s8 = sphi 0, %s12
    %p9 = scmp.ge.s32.totalorder %s8, 6
    %s15 = sphi 0, %s27
    %s16 = sphi 0, %s23
    %s17 = sphi 0, %s15
    %s18 = sphi 0, %s16
    %s19 = sphi 0, %s17
    %s20 = sphi 0, %s18
    %s32 = sphi 0, %s34
    %s35 = sphi 0, %s32
    %s36 = sphi 0, %s35
    %s52 = sphi 0, %s36
    %s58 = sphi 0, %s60
    %s61 = sphi 0, %s58
    %s62 = sphi 0, %s61
    %s78 = sphi 0, %s62
    %s84 = sphi 0, %s86
    %s87 = sphi 0, %s84
    %s88 = sphi 0, %s87
    %s104 = sphi 0, %s88
  $region4: #{discriminator_forward.7} parent=0 // loop_header_branch
    %11 = sbr.rel (%p9) target = $region8
  $region5: #{discriminator_forward.7} parent=0 // loop_body
    %s13 = ssub.s32 %s8, 1
    %s14 = ssub.s32 %s8, 2
    %s21 = sadd.s32 1, %s16
    %p22 = scmp.ge.s32.totalorder %s21, 1
    %s23 = scalar_select %p22, 0, %s21
    %s24 = sadd.s32 1, %s15
    %s25 = scalar_select %p22, %s24, %s15
    %p26 = scmp.ge.s32.totalorder %s25, 4
    %s27 = scalar_select %p26, 0, %s25
    %s28 = ssub.s32 %s15, %s27
    %s29 = ssub.s32 %s16, %s23
    %s30 = sor.u32 %s28, %s29
    %p31 = scmp.eq.s32.totalorder %s30, 0
    %s33 = sadd.s32 %s32, 1
    %s34 = scalar_select %p31, %s32, %s33
    %p37 = pneg %p31
    %p38 = scmp.eq.s32.totalorder %s8, 3
    %p39 = por %p37, %p38
    %p40 = scmp.ne.s32.totalorder %s32, %s35
    %p41 = scmp.eq.s32.totalorder %s8, 0
    %p42 = por %p40, %p41
    %p43 = scmp.ne.s32.totalorder %s32, %s35
    %p44 = scmp.eq.s32.totalorder %s13, 3
    %p45 = por %p43, %p44
    %p46 = scmp.ne.s32.totalorder %s35, %s36
    %p47 = scmp.eq.s32.totalorder %s13, 0
    %p48 = por %p46, %p47
    %p49 = scmp.ne.s32.totalorder %s35, %s36
    %p50 = scmp.eq.s32.totalorder %s14, 3
    %p51 = por %p49, %p50
    %p53 = scmp.ne.s32.totalorder %s36, %s52
    %p54 = scmp.eq.s32.totalorder %s14, 0
    %p55 = por %p53, %p54
    %s56 = ssub.s32 %s16, %s23
    %p57 = scmp.eq.s32.totalorder %s56, 0
    %s59 = sadd.s32 %s58, 1
    %s60 = scalar_select %p57, %s58, %s59
    %p63 = pneg %p57
    %p64 = scmp.eq.s32.totalorder %s8, 3
    %p65 = por %p63, %p64
    %p66 = scmp.ne.s32.totalorder %s58, %s61
    %p67 = scmp.eq.s32.totalorder %s8, 0
    %p68 = por %p66, %p67
    %p69 = scmp.ne.s32.totalorder %s58, %s61
    %p70 = scmp.eq.s32.totalorder %s13, 3
    %p71 = por %p69, %p70
    %p72 = scmp.ne.s32.totalorder %s61, %s62
    %p73 = scmp.eq.s32.totalorder %s13, 0
    %p74 = por %p72, %p73
    %p75 = scmp.ne.s32.totalorder %s61, %s62
    %p76 = scmp.eq.s32.totalorder %s14, 3
    %p77 = por %p75, %p76
    %p79 = scmp.ne.s32.totalorder %s62, %s78
    %p80 = scmp.eq.s32.totalorder %s14, 0
    %p81 = por %p79, %p80
    %s82 = ssub.s32 %s15, %s27
    %p83 = scmp.eq.s32.totalorder %s82, 0
    %s85 = sadd.s32 %s84, 1
    %s86 = scalar_select %p83, %s84, %s85
    %p89 = pneg %p83
    %p90 = scmp.eq.s32.totalorder %s8, 3
    %p91 = por %p89, %p90
    %p92 = scmp.ne.s32.totalorder %s84, %s87
    %p93 = scmp.eq.s32.totalorder %s8, 0
    %p94 = por %p92, %p93
    %p95 = scmp.ne.s32.totalorder %s84, %s87
    %p96 = scmp.eq.s32.totalorder %s13, 3
    %p97 = por %p95, %p96
    %p98 = scmp.ne.s32.totalorder %s87, %s88
    %p99 = scmp.eq.s32.totalorder %s13, 0
    %p100 = por %p98, %p99
    %p101 = scmp.ne.s32.totalorder %s87, %s88
    %p102 = scmp.eq.s32.totalorder %s14, 3
    %p103 = por %p101, %p102
    %p105 = scmp.ne.s32.totalorder %s88, %s104
    %p106 = scmp.eq.s32.totalorder %s14, 0
    %p107 = por %p105, %p106
    %p108 = scmp.le.s32.totalorder 1, %s8
    %p109 = scmp.lt.s32.totalorder %s8, 5
    %p110 = pnand %p108, %p109
    %p111 = pneg %p110
    // Predicated region
    $region9: #{discriminator_forward.7} parent=5 // pred_check
      _
    $region10: #{discriminator_forward.7} parent=5 // pred_check_branch
      %113 = sbr.rel (%p110) target = $region12
    $region11: #{discriminator_forward.7} parent=5 // pred_region
      %s114 = ssub.s32 %s8, 1
      // Predicated region
      $region13: #{discriminator_forward.7} parent=11 // pred_check
        %p115 = pneg %p74
      $region14: #{discriminator_forward.7} parent=11 // pred_check_branch
        %117 = sbr.rel (%p115) target = $region16
      $region15: #{discriminator_forward.7} parent=11 // pred_region
        %s118 = smul.u32 2, %s18
        %p119 = scmp.lt.s32.totalorder %s118, 1
        %s120 = scalar_select %p119, %s118, 1
        %s121 = smul.addr %s120, 4
        %s122 = scalar_lea.vmem %s1, %s121
        %s123 = smul.u32 2, %s18
      $region16: #{discriminator_forward.7} parent=11 // pred_fallthru
        _
    $region12: #{discriminator_forward.7} parent=5 // pred_fallthru
      _
    %p124 = scmp.lt.s32.totalorder %s8, 4
    // Predicated region
    $region17: #{discriminator_forward.7} parent=5 // pred_check
      %p125 = pneg %p124
    $region18: #{discriminator_forward.7} parent=5 // pred_check_branch
      %127 = sbr.rel (%p125) target = $region20
    $region19: #{discriminator_forward.7} parent=5 // pred_region
      // Predicated region
      $region21: #{discriminator_forward.7} parent=19 // pred_check
        %p128 = pneg %p42
      $region22: #{discriminator_forward.7} parent=19 // pred_check_branch
        %130 = sbr.rel (%p128) target = $region24
      $region23: #{discriminator_forward.7} parent=19 // pred_region
        %s131 = smul.u32 64, %s15
        %p132 = scmp.lt.s32.totalorder %s131, 255
        %s133 = scalar_select %p132, %s131, 255
        %p134 = scmp.lt.s32.totalorder %s16, 0
        %s135 = scalar_select %p134, %s16, 0
        %s136 = sadd.s32 %s135, %s133
        %s137 = smul.addr %s136, 4
        %s138 = scalar_lea.vmem %s0, %s137
        %s139 = smul.u32 64, %s15
      $region24: #{discriminator_forward.7} parent=19 // pred_fallthru
        _
    $region20: #{discriminator_forward.7} parent=5 // pred_fallthru
      _
    %p140 = scmp.le.s32.totalorder 1, %s8
    %p141 = scmp.lt.s32.totalorder %s8, 5
    %p142 = pnand %p140, %p141
    %p143 = pneg %p142
    // Predicated region
    $region25: #{discriminator_forward.7} parent=5 // pred_check
      _
    $region26: #{discriminator_forward.7} parent=5 // pred_check_branch
      %145 = sbr.rel (%p142) target = $region28
    $region27: #{discriminator_forward.7} parent=5 // pred_region
      %s146 = ssub.s32 %s8, 1
      %s147 = smul.u32 64, %s17
      %p148 = scmp.lt.s32.totalorder %s147, 255
      %s149 = scalar_select %p148, %s147, 255
      %p150 = scmp.lt.s32.totalorder %s18, 0
      %s151 = scalar_select %p150, %s18, 0
      %s152 = sadd.s32 %s151, %s149
      %s153 = smul.addr %s152, 4
      %s154 = scalar_lea.vmem %s0, %s153
      %p155 = pneg %p48
      %p156 = pneg %p45
      %s157 = smul.u32 2, %s18
      %p158 = scmp.lt.s32.totalorder %s157, 1
      %s159 = scalar_select %p158, %s157, 1
      %s160 = smul.addr %s159, 4
      %s161 = scalar_lea.vmem %s1, %s160
      %p162 = pneg %p74
      %p163 = pneg %p71
      %p164 = pneg %p100
      %p165 = pneg %p97
      %s166 = smul.u32 64, %s17
      %p167 = scmp.lt.s32.totalorder %s166, 255
      %s168 = scalar_select %p167, %s166, 255
      %s169 = smul.addr %s168, 4
      %s170 = scalar_lea.vmem %s2, %s169
      %s171 = smul.u32 64, %s17
      %p172 = scmp.lt.s32.totalorder %s171, 255
      %s173 = scalar_select %p172, %s171, 255
      %p174 = scmp.lt.s32.totalorder %s18, 0
      %s175 = scalar_select %p174, %s18, 0
      %s176 = sadd.s32 %s175, %s173
      %s177 = smul.addr %s176, 4
      %s178 = scalar_lea.vmem %s0, %s177
      %s179 = smul.u32 64, %s17
      %s180 = smul.u32 2, %s18
      %p181 = scmp.lt.s32.totalorder %s180, 1
      %s182 = scalar_select %p181, %s180, 1
      %s183 = smul.addr %s182, 4
      %s184 = scalar_lea.vmem %s1, %s183
      %s185 = smul.u32 2, %s18
      %s186 = smul.u32 64, %s17
      %p187 = scmp.lt.s32.totalorder %s186, 255
      %s188 = scalar_select %p187, %s186, 255
      %s189 = smul.addr %s188, 4
      %s190 = scalar_lea.vmem %s2, %s189
      %s191 = smul.u32 64, %s17
      %v193 = vld [vmem:[%s178] sm:$0xf]
      %v194 = vld [vmem:[%s178 + $0x4] sm:$0xf]
      %v195 = vld [vmem:[%s178 + $0x8] sm:$0xf]
      %v196 = vld [vmem:[%s178 + $0xc] sm:$0xf]
      %v197 = vld [vmem:[%s178 + $0x10] sm:$0xf]
      %v198 = vld [vmem:[%s178 + $0x14] sm:$0xf]
      %v199 = vld [vmem:[%s178 + $0x18] sm:$0xf]
      %v200 = vld [vmem:[%s178 + $0x1c] sm:$0xf]
      %v201 = vld [vmem:[%s178 + $0x20] sm:$0xf]
      %v202 = vld [vmem:[%s178 + $0x24] sm:$0xf]
      %v203 = vld [vmem:[%s178 + $0x28] sm:$0xf]
      %v204 = vld [vmem:[%s178 + $0x2c] sm:$0xf]
      %v205 = vld [vmem:[%s178 + $0x30] sm:$0xf]
      %v206 = vld [vmem:[%s178 + $0x34] sm:$0xf]
      %v207 = vld [vmem:[%s178 + $0x38] sm:$0xf]
      %v208 = vld [vmem:[%s178 + $0x3c] sm:$0xf]
      %v209 = vld [vmem:[%s178 + $0x40] sm:$0xf]
      %v210 = vld [vmem:[%s178 + $0x44] sm:$0xf]
      %v211 = vld [vmem:[%s178 + $0x48] sm:$0xf]
      %v212 = vld [vmem:[%s178 + $0x4c] sm:$0xf]
      %v213 = vld [vmem:[%s178 + $0x50] sm:$0xf]
      %v214 = vld [vmem:[%s178 + $0x54] sm:$0xf]
      %v215 = vld [vmem:[%s178 + $0x58] sm:$0xf]
      %v216 = vld [vmem:[%s178 + $0x5c] sm:$0xf]
      %v217 = vld [vmem:[%s178 + $0x60] sm:$0xf]
      %v218 = vld [vmem:[%s178 + $0x64] sm:$0xf]
      %v219 = vld [vmem:[%s178 + $0x68] sm:$0xf]
      %v220 = vld [vmem:[%s178 + $0x6c] sm:$0xf]
      %v221 = vld [vmem:[%s178 + $0x70] sm:$0xf]
      %v222 = vld [vmem:[%s178 + $0x74] sm:$0xf]
      %v223 = vld [vmem:[%s178 + $0x78] sm:$0xf]
      %v224 = vld [vmem:[%s178 + $0x7c] sm:$0xf]
      %v225 = vld [vmem:[%s178 + $0x80] sm:$0xf]
      %v226 = vld [vmem:[%s178 + $0x84] sm:$0xf]
      %v227 = vld [vmem:[%s178 + $0x88] sm:$0xf]
      %v228 = vld [vmem:[%s178 + $0x8c] sm:$0xf]
      %v229 = vld [vmem:[%s178 + $0x90] sm:$0xf]
      %v230 = vld [vmem:[%s178 + $0x94] sm:$0xf]
      %v231 = vld [vmem:[%s178 + $0x98] sm:$0xf]
      %v232 = vld [vmem:[%s178 + $0x9c] sm:$0xf]
      %v233 = vld [vmem:[%s178 + $0xa0] sm:$0xf]
      %v234 = vld [vmem:[%s178 + $0xa4] sm:$0xf]
      %v235 = vld [vmem:[%s178 + $0xa8] sm:$0xf]
      %v236 = vld [vmem:[%s178 + $0xac] sm:$0xf]
      %v237 = vld [vmem:[%s178 + $0xb0] sm:$0xf]
      %v238 = vld [vmem:[%s178 + $0xb4] sm:$0xf]
      %v239 = vld [vmem:[%s178 + $0xb8] sm:$0xf]
      %v240 = vld [vmem:[%s178 + $0xbc] sm:$0xf]
      %v241 = vld [vmem:[%s178 + $0xc0] sm:$0xf]
      %v242 = vld [vmem:[%s178 + $0xc4] sm:$0xf]
      %v243 = vld [vmem:[%s178 + $0xc8] sm:$0xf]
      %v244 = vld [vmem:[%s178 + $0xcc] sm:$0xf]
      %v245 = vld [vmem:[%s178 + $0xd0] sm:$0xf]
      %v246 = vld [vmem:[%s178 + $0xd4] sm:$0xf]
      %v247 = vld [vmem:[%s178 + $0xd8] sm:$0xf]
      %v248 = vld [vmem:[%s178 + $0xdc] sm:$0xf]
      %v249 = vld [vmem:[%s178 + $0xe0] sm:$0xf]
      %v250 = vld [vmem:[%s178 + $0xe4] sm:$0xf]
      %v251 = vld [vmem:[%s178 + $0xe8] sm:$0xf]
      %v252 = vld [vmem:[%s178 + $0xec] sm:$0xf]
      %v253 = vld [vmem:[%s178 + $0xf0] sm:$0xf]
      %v254 = vld [vmem:[%s178 + $0xf4] sm:$0xf]
      %v255 = vld [vmem:[%s178 + $0xf8] sm:$0xf]
      %v256 = vld [vmem:[%s178 + $0xfc] sm:$0xf]
      %v257 = vld [vmem:[%s184] sm:$0xf]
      %v258 = vld [vmem:[%s184 + $0x4] sm:$0xf]
      %v323 = vunpack.c.l.b16 %v193
      %v324 = vunpack.c.l.b16 %v194
      %v325 = vunpack.c.l.b16 %v195
      %v326 = vunpack.c.l.b16 %v196
      %v327 = vunpack.c.l.b16 %v197
      %v328 = vunpack.c.l.b16 %v198
      %v329 = vunpack.c.l.b16 %v199
      %v330 = vunpack.c.l.b16 %v200
      %v331 = vunpack.c.l.b16 %v201
      %v332 = vunpack.c.l.b16 %v202
      %v333 = vunpack.c.l.b16 %v203
      %v334 = vunpack.c.l.b16 %v204
      %v335 = vunpack.c.l.b16 %v205
      %v336 = vunpack.c.l.b16 %v206
      %v337 = vunpack.c.l.b16 %v207
      %v338 = vunpack.c.l.b16 %v208
      %v339 = vunpack.c.l.b16 %v209
      %v340 = vunpack.c.l.b16 %v210
      %v341 = vunpack.c.l.b16 %v211
      %v342 = vunpack.c.l.b16 %v212
      %v343 = vunpack.c.l.b16 %v213
      %v344 = vunpack.c.l.b16 %v214
      %v345 = vunpack.c.l.b16 %v215
      %v346 = vunpack.c.l.b16 %v216
      %v347 = vunpack.c.l.b16 %v217
      %v348 = vunpack.c.l.b16 %v218
      %v349 = vunpack.c.l.b16 %v219
      %v350 = vunpack.c.l.b16 %v220
      %v351 = vunpack.c.l.b16 %v221
      %v352 = vunpack.c.l.b16 %v222
      %v353 = vunpack.c.l.b16 %v223
      %v354 = vunpack.c.l.b16 %v224
      %v355 = vunpack.c.l.b16 %v225
      %v356 = vunpack.c.l.b16 %v226
      %v357 = vunpack.c.l.b16 %v227
      %v358 = vunpack.c.l.b16 %v228
      %v359 = vunpack.c.l.b16 %v229
      %v360 = vunpack.c.l.b16 %v230
      %v361 = vunpack.c.l.b16 %v231
      %v362 = vunpack.c.l.b16 %v232
      %v363 = vunpack.c.l.b16 %v233
      %v364 = vunpack.c.l.b16 %v234
      %v365 = vunpack.c.l.b16 %v235
      %v366 = vunpack.c.l.b16 %v236
      %v367 = vunpack.c.l.b16 %v237
      %v368 = vunpack.c.l.b16 %v238
      %v369 = vunpack.c.l.b16 %v239
      %v370 = vunpack.c.l.b16 %v240
      %v371 = vunpack.c.l.b16 %v241
      %v372 = vunpack.c.l.b16 %v242
      %v373 = vunpack.c.l.b16 %v243
      %v374 = vunpack.c.l.b16 %v244
      %v375 = vunpack.c.l.b16 %v245
      %v376 = vunpack.c.l.b16 %v246
      %v377 = vunpack.c.l.b16 %v247
      %v378 = vunpack.c.l.b16 %v248
      %v379 = vunpack.c.l.b16 %v249
      %v380 = vunpack.c.l.b16 %v250
      %v381 = vunpack.c.l.b16 %v251
      %v382 = vunpack.c.l.b16 %v252
      %v383 = vunpack.c.l.b16 %v253
      %v384 = vunpack.c.l.b16 %v254
      %v385 = vunpack.c.l.b16 %v255
      %v386 = vunpack.c.l.b16 %v256
      %v387 = vpack.c.b16 %v324, %v323
      %v388 = vpack.c.b16 %v326, %v325
      %v389 = vpack.c.b16 %v328, %v327
      %v390 = vpack.c.b16 %v330, %v329
      %v391 = vpack.c.b16 %v332, %v331
      %v392 = vpack.c.b16 %v334, %v333
      %v393 = vpack.c.b16 %v336, %v335
      %v394 = vpack.c.b16 %v338, %v337
      %v395 = vpack.c.b16 %v340, %v339
      %v396 = vpack.c.b16 %v342, %v341
      %v397 = vpack.c.b16 %v344, %v343
      %v398 = vpack.c.b16 %v346, %v345
      %v399 = vpack.c.b16 %v348, %v347
      %v400 = vpack.c.b16 %v350, %v349
      %v401 = vpack.c.b16 %v352, %v351
      %v402 = vpack.c.b16 %v354, %v353
      %v403 = vpack.c.b16 %v356, %v355
      %v404 = vpack.c.b16 %v358, %v357
      %v405 = vpack.c.b16 %v360, %v359
      %v406 = vpack.c.b16 %v362, %v361
      %v407 = vpack.c.b16 %v364, %v363
      %v408 = vpack.c.b16 %v366, %v365
      %v409 = vpack.c.b16 %v368, %v367
      %v410 = vpack.c.b16 %v370, %v369
      %v411 = vpack.c.b16 %v372, %v371
      %v412 = vpack.c.b16 %v374, %v373
      %v413 = vpack.c.b16 %v376, %v375
      %v414 = vpack.c.b16 %v378, %v377
      %v415 = vpack.c.b16 %v380, %v379
      %v416 = vpack.c.b16 %v382, %v381
      %v417 = vpack.c.b16 %v384, %v383
      %v418 = vpack.c.b16 %v386, %v385
      %v421 = vunpack.c.l.b16 %v257
      %v422 = vunpack.c.l.b16 %v258
      %v423 = vpack.c.b16 %v422, %v421
      %vm425 = vcmask 130048
      %v427 = vsel %vm425, %v387, 0
      %v430 = vsel %vm425, %v388, 0
      %v433 = vsel %vm425, %v389, 0
      %v436 = vsel %vm425, %v390, 0
      %v439 = vsel %vm425, %v391, 0
      %v442 = vsel %vm425, %v392, 0
      %v445 = vsel %vm425, %v393, 0
      %v448 = vsel %vm425, %v394, 0
      %v451 = vsel %vm425, %v395, 0
      %v454 = vsel %vm425, %v396, 0
      %v457 = vsel %vm425, %v397, 0
      %v460 = vsel %vm425, %v398, 0
      %v463 = vsel %vm425, %v399, 0
      %v466 = vsel %vm425, %v400, 0
      %v469 = vsel %vm425, %v401, 0
      %v472 = vsel %vm425, %v402, 0
      %v475 = vsel %vm425, %v403, 0
      %v478 = vsel %vm425, %v404, 0
      %v481 = vsel %vm425, %v405, 0
      %v484 = vsel %vm425, %v406, 0
      %v487 = vsel %vm425, %v407, 0
      %v490 = vsel %vm425, %v408, 0
      %v493 = vsel %vm425, %v409, 0
      %v496 = vsel %vm425, %v410, 0
      %v499 = vsel %vm425, %v411, 0
      %v502 = vsel %vm425, %v412, 0
      %v505 = vsel %vm425, %v413, 0
      %v508 = vsel %vm425, %v414, 0
      %v511 = vsel %vm425, %v415, 0
      %v514 = vsel %vm425, %v416, 0
      %v517 = vsel %vm425, %v417, 0
      %v520 = vsel %vm425, %v418, 0
      %522 = vmatpush.bf16.msra.mxu0 0
      %523 = vmatpush.bf16.msra.mxu0 0
      %524 = vmatpush.bf16.msra.mxu0 0
      %525 = vmatpush.bf16.msra.mxu0 0
      %526 = vmatpush.bf16.msra.mxu0 0
      %527 = vmatpush.bf16.msra.mxu0 0
      %528 = vmatpush.bf16.msra.mxu0 0
      %529 = vmatpush.bf16.msra.mxu0 %v423
      %530 = vmatmul.bf16.gmra.mxu0 %v427
      %v531 = vpop.f32.mrf.mxu0
      %v532 = vadd.f32 0.0, %v531
      %v533 = vpop.f32.mrf.mxu0
      %v534 = vadd.f32 0.0, %v533
      %535 = vmatmul.bf16.gmra.mxu0 %v430
      %v536 = vpop.f32.mrf.mxu0
      %v537 = vadd.f32 0.0, %v536
      %v538 = vpop.f32.mrf.mxu0
      %v539 = vadd.f32 0.0, %v538
      %540 = vmatmul.bf16.gmra.mxu0 %v433
      %v541 = vpop.f32.mrf.mxu0
      %v542 = vadd.f32 0.0, %v541
      %v543 = vpop.f32.mrf.mxu0
      %v544 = vadd.f32 0.0, %v543
      %545 = vmatmul.bf16.gmra.mxu0 %v436
      %v546 = vpop.f32.mrf.mxu0
      %v547 = vadd.f32 0.0, %v546
      %v548 = vpop.f32.mrf.mxu0
      %v549 = vadd.f32 0.0, %v548
      %550 = vmatmul.bf16.gmra.mxu0 %v439
      %v551 = vpop.f32.mrf.mxu0
      %v552 = vadd.f32 0.0, %v551
      %v553 = vpop.f32.mrf.mxu0
      %v554 = vadd.f32 0.0, %v553
      %555 = vmatmul.bf16.gmra.mxu0 %v442
      %v556 = vpop.f32.mrf.mxu0
      %v557 = vadd.f32 0.0, %v556
      %v558 = vpop.f32.mrf.mxu0
      %v559 = vadd.f32 0.0, %v558
      %560 = vmatmul.bf16.gmra.mxu0 %v445
      %v561 = vpop.f32.mrf.mxu0
      %v562 = vadd.f32 0.0, %v561
      %v563 = vpop.f32.mrf.mxu0
      %v564 = vadd.f32 0.0, %v563
      %565 = vmatmul.bf16.gmra.mxu0 %v448
      %v566 = vpop.f32.mrf.mxu0
      %v567 = vadd.f32 0.0, %v566
      %v568 = vpop.f32.mrf.mxu0
      %v569 = vadd.f32 0.0, %v568
      %570 = vmatmul.bf16.gmra.mxu0 %v451
      %v571 = vpop.f32.mrf.mxu0
      %v572 = vadd.f32 0.0, %v571
      %v573 = vpop.f32.mrf.mxu0
      %v574 = vadd.f32 0.0, %v573
      %575 = vmatmul.bf16.gmra.mxu0 %v454
      %v576 = vpop.f32.mrf.mxu0
      %v577 = vadd.f32 0.0, %v576
      %v578 = vpop.f32.mrf.mxu0
      %v579 = vadd.f32 0.0, %v578
      %580 = vmatmul.bf16.gmra.mxu0 %v457
      %v581 = vpop.f32.mrf.mxu0
      %v582 = vadd.f32 0.0, %v581
      %v583 = vpop.f32.mrf.mxu0
      %v584 = vadd.f32 0.0, %v583
      %585 = vmatmul.bf16.gmra.mxu0 %v460
      %v586 = vpop.f32.mrf.mxu0
      %v587 = vadd.f32 0.0, %v586
      %v588 = vpop.f32.mrf.mxu0
      %v589 = vadd.f32 0.0, %v588
      %590 = vmatmul.bf16.gmra.mxu0 %v463
      %v591 = vpop.f32.mrf.mxu0
      %v592 = vadd.f32 0.0, %v591
      %v593 = vpop.f32.mrf.mxu0
      %v594 = vadd.f32 0.0, %v593
      %595 = vmatmul.bf16.gmra.mxu0 %v466
      %v596 = vpop.f32.mrf.mxu0
      %v597 = vadd.f32 0.0, %v596
      %v598 = vpop.f32.mrf.mxu0
      %v599 = vadd.f32 0.0, %v598
      %600 = vmatmul.bf16.gmra.mxu0 %v469
      %v601 = vpop.f32.mrf.mxu0
      %v602 = vadd.f32 0.0, %v601
      %v603 = vpop.f32.mrf.mxu0
      %v604 = vadd.f32 0.0, %v603
      %605 = vmatmul.bf16.gmra.mxu0 %v472
      %v606 = vpop.f32.mrf.mxu0
      %v607 = vadd.f32 0.0, %v606
      %v608 = vpop.f32.mrf.mxu0
      %v609 = vadd.f32 0.0, %v608
      %610 = vmatmul.bf16.gmra.mxu0 %v475
      %v611 = vpop.f32.mrf.mxu0
      %v612 = vadd.f32 0.0, %v611
      %v613 = vpop.f32.mrf.mxu0
      %v614 = vadd.f32 0.0, %v613
      %615 = vmatmul.bf16.gmra.mxu0 %v478
      %v616 = vpop.f32.mrf.mxu0
      %v617 = vadd.f32 0.0, %v616
      %v618 = vpop.f32.mrf.mxu0
      %v619 = vadd.f32 0.0, %v618
      %620 = vmatmul.bf16.gmra.mxu0 %v481
      %v621 = vpop.f32.mrf.mxu0
      %v622 = vadd.f32 0.0, %v621
      %v623 = vpop.f32.mrf.mxu0
      %v624 = vadd.f32 0.0, %v623
      %625 = vmatmul.bf16.gmra.mxu0 %v484
      %v626 = vpop.f32.mrf.mxu0
      %v627 = vadd.f32 0.0, %v626
      %v628 = vpop.f32.mrf.mxu0
      %v629 = vadd.f32 0.0, %v628
      %630 = vmatmul.bf16.gmra.mxu0 %v487
      %v631 = vpop.f32.mrf.mxu0
      %v632 = vadd.f32 0.0, %v631
      %v633 = vpop.f32.mrf.mxu0
      %v634 = vadd.f32 0.0, %v633
      %635 = vmatmul.bf16.gmra.mxu0 %v490
      %v636 = vpop.f32.mrf.mxu0
      %v637 = vadd.f32 0.0, %v636
      %v638 = vpop.f32.mrf.mxu0
      %v639 = vadd.f32 0.0, %v638
      %640 = vmatmul.bf16.gmra.mxu0 %v493
      %v641 = vpop.f32.mrf.mxu0
      %v642 = vadd.f32 0.0, %v641
      %v643 = vpop.f32.mrf.mxu0
      %v644 = vadd.f32 0.0, %v643
      %645 = vmatmul.bf16.gmra.mxu0 %v496
      %v646 = vpop.f32.mrf.mxu0
      %v647 = vadd.f32 0.0, %v646
      %v648 = vpop.f32.mrf.mxu0
      %v649 = vadd.f32 0.0, %v648
      %650 = vmatmul.bf16.gmra.mxu0 %v499
      %v651 = vpop.f32.mrf.mxu0
      %v652 = vadd.f32 0.0, %v651
      %v653 = vpop.f32.mrf.mxu0
      %v654 = vadd.f32 0.0, %v653
      %655 = vmatmul.bf16.gmra.mxu0 %v502
      %v656 = vpop.f32.mrf.mxu0
      %v657 = vadd.f32 0.0, %v656
      %v658 = vpop.f32.mrf.mxu0
      %v659 = vadd.f32 0.0, %v658
      %660 = vmatmul.bf16.gmra.mxu0 %v505
      %v661 = vpop.f32.mrf.mxu0
      %v662 = vadd.f32 0.0, %v661
      %v663 = vpop.f32.mrf.mxu0
      %v664 = vadd.f32 0.0, %v663
      %665 = vmatmul.bf16.gmra.mxu0 %v508
      %v666 = vpop.f32.mrf.mxu0
      %v667 = vadd.f32 0.0, %v666
      %v668 = vpop.f32.mrf.mxu0
      %v669 = vadd.f32 0.0, %v668
      %670 = vmatmul.bf16.gmra.mxu0 %v511
      %v671 = vpop.f32.mrf.mxu0
      %v672 = vadd.f32 0.0, %v671
      %v673 = vpop.f32.mrf.mxu0
      %v674 = vadd.f32 0.0, %v673
      %675 = vmatmul.bf16.gmra.mxu0 %v514
      %v676 = vpop.f32.mrf.mxu0
      %v677 = vadd.f32 0.0, %v676
      %v678 = vpop.f32.mrf.mxu0
      %v679 = vadd.f32 0.0, %v678
      %680 = vmatmul.bf16.gmra.mxu0 %v517
      %v681 = vpop.f32.mrf.mxu0
      %v682 = vadd.f32 0.0, %v681
      %v683 = vpop.f32.mrf.mxu0
      %v684 = vadd.f32 0.0, %v683
      %685 = vmatmul.bf16.gmra.mxu0 %v520
      %v686 = vpop.f32.mrf.mxu0
      %v687 = vadd.f32 0.0, %v686
      %v688 = vpop.f32.mrf.mxu0
      %v689 = vadd.f32 0.0, %v688
      %690 = vdwg.mxu0
      %v691 = vmul.f32 %v532, 0.2
      %v692 = vmul.f32 %v534, 0.2
      %v693 = vmul.f32 %v537, 0.2
      %v694 = vmul.f32 %v539, 0.2
      %v695 = vmul.f32 %v542, 0.2
      %v696 = vmul.f32 %v544, 0.2
      %v697 = vmul.f32 %v547, 0.2
      %v698 = vmul.f32 %v549, 0.2
      %v699 = vmul.f32 %v552, 0.2
      %v700 = vmul.f32 %v554, 0.2
      %v701 = vmul.f32 %v557, 0.2
      %v702 = vmul.f32 %v559, 0.2
      %v703 = vmul.f32 %v562, 0.2
      %v704 = vmul.f32 %v564, 0.2
      %v705 = vmul.f32 %v567, 0.2
      %v706 = vmul.f32 %v569, 0.2
      %v707 = vmul.f32 %v572, 0.2
      %v708 = vmul.f32 %v574, 0.2
      %v709 = vmul.f32 %v577, 0.2
      %v710 = vmul.f32 %v579, 0.2
      %v711 = vmul.f32 %v582, 0.2
      %v712 = vmul.f32 %v584, 0.2
      %v713 = vmul.f32 %v587, 0.2
      %v714 = vmul.f32 %v589, 0.2
      %v715 = vmul.f32 %v592, 0.2
      %v716 = vmul.f32 %v594, 0.2
      %v717 = vmul.f32 %v597, 0.2
      %v718 = vmul.f32 %v599, 0.2
      %v719 = vmul.f32 %v602, 0.2
      %v720 = vmul.f32 %v604, 0.2
      %v721 = vmul.f32 %v607, 0.2
      %v722 = vmul.f32 %v609, 0.2
      %v723 = vmul.f32 %v612, 0.2
      %v724 = vmul.f32 %v614, 0.2
      %v725 = vmul.f32 %v617, 0.2
      %v726 = vmul.f32 %v619, 0.2
      %v727 = vmul.f32 %v622, 0.2
      %v728 = vmul.f32 %v624, 0.2
      %v729 = vmul.f32 %v627, 0.2
      %v730 = vmul.f32 %v629, 0.2
      %v731 = vmul.f32 %v632, 0.2
      %v732 = vmul.f32 %v634, 0.2
      %v733 = vmul.f32 %v637, 0.2
      %v734 = vmul.f32 %v639, 0.2
      %v735 = vmul.f32 %v642, 0.2
      %v736 = vmul.f32 %v644, 0.2
      %v737 = vmul.f32 %v647, 0.2
      %v738 = vmul.f32 %v649, 0.2
      %v739 = vmul.f32 %v652, 0.2
      %v740 = vmul.f32 %v654, 0.2
      %v741 = vmul.f32 %v657, 0.2
      %v742 = vmul.f32 %v659, 0.2
      %v743 = vmul.f32 %v662, 0.2
      %v744 = vmul.f32 %v664, 0.2
      %v745 = vmul.f32 %v667, 0.2
      %v746 = vmul.f32 %v669, 0.2
      %v747 = vmul.f32 %v672, 0.2
      %v748 = vmul.f32 %v674, 0.2
      %v749 = vmul.f32 %v677, 0.2
      %v750 = vmul.f32 %v679, 0.2
      %v751 = vmul.f32 %v682, 0.2
      %v752 = vmul.f32 %v684, 0.2
      %v753 = vmul.f32 %v687, 0.2
      %v754 = vmul.f32 %v689, 0.2
      %v755 = vmax.f32 %v532, %v691
      %v756 = vmax.f32 %v534, %v692
      %v757 = vmax.f32 %v537, %v693
      %v758 = vmax.f32 %v539, %v694
      %v759 = vmax.f32 %v542, %v695
      %v760 = vmax.f32 %v544, %v696
      %v761 = vmax.f32 %v547, %v697
      %v762 = vmax.f32 %v549, %v698
      %v763 = vmax.f32 %v552, %v699
      %v764 = vmax.f32 %v554, %v700
      %v765 = vmax.f32 %v557, %v701
      %v766 = vmax.f32 %v559, %v702
      %v767 = vmax.f32 %v562, %v703
      %v768 = vmax.f32 %v564, %v704
      %v769 = vmax.f32 %v567, %v705
      %v770 = vmax.f32 %v569, %v706
      %v771 = vmax.f32 %v572, %v707
      %v772 = vmax.f32 %v574, %v708
      %v773 = vmax.f32 %v577, %v709
      %v774 = vmax.f32 %v579, %v710
      %v775 = vmax.f32 %v582, %v711
      %v776 = vmax.f32 %v584, %v712
      %v777 = vmax.f32 %v587, %v713
      %v778 = vmax.f32 %v589, %v714
      %v779 = vmax.f32 %v592, %v715
      %v780 = vmax.f32 %v594, %v716
      %v781 = vmax.f32 %v597, %v717
      %v782 = vmax.f32 %v599, %v718
      %v783 = vmax.f32 %v602, %v719
      %v784 = vmax.f32 %v604, %v720
      %v785 = vmax.f32 %v607, %v721
      %v786 = vmax.f32 %v609, %v722
      %v787 = vmax.f32 %v612, %v723
      %v788 = vmax.f32 %v614, %v724
      %v789 = vmax.f32 %v617, %v725
      %v790 = vmax.f32 %v619, %v726
      %v791 = vmax.f32 %v622, %v727
      %v792 = vmax.f32 %v624, %v728
      %v793 = vmax.f32 %v627, %v729
      %v794 = vmax.f32 %v629, %v730
      %v795 = vmax.f32 %v632, %v731
      %v796 = vmax.f32 %v634, %v732
      %v797 = vmax.f32 %v637, %v733
      %v798 = vmax.f32 %v639, %v734
      %v799 = vmax.f32 %v642, %v735
      %v800 = vmax.f32 %v644, %v736
      %v801 = vmax.f32 %v647, %v737
      %v802 = vmax.f32 %v649, %v738
      %v803 = vmax.f32 %v652, %v739
      %v804 = vmax.f32 %v654, %v740
      %v805 = vmax.f32 %v657, %v741
      %v806 = vmax.f32 %v659, %v742
      %v807 = vmax.f32 %v662, %v743
      %v808 = vmax.f32 %v664, %v744
      %v809 = vmax.f32 %v667, %v745
      %v810 = vmax.f32 %v669, %v746
      %v811 = vmax.f32 %v672, %v747
      %v812 = vmax.f32 %v674, %v748
      %v813 = vmax.f32 %v677, %v749
      %v814 = vmax.f32 %v679, %v750
      %v815 = vmax.f32 %v682, %v751
      %v816 = vmax.f32 %v684, %v752
      %v817 = vmax.f32 %v687, %v753
      %v818 = vmax.f32 %v689, %v754
      %v819 = vpack.c.bf16 %v755, %v755
      %v820 = vpack.c.bf16 %v756, %v756
      %v821 = vpack.c.bf16 %v757, %v757
      %v822 = vpack.c.bf16 %v758, %v758
      %v823 = vpack.c.bf16 %v759, %v759
      %v824 = vpack.c.bf16 %v760, %v760
      %v825 = vpack.c.bf16 %v761, %v761
      %v826 = vpack.c.bf16 %v762, %v762
      %v827 = vpack.c.bf16 %v763, %v763
      %v828 = vpack.c.bf16 %v764, %v764
      %v829 = vpack.c.bf16 %v765, %v765
      %v830 = vpack.c.bf16 %v766, %v766
      %v831 = vpack.c.bf16 %v767, %v767
      %v832 = vpack.c.bf16 %v768, %v768
      %v833 = vpack.c.bf16 %v769, %v769
      %v834 = vpack.c.bf16 %v770, %v770
      %v835 = vpack.c.bf16 %v771, %v771
      %v836 = vpack.c.bf16 %v772, %v772
      %v837 = vpack.c.bf16 %v773, %v773
      %v838 = vpack.c.bf16 %v774, %v774
      %v839 = vpack.c.bf16 %v775, %v775
      %v840 = vpack.c.bf16 %v776, %v776
      %v841 = vpack.c.bf16 %v777, %v777
      %v842 = vpack.c.bf16 %v778, %v778
      %v843 = vpack.c.bf16 %v779, %v779
      %v844 = vpack.c.bf16 %v780, %v780
      %v845 = vpack.c.bf16 %v781, %v781
      %v846 = vpack.c.bf16 %v782, %v782
      %v847 = vpack.c.bf16 %v783, %v783
      %v848 = vpack.c.bf16 %v784, %v784
      %v849 = vpack.c.bf16 %v785, %v785
      %v850 = vpack.c.bf16 %v786, %v786
      %v851 = vpack.c.bf16 %v787, %v787
      %v852 = vpack.c.bf16 %v788, %v788
      %v853 = vpack.c.bf16 %v789, %v789
      %v854 = vpack.c.bf16 %v790, %v790
      %v855 = vpack.c.bf16 %v791, %v791
      %v856 = vpack.c.bf16 %v792, %v792
      %v857 = vpack.c.bf16 %v793, %v793
      %v858 = vpack.c.bf16 %v794, %v794
      %v859 = vpack.c.bf16 %v795, %v795
      %v860 = vpack.c.bf16 %v796, %v796
      %v861 = vpack.c.bf16 %v797, %v797
      %v862 = vpack.c.bf16 %v798, %v798
      %v863 = vpack.c.bf16 %v799, %v799
      %v864 = vpack.c.bf16 %v800, %v800
      %v865 = vpack.c.bf16 %v801, %v801
      %v866 = vpack.c.bf16 %v802, %v802
      %v867 = vpack.c.bf16 %v803, %v803
      %v868 = vpack.c.bf16 %v804, %v804
      %v869 = vpack.c.bf16 %v805, %v805
      %v870 = vpack.c.bf16 %v806, %v806
      %v871 = vpack.c.bf16 %v807, %v807
      %v872 = vpack.c.bf16 %v808, %v808
      %v873 = vpack.c.bf16 %v809, %v809
      %v874 = vpack.c.bf16 %v810, %v810
      %v875 = vpack.c.bf16 %v811, %v811
      %v876 = vpack.c.bf16 %v812, %v812
      %v877 = vpack.c.bf16 %v813, %v813
      %v878 = vpack.c.bf16 %v814, %v814
      %v879 = vpack.c.bf16 %v815, %v815
      %v880 = vpack.c.bf16 %v816, %v816
      %v881 = vpack.c.bf16 %v817, %v817
      %v882 = vpack.c.bf16 %v818, %v818
      %883 = vst [vmem:[%s190] sm:$0xf] %v819
      %884 = vst [vmem:[%s190 + $0x4] sm:$0xf] %v820
      %885 = vst [vmem:[%s190 + $0x8] sm:$0xf] %v821
      %886 = vst [vmem:[%s190 + $0xc] sm:$0xf] %v822
      %887 = vst [vmem:[%s190 + $0x10] sm:$0xf] %v823
      %888 = vst [vmem:[%s190 + $0x14] sm:$0xf] %v824
      %889 = vst [vmem:[%s190 + $0x18] sm:$0xf] %v825
      %890 = vst [vmem:[%s190 + $0x1c] sm:$0xf] %v826
      %891 = vst [vmem:[%s190 + $0x20] sm:$0xf] %v827
      %892 = vst [vmem:[%s190 + $0x24] sm:$0xf] %v828
      %893 = vst [vmem:[%s190 + $0x28] sm:$0xf] %v829
      %894 = vst [vmem:[%s190 + $0x2c] sm:$0xf] %v830
      %895 = vst [vmem:[%s190 + $0x30] sm:$0xf] %v831
      %896 = vst [vmem:[%s190 + $0x34] sm:$0xf] %v832
      %897 = vst [vmem:[%s190 + $0x38] sm:$0xf] %v833
      %898 = vst [vmem:[%s190 + $0x3c] sm:$0xf] %v834
      %899 = vst [vmem:[%s190 + $0x40] sm:$0xf] %v835
      %900 = vst [vmem:[%s190 + $0x44] sm:$0xf] %v836
      %901 = vst [vmem:[%s190 + $0x48] sm:$0xf] %v837
      %902 = vst [vmem:[%s190 + $0x4c] sm:$0xf] %v838
      %903 = vst [vmem:[%s190 + $0x50] sm:$0xf] %v839
      %904 = vst [vmem:[%s190 + $0x54] sm:$0xf] %v840
      %905 = vst [vmem:[%s190 + $0x58] sm:$0xf] %v841
      %906 = vst [vmem:[%s190 + $0x5c] sm:$0xf] %v842
      %907 = vst [vmem:[%s190 + $0x60] sm:$0xf] %v843
      %908 = vst [vmem:[%s190 + $0x64] sm:$0xf] %v844
      %909 = vst [vmem:[%s190 + $0x68] sm:$0xf] %v845
      %910 = vst [vmem:[%s190 + $0x6c] sm:$0xf] %v846
      %911 = vst [vmem:[%s190 + $0x70] sm:$0xf] %v847
      %912 = vst [vmem:[%s190 + $0x74] sm:$0xf] %v848
      %913 = vst [vmem:[%s190 + $0x78] sm:$0xf] %v849
      %914 = vst [vmem:[%s190 + $0x7c] sm:$0xf] %v850
      %915 = vst [vmem:[%s190 + $0x80] sm:$0xf] %v851
      %916 = vst [vmem:[%s190 + $0x84] sm:$0xf] %v852
      %917 = vst [vmem:[%s190 + $0x88] sm:$0xf] %v853
      %918 = vst [vmem:[%s190 + $0x8c] sm:$0xf] %v854
      %919 = vst [vmem:[%s190 + $0x90] sm:$0xf] %v855
      %920 = vst [vmem:[%s190 + $0x94] sm:$0xf] %v856
      %921 = vst [vmem:[%s190 + $0x98] sm:$0xf] %v857
      %922 = vst [vmem:[%s190 + $0x9c] sm:$0xf] %v858
      %923 = vst [vmem:[%s190 + $0xa0] sm:$0xf] %v859
      %924 = vst [vmem:[%s190 + $0xa4] sm:$0xf] %v860
      %925 = vst [vmem:[%s190 + $0xa8] sm:$0xf] %v861
      %926 = vst [vmem:[%s190 + $0xac] sm:$0xf] %v862
      %927 = vst [vmem:[%s190 + $0xb0] sm:$0xf] %v863
      %928 = vst [vmem:[%s190 + $0xb4] sm:$0xf] %v864
      %929 = vst [vmem:[%s190 + $0xb8] sm:$0xf] %v865
      %930 = vst [vmem:[%s190 + $0xbc] sm:$0xf] %v866
      %931 = vst [vmem:[%s190 + $0xc0] sm:$0xf] %v867
      %932 = vst [vmem:[%s190 + $0xc4] sm:$0xf] %v868
      %933 = vst [vmem:[%s190 + $0xc8] sm:$0xf] %v869
      %934 = vst [vmem:[%s190 + $0xcc] sm:$0xf] %v870
      %935 = vst [vmem:[%s190 + $0xd0] sm:$0xf] %v871
      %936 = vst [vmem:[%s190 + $0xd4] sm:$0xf] %v872
      %937 = vst [vmem:[%s190 + $0xd8] sm:$0xf] %v873
      %938 = vst [vmem:[%s190 + $0xdc] sm:$0xf] %v874
      %939 = vst [vmem:[%s190 + $0xe0] sm:$0xf] %v875
      %940 = vst [vmem:[%s190 + $0xe4] sm:$0xf] %v876
      %941 = vst [vmem:[%s190 + $0xe8] sm:$0xf] %v877
      %942 = vst [vmem:[%s190 + $0xec] sm:$0xf] %v878
      %943 = vst [vmem:[%s190 + $0xf0] sm:$0xf] %v879
      %944 = vst [vmem:[%s190 + $0xf4] sm:$0xf] %v880
      %945 = vst [vmem:[%s190 + $0xf8] sm:$0xf] %v881
      %946 = vst [vmem:[%s190 + $0xfc] sm:$0xf] %v882
      %s947 = smul.u32 64, %s17
      %p948 = scmp.lt.s32.totalorder %s947, 255
      %s949 = scalar_select %p948, %s947, 255
      %s950 = smul.addr %s949, 4
      %s951 = scalar_lea.vmem %s2, %s950
      // Predicated region
      $region29: #{discriminator_forward.7} parent=27 // pred_check
        %p952 = pneg %p97
      $region30: #{discriminator_forward.7} parent=27 // pred_check_branch
        %954 = sbr.rel (%p952) target = $region32
      $region31: #{discriminator_forward.7} parent=27 // pred_region
        %s955 = smul.u32 64, %s17
      $region32: #{discriminator_forward.7} parent=27 // pred_fallthru
        _
    $region28: #{discriminator_forward.7} parent=5 // pred_fallthru
      _
    %p956 = scmp.le.s32.totalorder 2, %s8
    // Predicated region
    $region33: #{discriminator_forward.7} parent=5 // pred_check
      %p957 = pneg %p956
    $region34: #{discriminator_forward.7} parent=5 // pred_check_branch
      %959 = sbr.rel (%p957) target = $region36
    $region35: #{discriminator_forward.7} parent=5 // pred_region
      %s960 = ssub.s32 %s8, 2
      // Predicated region
      $region37: #{discriminator_forward.7} parent=35 // pred_check
        %p961 = pneg %p103
      $region38: #{discriminator_forward.7} parent=35 // pred_check_branch
        %963 = sbr.rel (%p961) target = $region40
      $region39: #{discriminator_forward.7} parent=35 // pred_region
        %s964 = smul.u32 64, %s19
        %p965 = scmp.lt.s32.totalorder %s964, 255
        %s966 = scalar_select %p965, %s964, 255
        %s967 = smul.addr %s966, 4
        %s968 = scalar_lea.vmem %s2, %s967
      $region40: #{discriminator_forward.7} parent=35 // pred_fallthru
        _
    $region36: #{discriminator_forward.7} parent=5 // pred_fallthru
      _
  $region6: #{discriminator_forward.7} parent=0 // loop_footer
    %s12 = sadd.s32 1, %s8
  $region7: #{discriminator_forward.7} parent=0 // loop_footer_branch
    %7 = sbr.rel target = $region3
  $region8: #{discriminator_forward.7} parent=0 // loop_exit
    _

// kernel: discriminator_forward.8
$region0: #{discriminator_forward.8}
  #allocation0 [shape = 'u32[]', space=smem, size = 0x4, offset = 0x4, fixed_abs, tag = 'smem constant byte address 0x4 - core index']
  #allocation1 [shape = 'u32[72,128]{1,0:T(1,128)}', space=vmem, size = 0x9000, scoped, tag = 'internal scratch']
  %s0 = inlined_call_operand.vmem [shape: bf16[512,128], index: 0, kind: input, shape index: {}]
  %s1 = inlined_call_operand.vmem [shape: bf16[128,128], index: 1, kind: input, shape index: {}]
  %s2 = inlined_call_operand.vmem [shape: f32[512,128], index: 2, kind: output, shape index: {0}]
  %s3 = inlined_call_operand.vmem [shape: f32[4,2,128], index: 3, kind: output, shape index: {1}]
  %4 = xla_tuple %s2, %s3
  %s5 = sld [smem:[#allocation0]]
  $region49: #{discriminator_forward.8} parent=0
    _
  %s7 = ssub.s32 1, %s5
  %s8 = scalar_select 0, %s7, %s5
  loop: start=0, step=1, limit=6
  $region2: #{discriminator_forward.8} parent=0 // loop_pre_header
    _
  $region3: #{discriminator_forward.8} parent=0 // loop_header
    %s10 = sphi 0, %s14
    %p11 = scmp.ge.s32.totalorder %s10, 6
    %s17 = sphi 0, %s29
    %s18 = sphi 0, %s25
    %s19 = sphi 0, %s17
    %s20 = sphi 0, %s18
    %s21 = sphi 0, %s19
    %s22 = sphi 0, %s20
    %s34 = sphi 0, %s36
    %s37 = sphi 0, %s34
    %s38 = sphi 0, %s37
    %s54 = sphi 0, %s38
    %s60 = sphi 0, %s62
    %s63 = sphi 0, %s60
    %s64 = sphi 0, %s63
    %s80 = sphi 0, %s64
    %s86 = sphi 0, %s88
    %s89 = sphi 0, %s86
    %s90 = sphi 0, %s89
    %s106 = sphi 0, %s90
    %s112 = sphi 0, %s114
    %s115 = sphi 0, %s112
    %s116 = sphi 0, %s115
    %s132 = sphi 0, %s116
  $region4: #{discriminator_forward.8} parent=0 // loop_header_branch
    %13 = sbr.rel (%p11) target = $region8
  $region5: #{discriminator_forward.8} parent=0 // loop_body
    %s15 = ssub.s32 %s10, 1
    %s16 = ssub.s32 %s10, 2
    %s23 = sadd.s32 1, %s18
    %p24 = scmp.ge.s32.totalorder %s23, 1
    %s25 = scalar_select %p24, 0, %s23
    %s26 = sadd.s32 1, %s17
    %s27 = scalar_select %p24, %s26, %s17
    %p28 = scmp.ge.s32.totalorder %s27, 4
    %s29 = scalar_select %p28, 0, %s27
    %s30 = ssub.s32 %s17, %s29
    %s31 = ssub.s32 %s18, %s25
    %s32 = sor.u32 %s30, %s31
    %p33 = scmp.eq.s32.totalorder %s32, 0
    %s35 = sadd.s32 %s34, 1
    %s36 = scalar_select %p33, %s34, %s35
    %p39 = pneg %p33
    %p40 = scmp.eq.s32.totalorder %s10, 3
    %p41 = por %p39, %p40
    %p42 = scmp.ne.s32.totalorder %s34, %s37
    %p43 = scmp.eq.s32.totalorder %s10, 0
    %p44 = por %p42, %p43
    %p45 = scmp.ne.s32.totalorder %s34, %s37
    %p46 = scmp.eq.s32.totalorder %s15, 3
    %p47 = por %p45, %p46
    %p48 = scmp.ne.s32.totalorder %s37, %s38
    %p49 = scmp.eq.s32.totalorder %s15, 0
    %p50 = por %p48, %p49
    %p51 = scmp.ne.s32.totalorder %s37, %s38
    %p52 = scmp.eq.s32.totalorder %s16, 3
    %p53 = por %p51, %p52
    %p55 = scmp.ne.s32.totalorder %s38, %s54
    %p56 = scmp.eq.s32.totalorder %s16, 0
    %p57 = por %p55, %p56
    %s58 = ssub.s32 %s18, %s25
    %p59 = scmp.eq.s32.totalorder %s58, 0
    %s61 = sadd.s32 %s60, 1
    %s62 = scalar_select %p59, %s60, %s61
    %p65 = pneg %p59
    %p66 = scmp.eq.s32.totalorder %s10, 3
    %p67 = por %p65, %p66
    %p68 = scmp.ne.s32.totalorder %s60, %s63
    %p69 = scmp.eq.s32.totalorder %s10, 0
    %p70 = por %p68, %p69
    %p71 = scmp.ne.s32.totalorder %s60, %s63
    %p72 = scmp.eq.s32.totalorder %s15, 3
    %p73 = por %p71, %p72
    %p74 = scmp.ne.s32.totalorder %s63, %s64
    %p75 = scmp.eq.s32.totalorder %s15, 0
    %p76 = por %p74, %p75
    %p77 = scmp.ne.s32.totalorder %s63, %s64
    %p78 = scmp.eq.s32.totalorder %s16, 3
    %p79 = por %p77, %p78
    %p81 = scmp.ne.s32.totalorder %s64, %s80
    %p82 = scmp.eq.s32.totalorder %s16, 0
    %p83 = por %p81, %p82
    %s84 = ssub.s32 %s17, %s29
    %p85 = scmp.eq.s32.totalorder %s84, 0
    %s87 = sadd.s32 %s86, 1
    %s88 = scalar_select %p85, %s86, %s87
    %p91 = pneg %p85
    %p92 = scmp.eq.s32.totalorder %s10, 3
    %p93 = por %p91, %p92
    %p94 = scmp.ne.s32.totalorder %s86, %s89
    %p95 = scmp.eq.s32.totalorder %s10, 0
    %p96 = por %p94, %p95
    %p97 = scmp.ne.s32.totalorder %s86, %s89
    %p98 = scmp.eq.s32.totalorder %s15, 3
    %p99 = por %p97, %p98
    %p100 = scmp.ne.s32.totalorder %s89, %s90
    %p101 = scmp.eq.s32.totalorder %s15, 0
    %p102 = por %p100, %p101
    %p103 = scmp.ne.s32.totalorder %s89, %s90
    %p104 = scmp.eq.s32.totalorder %s16, 3
    %p105 = por %p103, %p104
    %p107 = scmp.ne.s32.totalorder %s90, %s106
    %p108 = scmp.eq.s32.totalorder %s16, 0
    %p109 = por %p107, %p108
    %s110 = ssub.s32 %s17, %s29
    %p111 = scmp.eq.s32.totalorder %s110, 0
    %s113 = sadd.s32 %s112, 1
    %s114 = scalar_select %p111, %s112, %s113
    %p117 = pneg %p111
    %p118 = scmp.eq.s32.totalorder %s10, 3
    %p119 = por %p117, %p118
    %p120 = scmp.ne.s32.totalorder %s112, %s115
    %p121 = scmp.eq.s32.totalorder %s10, 0
    %p122 = por %p120, %p121
    %p123 = scmp.ne.s32.totalorder %s112, %s115
    %p124 = scmp.eq.s32.totalorder %s15, 3
    %p125 = por %p123, %p124
    %p126 = scmp.ne.s32.totalorder %s115, %s116
    %p127 = scmp.eq.s32.totalorder %s15, 0
    %p128 = por %p126, %p127
    %p129 = scmp.ne.s32.totalorder %s115, %s116
    %p130 = scmp.eq.s32.totalorder %s16, 3
    %p131 = por %p129, %p130
    %p133 = scmp.ne.s32.totalorder %s116, %s132
    %p134 = scmp.eq.s32.totalorder %s16, 0
    %p135 = por %p133, %p134
    %p136 = scmp.le.s32.totalorder 1, %s10
    %p137 = scmp.lt.s32.totalorder %s10, 5
    %p138 = pnand %p136, %p137
    %p139 = pneg %p138
    // Predicated region
    $region9: #{discriminator_forward.8} parent=5 // pred_check
      _
    $region10: #{discriminator_forward.8} parent=5 // pred_check_branch
      %141 = sbr.rel (%p138) target = $region12
    $region11: #{discriminator_forward.8} parent=5 // pred_region
      %s142 = ssub.s32 %s10, 1
      // Predicated region
      $region13: #{discriminator_forward.8} parent=11 // pred_check
        %p143 = pneg %p76
      $region14: #{discriminator_forward.8} parent=11 // pred_check_branch
        %145 = sbr.rel (%p143) target = $region16
      $region15: #{discriminator_forward.8} parent=11 // pred_region
        %s146 = smul.u32 16, %s20
        %p147 = scmp.lt.s32.totalorder %s146, 15
        %s148 = scalar_select %p147, %s146, 15
        %s149 = smul.addr %s148, 4
        %s150 = scalar_lea.vmem %s1, %s149
        %s151 = smul.u32 16, %s20
      $region16: #{discriminator_forward.8} parent=11 // pred_fallthru
        _
    $region12: #{discriminator_forward.8} parent=5 // pred_fallthru
      _
    %p152 = scmp.lt.s32.totalorder %s10, 4
    // Predicated region
    $region17: #{discriminator_forward.8} parent=5 // pred_check
      %p153 = pneg %p152
    $region18: #{discriminator_forward.8} parent=5 // pred_check_branch
      %155 = sbr.rel (%p153) target = $region20
    $region19: #{discriminator_forward.8} parent=5 // pred_region
      // Predicated region
      $region21: #{discriminator_forward.8} parent=19 // pred_check
        %p156 = pneg %p44
      $region22: #{discriminator_forward.8} parent=19 // pred_check_branch
        %158 = sbr.rel (%p156) target = $region24
      $region23: #{discriminator_forward.8} parent=19 // pred_region
        %s159 = smul.u32 16, %s17
        %p160 = scmp.lt.s32.totalorder %s159, 63
        %s161 = scalar_select %p160, %s159, 63
        %p162 = scmp.lt.s32.totalorder %s18, 0
        %s163 = scalar_select %p162, %s18, 0
        %s164 = sadd.s32 %s163, %s161
        %s165 = smul.addr %s164, 4
        %s166 = scalar_lea.vmem %s0, %s165
        %s167 = smul.u32 16, %s17
      $region24: #{discriminator_forward.8} parent=19 // pred_fallthru
        _
    $region20: #{discriminator_forward.8} parent=5 // pred_fallthru
      _
    %p168 = scmp.le.s32.totalorder 1, %s10
    %p169 = scmp.lt.s32.totalorder %s10, 5
    %p170 = pnand %p168, %p169
    %p171 = pneg %p170
    // Predicated region
    $region25: #{discriminator_forward.8} parent=5 // pred_check
      _
    $region26: #{discriminator_forward.8} parent=5 // pred_check_branch
      %173 = sbr.rel (%p170) target = $region28
    $region27: #{discriminator_forward.8} parent=5 // pred_region
      %s174 = ssub.s32 %s10, 1
      %s175 = smul.u32 16, %s19
      %p176 = scmp.lt.s32.totalorder %s175, 63
      %s177 = scalar_select %p176, %s175, 63
      %p178 = scmp.lt.s32.totalorder %s20, 0
      %s179 = scalar_select %p178, %s20, 0
      %s180 = sadd.s32 %s179, %s177
      %s181 = smul.addr %s180, 4
      %s182 = scalar_lea.vmem %s0, %s181
      %p183 = pneg %p50
      %p184 = pneg %p47
      %s185 = smul.u32 16, %s20
      %p186 = scmp.lt.s32.totalorder %s185, 15
      %s187 = scalar_select %p186, %s185, 15
      %s188 = smul.addr %s187, 4
      %s189 = scalar_lea.vmem %s1, %s188
      %p190 = pneg %p76
      %p191 = pneg %p73
      %p192 = pneg %p102
      %p193 = pneg %p99
      %s194 = smul.u32 16, %s19
      %p195 = scmp.lt.s32.totalorder %s194, 63
      %s196 = scalar_select %p195, %s194, 63
      %s197 = smul.addr %s196, 8
      %s198 = scalar_lea.vmem %s2, %s197
      %p199 = pneg %p128
      %p200 = pneg %p125
      %p201 = scmp.lt.s32.totalorder %s19, 3
      %s202 = scalar_select %p201, %s19, 3
      %s203 = smul.addr %s202, 2
      %s204 = scalar_lea.vmem %s3, %s203
      %s205 = smul.u32 16, %s19
      %p206 = scmp.lt.s32.totalorder %s205, 63
      %s207 = scalar_select %p206, %s205, 63
      %p208 = scmp.lt.s32.totalorder %s20, 0
      %s209 = scalar_select %p208, %s20, 0
      %s210 = sadd.s32 %s209, %s207
      %s211 = smul.addr %s210, 4
      %s212 = scalar_lea.vmem %s0, %s211
      %s213 = smul.u32 16, %s19
      %s214 = smul.u32 16, %s20
      %p215 = scmp.lt.s32.totalorder %s214, 15
      %s216 = scalar_select %p215, %s214, 15
      %s217 = smul.addr %s216, 4
      %s218 = scalar_lea.vmem %s1, %s217
      %s219 = smul.u32 16, %s20
      %s220 = smul.u32 16, %s19
      %p221 = scmp.lt.s32.totalorder %s220, 63
      %s222 = scalar_select %p221, %s220, 63
      %s223 = smul.addr %s222, 8
      %s224 = scalar_lea.vmem %s2, %s223
      %s225 = smul.u32 16, %s19
      %p226 = scmp.lt.s32.totalorder %s19, 3
      %s227 = scalar_select %p226, %s19, 3
      %s228 = smul.addr %s227, 2
      %s229 = scalar_lea.vmem %s3, %s228
      %v230 = vld [vmem:[%s212] sm:$0xf]
      %v231 = vld [vmem:[%s212 + $0x4] sm:$0xf]
      %v232 = vld [vmem:[%s212 + $0x8] sm:$0xf]
      %v233 = vld [vmem:[%s212 + $0xc] sm:$0xf]
      %v234 = vld [vmem:[%s212 + $0x10] sm:$0xf]
      %v235 = vld [vmem:[%s212 + $0x14] sm:$0xf]
      %v236 = vld [vmem:[%s212 + $0x18] sm:$0xf]
      %v237 = vld [vmem:[%s212 + $0x1c] sm:$0xf]
      %v238 = vld [vmem:[%s212 + $0x20] sm:$0xf]
      %v239 = vld [vmem:[%s212 + $0x24] sm:$0xf]
      %v240 = vld [vmem:[%s212 + $0x28] sm:$0xf]
      %v241 = vld [vmem:[%s212 + $0x2c] sm:$0xf]
      %v242 = vld [vmem:[%s212 + $0x30] sm:$0xf]
      %v243 = vld [vmem:[%s212 + $0x34] sm:$0xf]
      %v244 = vld [vmem:[%s212 + $0x38] sm:$0xf]
      %v245 = vld [vmem:[%s212 + $0x3c] sm:$0xf]
      %v246 = vld [vmem:[%s218] sm:$0xf]
      %v247 = vld [vmem:[%s218 + $0x4] sm:$0xf]
      %v248 = vld [vmem:[%s218 + $0x8] sm:$0xf]
      %v249 = vld [vmem:[%s218 + $0xc] sm:$0xf]
      %v250 = vld [vmem:[%s218 + $0x10] sm:$0xf]
      %v251 = vld [vmem:[%s218 + $0x14] sm:$0xf]
      %v252 = vld [vmem:[%s218 + $0x18] sm:$0xf]
      %v253 = vld [vmem:[%s218 + $0x1c] sm:$0xf]
      %v254 = vld [vmem:[%s218 + $0x20] sm:$0xf]
      %v255 = vld [vmem:[%s218 + $0x24] sm:$0xf]
      %v256 = vld [vmem:[%s218 + $0x28] sm:$0xf]
      %v257 = vld [vmem:[%s218 + $0x2c] sm:$0xf]
      %v258 = vld [vmem:[%s218 + $0x30] sm:$0xf]
      %v259 = vld [vmem:[%s218 + $0x34] sm:$0xf]
      %v260 = vld [vmem:[%s218 + $0x38] sm:$0xf]
      %v261 = vld [vmem:[%s218 + $0x3c] sm:$0xf]
      %v278 = vunpack.c.l.b16 %v230
      %v279 = vunpack.c.l.b16 %v231
      %v280 = vunpack.c.l.b16 %v232
      %v281 = vunpack.c.l.b16 %v233
      %v282 = vunpack.c.l.b16 %v234
      %v283 = vunpack.c.l.b16 %v235
      %v284 = vunpack.c.l.b16 %v236
      %v285 = vunpack.c.l.b16 %v237
      %v286 = vunpack.c.l.b16 %v238
      %v287 = vunpack.c.l.b16 %v239
      %v288 = vunpack.c.l.b16 %v240
      %v289 = vunpack.c.l.b16 %v241
      %v290 = vunpack.c.l.b16 %v242
      %v291 = vunpack.c.l.b16 %v243
      %v292 = vunpack.c.l.b16 %v244
      %v293 = vunpack.c.l.b16 %v245
      %v294 = vpack.c.b16 %v279, %v278
      %v295 = vpack.c.b16 %v281, %v280
      %v296 = vpack.c.b16 %v283, %v282
      %v297 = vpack.c.b16 %v285, %v284
      %v298 = vpack.c.b16 %v287, %v286
      %v299 = vpack.c.b16 %v289, %v288
      %v300 = vpack.c.b16 %v291, %v290
      %v301 = vpack.c.b16 %v293, %v292
      %v326 = vunpack.c.l.b16 %v246
      %v327 = vunpack.c.l.b16 %v247
      %v328 = vunpack.c.l.b16 %v248
      %v329 = vunpack.c.l.b16 %v249
      %v330 = vunpack.c.l.b16 %v250
      %v331 = vunpack.c.l.b16 %v251
      %v332 = vunpack.c.l.b16 %v252
      %v333 = vunpack.c.l.b16 %v253
      %v334 = vunpack.c.l.b16 %v254
      %v335 = vunpack.c.l.b16 %v255
      %v336 = vunpack.c.l.b16 %v256
      %v337 = vunpack.c.l.b16 %v257
      %v338 = vunpack.c.l.b16 %v258
      %v339 = vunpack.c.l.b16 %v259
      %v340 = vunpack.c.l.b16 %v260
      %v341 = vunpack.c.l.b16 %v261
      %v342 = vpack.c.b16 %v327, %v326
      %v343 = vpack.c.b16 %v329, %v328
      %v344 = vpack.c.b16 %v331, %v330
      %v345 = vpack.c.b16 %v333, %v332
      %v346 = vpack.c.b16 %v335, %v334
      %v347 = vpack.c.b16 %v337, %v336
      %v348 = vpack.c.b16 %v339, %v338
      %v349 = vpack.c.b16 %v341, %v340
      %358 = vmatpush.bf16.msra.mxu0 %v349
      %359 = vmatpush.bf16.msra.mxu0 %v348
      %360 = vmatpush.bf16.msra.mxu0 %v347
      %361 = vmatpush.bf16.msra.mxu0 %v346
      %362 = vmatpush.bf16.msra.mxu0 %v345
      %363 = vmatpush.bf16.msra.mxu0 %v344
      %364 = vmatpush.bf16.msra.mxu0 %v343
      %365 = vmatpush.bf16.msra.mxu0 %v342
      %366 = vmatmul.bf16.gmra.mxu0 %v294
      %v367 = vpop.f32.mrf.mxu0
      %v368 = vadd.f32 0.0, %v367
      %v369 = vpop.f32.mrf.mxu0
      %v370 = vadd.f32 0.0, %v369
      %371 = vmatmul.bf16.gmra.mxu0 %v295
      %v372 = vpop.f32.mrf.mxu0
      %v373 = vadd.f32 0.0, %v372
      %v374 = vpop.f32.mrf.mxu0
      %v375 = vadd.f32 0.0, %v374
      %376 = vmatmul.bf16.gmra.mxu0 %v296
      %v377 = vpop.f32.mrf.mxu0
      %v378 = vadd.f32 0.0, %v377
      %v379 = vpop.f32.mrf.mxu0
      %v380 = vadd.f32 0.0, %v379
      %381 = vmatmul.bf16.gmra.mxu0 %v297
      %v382 = vpop.f32.mrf.mxu0
      %v383 = vadd.f32 0.0, %v382
      %v384 = vpop.f32.mrf.mxu0
      %v385 = vadd.f32 0.0, %v384
      %386 = vmatmul.bf16.gmra.mxu0 %v298
      %v387 = vpop.f32.mrf.mxu0
      %v388 = vadd.f32 0.0, %v387
      %v389 = vpop.f32.mrf.mxu0
      %v390 = vadd.f32 0.0, %v389
      %391 = vmatmul.bf16.gmra.mxu0 %v299
      %v392 = vpop.f32.mrf.mxu0
      %v393 = vadd.f32 0.0, %v392
      %v394 = vpop.f32.mrf.mxu0
      %v395 = vadd.f32 0.0, %v394
      %396 = vmatmul.bf16.gmra.mxu0 %v300
      %v397 = vpop.f32.mrf.mxu0
      %v398 = vadd.f32 0.0, %v397
      %v399 = vpop.f32.mrf.mxu0
      %v400 = vadd.f32 0.0, %v399
      %401 = vmatmul.bf16.gmra.mxu0 %v301
      %v402 = vpop.f32.mrf.mxu0
      %v403 = vadd.f32 0.0, %v402
      %v404 = vpop.f32.mrf.mxu0
      %v405 = vadd.f32 0.0, %v404
      %406 = vdwg.mxu0
      %v407 = vadd.f32 %v368, %v370
      %v408 = vadd.f32 %v407, %v373
      %v409 = vadd.f32 %v408, %v375
      %v410 = vadd.f32 %v409, %v378
      %v411 = vadd.f32 %v410, %v380
      %v412 = vadd.f32 %v411, %v383
      %v413 = vadd.f32 %v412, %v385
      %v414 = vadd.f32 %v413, %v388
      %v415 = vadd.f32 %v414, %v390
      %v416 = vadd.f32 %v415, %v393
      %v417 = vadd.f32 %v416, %v395
      %v418 = vadd.f32 %v417, %v398
      %v419 = vadd.f32 %v418, %v400
      %v420 = vadd.f32 %v419, %v403
      %v421 = vadd.f32 %v420, %v405
      %v422 = vrot.slane %v421, 4
      %v423 = vadd.f32 %v421, %v422
      %v424 = vrot.slane %v423, 2
      %v425 = vadd.f32 %v423, %v424
      %v426 = vrot.slane %v425, 1
      %v427 = vadd.f32 %v425, %v426
      %428 = vst [vmem:[%s229] sm:$0x1] %v427
      %v429 = vmul.f32 %v368, %v368
      %v430 = vmul.f32 %v370, %v370
      %v431 = vmul.f32 %v373, %v373
      %v432 = vmul.f32 %v375, %v375
      %v433 = vmul.f32 %v378, %v378
      %v434 = vmul.f32 %v380, %v380
      %v435 = vmul.f32 %v383, %v383
      %v436 = vmul.f32 %v385, %v385
      %v437 = vmul.f32 %v388, %v388
      %v438 = vmul.f32 %v390, %v390
      %v439 = vmul.f32 %v393, %v393
      %v440 = vmul.f32 %v395, %v395
      %v441 = vmul.f32 %v398, %v398
      %v442 = vmul.f32 %v400, %v400
      %v443 = vmul.f32 %v403, %v403
      %v444 = vmul.f32 %v405, %v405
      %v445 = vadd.f32 %v429, %v430
      %v446 = vadd.f32 %v445, %v431
      %v447 = vadd.f32 %v446, %v432
      %v448 = vadd.f32 %v447, %v433
      %v449 = vadd.f32 %v448, %v434
      %v450 = vadd.f32 %v449, %v435
      %v451 = vadd.f32 %v450, %v436
      %v452 = vadd.f32 %v451, %v437
      %v453 = vadd.f32 %v452, %v438
      %v454 = vadd.f32 %v453, %v439
      %v455 = vadd.f32 %v454, %v440
      %v456 = vadd.f32 %v455, %v441
      %v457 = vadd.f32 %v456, %v442
      %v458 = vadd.f32 %v457, %v443
      %v459 = vadd.f32 %v458, %v444
      %v460 = vrot.slane %v459, 4
      %v461 = vadd.f32 %v459, %v460
      %v462 = vrot.slane %v461, 2
      %v463 = vadd.f32 %v461, %v462
      %v464 = vrot.slane %v463, 1
      %v465 = vadd.f32 %v463, %v464
      %466 = vst [vmem:[%s229 + $0x1] sm:$0x1] %v465
      %467 = vst [vmem:[%s224] sm:$0xff] %v368
      %468 = vst [vmem:[%s224 + $0x8] sm:$0xff] %v370
      %469 = vst [vmem:[%s224 + $0x10] sm:$0xff] %v373
      %470 = vst [vmem:[%s224 + $0x18] sm:$0xff] %v375
      %471 = vst [vmem:[%s224 + $0x20] sm:$0xff] %v378
      %472 = vst [vmem:[%s224 + $0x28] sm:$0xff] %v380
      %473 = vst [vmem:[%s224 + $0x30] sm:$0xff] %v383
      %474 = vst [vmem:[%s224 + $0x38] sm:$0xff] %v385
      %475 = vst [vmem:[%s224 + $0x40] sm:$0xff] %v388
      %476 = vst [vmem:[%s224 + $0x48] sm:$0xff] %v390
      %477 = vst [vmem:[%s224 + $0x50] sm:$0xff] %v393
      %478 = vst [vmem:[%s224 + $0x58] sm:$0xff] %v395
      %479 = vst [vmem:[%s224 + $0x60] sm:$0xff] %v398
      %480 = vst [vmem:[%s224 + $0x68] sm:$0xff] %v400
      %481 = vst [vmem:[%s224 + $0x70] sm:$0xff] %v403
      %482 = vst [vmem:[%s224 + $0x78] sm:$0xff] %v405
      %s483 = smul.u32 16, %s19
      %p484 = scmp.lt.s32.totalorder %s483, 63
      %s485 = scalar_select %p484, %s483, 63
      %s486 = smul.addr %s485, 8
      %s487 = scalar_lea.vmem %s2, %s486
      %p488 = scmp.lt.s32.totalorder %s19, 3
      %s489 = scalar_select %p488, %s19, 3
      %s490 = smul.addr %s489, 2
      %s491 = scalar_lea.vmem %s3, %s490
      // Predicated region
      $region29: #{discriminator_forward.8} parent=27 // pred_check
        %p492 = pneg %p99
      $region30: #{discriminator_forward.8} parent=27 // pred_check_branch
        %494 = sbr.rel (%p492) target = $region32
      $region31: #{discriminator_forward.8} parent=27 // pred_region
        %s495 = smul.u32 16, %s19
      $region32: #{discriminator_forward.8} parent=27 // pred_fallthru
        _
      // Predicated region
      $region33: #{discriminator_forward.8} parent=27 // pred_check
        %p496 = pneg %p125
      $region34: #{discriminator_forward.8} parent=27 // pred_check_branch
        %498 = sbr.rel (%p496) target = $region36
      $region35: #{discriminator_forward.8} parent=27 // pred_region
        _
      $region36: #{discriminator_forward.8} parent=27 // pred_fallthru
        _
    $region28: #{discriminator_forward.8} parent=5 // pred_fallthru
      _
    %p499 = scmp.le.s32.totalorder 2, %s10
    // Predicated region
    $region37: #{discriminator_forward.8} parent=5 // pred_check
      %p500 = pneg %p499
    $region38: #{discriminator_forward.8} parent=5 // pred_check_branch
      %502 = sbr.rel (%p500) target = $region40
    $region39: #{discriminator_forward.8} parent=5 // pred_region
      %s503 = ssub.s32 %s10, 2
      // Predicated region
      $region41: #{discriminator_forward.8} parent=39 // pred_check
        %p504 = pneg %p105
      $region42: #{discriminator_forward.8} parent=39 // pred_check_branch
        %506 = sbr.rel (%p504) target = $region44
      $region43: #{discriminator_forward.8} parent=39 // pred_region
        %s507 = smul.u32 16, %s21
        %p508 = scmp.lt.s32.totalorder %s507, 63
        %s509 = scalar_select %p508, %s507, 63
        %s510 = smul.addr %s509, 8
        %s511 = scalar_lea.vmem %s2, %s510
      $region44: #{discriminator_forward.8} parent=39 // pred_fallthru
        _
      // Predicated region
      $region45: #{discriminator_forward.8} parent=39 // pred_check
        %p512 = pneg %p131
      $region46: #{discriminator_forward.8} parent=39 // pred_check_branch
        %514 = sbr.rel (%p512) target = $region48
      $region47: #{discriminator_forward.8} parent=39 // pred_region
        %p515 = scmp.lt.s32.totalorder %s21, 3
        %s516 = scalar_select %p515, %s21, 3
        %s517 = smul.addr %s516, 2
        %s518 = scalar_lea.vmem %s3, %s517
      $region48: #{discriminator_forward.8} parent=39 // pred_fallthru
        _
    $region40: #{discriminator_forward.8} parent=5 // pred_fallthru
      _
  $region6: #{discriminator_forward.8} parent=0 // loop_footer
    %s14 = sadd.s32 1, %s10
  $region7: #{discriminator_forward.8} parent=0 // loop_footer_branch
    %9 = sbr.rel target = $region3
  $region8: #{discriminator_forward.8} parent=0 // loop_exit
    _

// kernel: discriminator_forward.9
$region0: #{discriminator_forward.9}
  #allocation0 [shape = 'u32[]', space=smem, size = 0x4, offset = 0x4, fixed_abs, tag = 'smem constant byte address 0x4 - core index']
  #allocation1 [shape = 'u32[72,128]{1,0:T(1,128)}', space=vmem, size = 0x9000, scoped, tag = 'internal scratch']
  %s0 = inlined_call_operand.vmem [shape: f32[512,128], index: 0, kind: input, shape index: {}]
  %s1 = inlined_call_operand.vmem [shape: f32[1,128], index: 1, kind: input, shape index: {}]
  %s2 = inlined_call_operand.vmem [shape: f32[1,128], index: 2, kind: input, shape index: {}]
  %s3 = inlined_call_operand.vmem [shape: bf16[512,128], index: 3, kind: output, shape index: {}]
  %s4 = sld [smem:[#allocation0]]
  $region45: #{discriminator_forward.9} parent=0
    _
  %s6 = ssub.s32 1, %s4
  %s7 = scalar_select 0, %s6, %s4
  loop: start=0, step=1, limit=6
  $region2: #{discriminator_forward.9} parent=0 // loop_pre_header
    _
  $region3: #{discriminator_forward.9} parent=0 // loop_header
    %s9 = sphi 0, %s13
    %p10 = scmp.ge.s32.totalorder %s9, 6
    %s19 = sphi 0, %s21
    %s22 = sphi 0, %s19
    %s23 = sphi 0, %s22
    %s39 = sphi 0, %s23
    %s43 = sphi 0, %s43
    %s45 = sphi 0, %s43
    %s46 = sphi 0, %s45
    %s60 = sphi 0, %s46
    %s64 = sphi 0, %s64
    %s66 = sphi 0, %s64
    %s67 = sphi 0, %s66
    %s81 = sphi 0, %s67
    %s87 = sphi 0, %s89
    %s90 = sphi 0, %s87
    %s91 = sphi 0, %s90
    %s107 = sphi 0, %s91
  $region4: #{discriminator_forward.9} parent=0 // loop_header_branch
    %12 = sbr.rel (%p10) target = $region8
  $region5: #{discriminator_forward.9} parent=0 // loop_body
    %s14 = ssub.s32 %s9, 1
    %s15 = ssub.s32 %s9, 2
    %s16 = sadd.s32 %s9, 1
    %s17 = ssub.s32 %s9, %s16
    %p18 = scmp.eq.s32.totalorder %s17, 0
    %s20 = sadd.s32 %s19, 1
    %s21 = scalar_select %p18, %s19, %s20
    %p24 = pneg %p18
    %p25 = scmp.eq.s32.totalorder %s9, 3
    %p26 = por %p24, %p25
    %p27 = scmp.ne.s32.totalorder %s19, %s22
    %p28 = scmp.eq.s32.totalorder %s9, 0
    %p29 = por %p27, %p28
    %p30 = scmp.ne.s32.totalorder %s19, %s22
    %p31 = scmp.eq.s32.totalorder %s14, 3
    %p32 = por %p30, %p31
    %p33 = scmp.ne.s32.totalorder %s22, %s23
    %p34 = scmp.eq.s32.totalorder %s14, 0
    %p35 = por %p33, %p34
    %p36 = scmp.ne.s32.totalorder %s22, %s23
    %p37 = scmp.eq.s32.totalorder %s15, 3
    %p38 = por %p36, %p37
    %p40 = scmp.ne.s32.totalorder %s23, %s39
    %p41 = scmp.eq.s32.totalorder %s15, 0
    %p42 = por %p40, %p41
    %s44 = sadd.s32 %s43, 1
    %p47 = scmp.eq.s32.totalorder %s9, 3
    %p48 = scmp.ne.s32.totalorder %s43, %s45
    %p49 = scmp.eq.s32.totalorder %s9, 0
    %p50 = por %p48, %p49
    %p51 = scmp.ne.s32.totalorder %s43, %s45
    %p52 = scmp.eq.s32.totalorder %s14, 3
    %p53 = por %p51, %p52
    %p54 = scmp.ne.s32.totalorder %s45, %s46
    %p55 = scmp.eq.s32.totalorder %s14, 0
    %p56 = por %p54, %p55
    %p57 = scmp.ne.s32.totalorder %s45, %s46
    %p58 = scmp.eq.s32.totalorder %s15, 3
    %p59 = por %p57, %p58
    %p61 = scmp.ne.s32.totalorder %s46, %s60
    %p62 = scmp.eq.s32.totalorder %s15, 0
    %p63 = por %p61, %p62
    %s65 = sadd.s32 %s64, 1
    %p68 = scmp.eq.s32.totalorder %s9, 3
    %p69 = scmp.ne.s32.totalorder %s64, %s66
    %p70 = scmp.eq.s32.totalorder %s9, 0
    %p71 = por %p69, %p70
    %p72 = scmp.ne.s32.totalorder %s64, %s66
    %p73 = scmp.eq.s32.totalorder %s14, 3
    %p74 = por %p72, %p73
    %p75 = scmp.ne.s32.totalorder %s66, %s67
    %p76 = scmp.eq.s32.totalorder %s14, 0
    %p77 = por %p75, %p76
    %p78 = scmp.ne.s32.totalorder %s66, %s67
    %p79 = scmp.eq.s32.totalorder %s15, 3
    %p80 = por %p78, %p79
    %p82 = scmp.ne.s32.totalorder %s67, %s81
    %p83 = scmp.eq.s32.totalorder %s15, 0
    %p84 = por %p82, %p83
    %s85 = ssub.s32 %s9, %s16
    %p86 = scmp.eq.s32.totalorder %s85, 0
    %s88 = sadd.s32 %s87, 1
    %s89 = scalar_select %p86, %s87, %s88
    %p92 = pneg %p86
    %p93 = scmp.eq.s32.totalorder %s9, 3
    %p94 = por %p92, %p93
    %p95 = scmp.ne.s32.totalorder %s87, %s90
    %p96 = scmp.eq.s32.totalorder %s9, 0
    %p97 = por %p95, %p96
    %p98 = scmp.ne.s32.totalorder %s87, %s90
    %p99 = scmp.eq.s32.totalorder %s14, 3
    %p100 = por %p98, %p99
    %p101 = scmp.ne.s32.totalorder %s90, %s91
    %p102 = scmp.eq.s32.totalorder %s14, 0
    %p103 = por %p101, %p102
    %p104 = scmp.ne.s32.totalorder %s90, %s91
    %p105 = scmp.eq.s32.totalorder %s15, 3
    %p106 = por %p104, %p105
    %p108 = scmp.ne.s32.totalorder %s91, %s107
    %p109 = scmp.eq.s32.totalorder %s15, 0
    %p110 = por %p108, %p109
    %p111 = scmp.le.s32.totalorder 1, %s9
    %p112 = scmp.lt.s32.totalorder %s9, 5
    %p113 = pnand %p111, %p112
    %p114 = pneg %p113
    // Predicated region
    $region9: #{discriminator_forward.9} parent=5 // pred_check
      _
    $region10: #{discriminator_forward.9} parent=5 // pred_check_branch
      %116 = sbr.rel (%p113) target = $region12
    $region11: #{discriminator_forward.9} parent=5 // pred_region
      %s117 = ssub.s32 %s9, 1
      // Predicated region
      $region13: #{discriminator_forward.9} parent=11 // pred_check
        %p118 = pneg %p56
      $region14: #{discriminator_forward.9} parent=11 // pred_check_branch
        %120 = sbr.rel (%p118) target = $region16
      $region15: #{discriminator_forward.9} parent=11 // pred_region
        _
      $region16: #{discriminator_forward.9} parent=11 // pred_fallthru
        _
      // Predicated region
      $region17: #{discriminator_forward.9} parent=11 // pred_check
        %p121 = pneg %p77
      $region18: #{discriminator_forward.9} parent=11 // pred_check_branch
        %123 = sbr.rel (%p121) target = $region20
      $region19: #{discriminator_forward.9} parent=11 // pred_region
        _
      $region20: #{discriminator_forward.9} parent=11 // pred_fallthru
        _
    $region12: #{discriminator_forward.9} parent=5 // pred_fallthru
      _
    %p124 = scmp.lt.s32.totalorder %s9, 4
    // Predicated region
    $region21: #{discriminator_forward.9} parent=5 // pred_check
      %p125 = pneg %p124
    $region22: #{discriminator_forward.9} parent=5 // pred_check_branch
      %127 = sbr.rel (%p125) target = $region24
    $region23: #{discriminator_forward.9} parent=5 // pred_region
      // Predicated region
      $region25: #{discriminator_forward.9} parent=23 // pred_check
        %p128 = pneg %p29
      $region26: #{discriminator_forward.9} parent=23 // pred_check_branch
        %130 = sbr.rel (%p128) target = $region28
      $region27: #{discriminator_forward.9} parent=23 // pred_region
        %s131 = smul.u32 16, %s9
        %p132 = scmp.lt.s32.totalorder %s131, 63
        %s133 = scalar_select %p132, %s131, 63
        %s134 = smul.addr %s133, 8
        %s135 = scalar_lea.vmem %s0, %s134
        %s136 = smul.u32 16, %s9
      $region28: #{discriminator_forward.9} parent=23 // pred_fallthru
        _
    $region24: #{discriminator_forward.9} parent=5 // pred_fallthru
      _
    %p137 = scmp.le.s32.totalorder 1, %s9
    %p138 = scmp.lt.s32.totalorder %s9, 5
    %p139 = pnand %p137, %p138
    %p140 = pneg %p139
    // Predicated region
    $region29: #{discriminator_forward.9} parent=5 // pred_check
      _
    $region30: #{discriminator_forward.9} parent=5 // pred_check_branch
      %142 = sbr.rel (%p139) target = $region32
    $region31: #{discriminator_forward.9} parent=5 // pred_region
      %s143 = ssub.s32 %s9, 1
      %s144 = smul.u32 16, %s14
      %p145 = scmp.lt.s32.totalorder %s144, 63
      %s146 = scalar_select %p145, %s144, 63
      %s147 = smul.addr %s146, 8
      %s148 = scalar_lea.vmem %s0, %s147
      %p149 = pneg %p35
      %p150 = pneg %p32
      %p151 = pneg %p56
      %p152 = pneg %p53
      %p153 = pneg %p77
      %p154 = pneg %p74
      %p155 = pneg %p103
      %p156 = pneg %p100
      %s157 = smul.u32 16, %s14
      %p158 = scmp.lt.s32.totalorder %s157, 63
      %s159 = scalar_select %p158, %s157, 63
      %s160 = smul.addr %s159, 4
      %s161 = scalar_lea.vmem %s3, %s160
      %s162 = smul.u32 16, %s14
      %p163 = scmp.lt.s32.totalorder %s162, 63
      %s164 = scalar_select %p163, %s162, 63
      %s165 = smul.addr %s164, 8
      %s166 = scalar_lea.vmem %s0, %s165
      %s167 = smul.u32 16, %s14
      %s168 = smul.u32 16, %s14
      %p169 = scmp.lt.s32.totalorder %s168, 63
      %s170 = scalar_select %p169, %s168, 63
      %s171 = smul.addr %s170, 4
      %s172 = scalar_lea.vmem %s3, %s171
      %s173 = smul.u32 16, %s14
      %v174 = vld [vmem:[%s166] sm:$0xff]
      %v175 = vld [vmem:[%s166 + $0x8] sm:$0xff]
      %v176 = vld [vmem:[%s166 + $0x10] sm:$0xff]
      %v177 = vld [vmem:[%s166 + $0x18] sm:$0xff]
      %v178 = vld [vmem:[%s166 + $0x20] sm:$0xff]
      %v179 = vld [vmem:[%s166 + $0x28] sm:$0xff]
      %v180 = vld [vmem:[%s166 + $0x30] sm:$0xff]
      %v181 = vld [vmem:[%s166 + $0x38] sm:$0xff]
      %v182 = vld [vmem:[%s166 + $0x40] sm:$0xff]
      %v183 = vld [vmem:[%s166 + $0x48] sm:$0xff]
      %v184 = vld [vmem:[%s166 + $0x50] sm:$0xff]
      %v185 = vld [vmem:[%s166 + $0x58] sm:$0xff]
      %v186 = vld [vmem:[%s166 + $0x60] sm:$0xff]
      %v187 = vld [vmem:[%s166 + $0x68] sm:$0xff]
      %v188 = vld [vmem:[%s166 + $0x70] sm:$0xff]
      %v189 = vld [vmem:[%s166 + $0x78] sm:$0xff]
      %v190 = vld [vmem:[%s1] sm:$0x1]
      %v192 = vperm.slane %v190, 0
      %v194 = vmul.f32 %v174, %v192
      %v195 = vmul.f32 %v175, %v192
      %v196 = vmul.f32 %v176, %v192
      %v197 = vmul.f32 %v177, %v192
      %v198 = vmul.f32 %v178, %v192
      %v199 = vmul.f32 %v179, %v192
      %v200 = vmul.f32 %v180, %v192
      %v201 = vmul.f32 %v181, %v192
      %v202 = vmul.f32 %v182, %v192
      %v203 = vmul.f32 %v183, %v192
      %v204 = vmul.f32 %v184, %v192
      %v205 = vmul.f32 %v185, %v192
      %v206 = vmul.f32 %v186, %v192
      %v207 = vmul.f32 %v187, %v192
      %v208 = vmul.f32 %v188, %v192
      %v209 = vmul.f32 %v189, %v192
      %v210 = vld [vmem:[%s2] sm:$0x1]
      %v212 = vperm.slane %v210, 0
      %v214 = vadd.f32 %v194, %v212
      %v215 = vadd.f32 %v195, %v212
      %v216 = vadd.f32 %v196, %v212
      %v217 = vadd.f32 %v197, %v212
      %v218 = vadd.f32 %v198, %v212
      %v219 = vadd.f32 %v199, %v212
      %v220 = vadd.f32 %v200, %v212
      %v221 = vadd.f32 %v201, %v212
      %v222 = vadd.f32 %v202, %v212
      %v223 = vadd.f32 %v203, %v212
      %v224 = vadd.f32 %v204, %v212
      %v225 = vadd.f32 %v205, %v212
      %v226 = vadd.f32 %v206, %v212
      %v227 = vadd.f32 %v207, %v212
      %v228 = vadd.f32 %v208, %v212
      %v229 = vadd.f32 %v209, %v212
      %v230 = vmul.f32 %v214, 0.2
      %v231 = vmul.f32 %v215, 0.2
      %v232 = vmul.f32 %v216, 0.2
      %v233 = vmul.f32 %v217, 0.2
      %v234 = vmul.f32 %v218, 0.2
      %v235 = vmul.f32 %v219, 0.2
      %v236 = vmul.f32 %v220, 0.2
      %v237 = vmul.f32 %v221, 0.2
      %v238 = vmul.f32 %v222, 0.2
      %v239 = vmul.f32 %v223, 0.2
      %v240 = vmul.f32 %v224, 0.2
      %v241 = vmul.f32 %v225, 0.2
      %v242 = vmul.f32 %v226, 0.2
      %v243 = vmul.f32 %v227, 0.2
      %v244 = vmul.f32 %v228, 0.2
      %v245 = vmul.f32 %v229, 0.2
      %v246 = vmax.f32 %v214, %v230
      %v247 = vmax.f32 %v215, %v231
      %v248 = vmax.f32 %v216, %v232
      %v249 = vmax.f32 %v217, %v233
      %v250 = vmax.f32 %v218, %v234
      %v251 = vmax.f32 %v219, %v235
      %v252 = vmax.f32 %v220, %v236
      %v253 = vmax.f32 %v221, %v237
      %v254 = vmax.f32 %v222, %v238
      %v255 = vmax.f32 %v223, %v239
      %v256 = vmax.f32 %v224, %v240
      %v257 = vmax.f32 %v225, %v241
      %v258 = vmax.f32 %v226, %v242
      %v259 = vmax.f32 %v227, %v243
      %v260 = vmax.f32 %v228, %v244
      %v261 = vmax.f32 %v229, %v245
      %v262 = vpack.c.bf16 %v246, %v246
      %v263 = vpack.c.bf16 %v247, %v247
      %v264 = vpack.c.bf16 %v248, %v248
      %v265 = vpack.c.bf16 %v249, %v249
      %v266 = vpack.c.bf16 %v250, %v250
      %v267 = vpack.c.bf16 %v251, %v251
      %v268 = vpack.c.bf16 %v252, %v252
      %v269 = vpack.c.bf16 %v253, %v253
      %v270 = vpack.c.bf16 %v254, %v254
      %v271 = vpack.c.bf16 %v255, %v255
      %v272 = vpack.c.bf16 %v256, %v256
      %v273 = vpack.c.bf16 %v257, %v257
      %v274 = vpack.c.bf16 %v258, %v258
      %v275 = vpack.c.bf16 %v259, %v259
      %v276 = vpack.c.bf16 %v260, %v260
      %v277 = vpack.c.bf16 %v261, %v261
      %278 = vst [vmem:[%s172] sm:$0xf] %v262
      %279 = vst [vmem:[%s172 + $0x4] sm:$0xf] %v263
      %280 = vst [vmem:[%s172 + $0x8] sm:$0xf] %v264
      %281 = vst [vmem:[%s172 + $0xc] sm:$0xf] %v265
      %282 = vst [vmem:[%s172 + $0x10] sm:$0xf] %v266
      %283 = vst [vmem:[%s172 + $0x14] sm:$0xf] %v267
      %284 = vst [vmem:[%s172 + $0x18] sm:$0xf] %v268
      %285 = vst [vmem:[%s172 + $0x1c] sm:$0xf] %v269
      %286 = vst [vmem:[%s172 + $0x20] sm:$0xf] %v270
      %287 = vst [vmem:[%s172 + $0x24] sm:$0xf] %v271
      %288 = vst [vmem:[%s172 + $0x28] sm:$0xf] %v272
      %289 = vst [vmem:[%s172 + $0x2c] sm:$0xf] %v273
      %290 = vst [vmem:[%s172 + $0x30] sm:$0xf] %v274
      %291 = vst [vmem:[%s172 + $0x34] sm:$0xf] %v275
      %292 = vst [vmem:[%s172 + $0x38] sm:$0xf] %v276
      %293 = vst [vmem:[%s172 + $0x3c] sm:$0xf] %v277
      %s294 = smul.u32 16, %s14
      %p295 = scmp.lt.s32.totalorder %s294, 63
      %s296 = scalar_select %p295, %s294, 63
      %s297 = smul.addr %s296, 4
      %s298 = scalar_lea.vmem %s3, %s297
      // Predicated region
      $region33: #{discriminator_forward.9} parent=31 // pred_check
        %p299 = pneg %p100
      $region34: #{discriminator_forward.9} parent=31 // pred_check_branch
        %301 = sbr.rel (%p299) target = $region36
      $region35: #{discriminator_forward.9} parent=31 // pred_region
        %s302 = smul.u32 16, %s14
      $region36: #{discriminator_forward.9} parent=31 // pred_fallthru
        _
    $region32: #{discriminator_forward.9} parent=5 // pred_fallthru
      _
    %p303 = scmp.le.s32.totalorder 2, %s9
    // Predicated region
    $region37: #{discriminator_forward.9} parent=5 // pred_check
      %p304 = pneg %p303
    $region38: #{discriminator_forward.9} parent=5 // pred_check_branch
      %306 = sbr.rel (%p304) target = $region40
    $region39: #{discriminator_forward.9} parent=5 // pred_region
      %s307 = ssub.s32 %s9, 2
      // Predicated region
      $region41: #{discriminator_forward.9} parent=39 // pred_check
        %p308 = pneg %p106
      $region42: #{discriminator_forward.9} parent=39 // pred_check_branch
        %310 = sbr.rel (%p308) target = $region44
      $region43: #{discriminator_forward.9} parent=39 // pred_region
        %s311 = smul.u32 16, %s15
        %p312 = scmp.lt.s32.totalorder %s311, 63
        %s313 = scalar_select %p312, %s311, 63
        %s314 = smul.addr %s313, 4
        %s315 = scalar_lea.vmem %s3, %s314
      $region44: #{discriminator_forward.9} parent=39 // pred_fallthru
        _
    $region40: #{discriminator_forward.9} parent=5 // pred_fallthru
      _
  $region6: #{discriminator_forward.9} parent=0 // loop_footer
    %s13 = sadd.s32 1, %s9
  $region7: #{discriminator_forward.9} parent=0 // loop_footer_branch
    %8 = sbr.rel target = $region3
  $region8: #{discriminator_forward.9} parent=0 // loop_exit
    _

// kernel: discriminator_forward.10
$region0: #{discriminator_forward.10}
  #allocation0 [shape = 'u32[]', space=smem, size = 0x4, offset = 0x4, fixed_abs, tag = 'smem constant byte address 0x4 - core index']
  #allocation1 [shape = 'u32[72,128]{1,0:T(1,128)}', space=vmem, size = 0x9000, scoped, tag = 'internal scratch']
  %s0 = inlined_call_operand.vmem [shape: bf16[128,256], index: 0, kind: input, shape index: {}]
  %s1 = inlined_call_operand.vmem [shape: bf16[256,128], index: 1, kind: input, shape index: {}]
  %s2 = inlined_call_operand.vmem [shape: f32[128,128], index: 2, kind: output, shape index: {0}]
  %s3 = inlined_call_operand.vmem [shape: f32[4,2,128], index: 3, kind: output, shape index: {1}]
  %4 = xla_tuple %s2, %s3
  %s5 = sld [smem:[#allocation0]]
  $region49: #{discriminator_forward.10} parent=0
    _
  %s7 = ssub.s32 1, %s5
  %s8 = scalar_select 0, %s7, %s5
  loop: start=0, step=1, limit=6
  $region2: #{discriminator_forward.10} parent=0 // loop_pre_header
    _
  $region3: #{discriminator_forward.10} parent=0 // loop_header
    %s10 = sphi 0, %s14
    %p11 = scmp.ge.s32.totalorder %s10, 6
    %s17 = sphi 0, %s29
    %s18 = sphi 0, %s25
    %s19 = sphi 0, %s17
    %s20 = sphi 0, %s18
    %s21 = sphi 0, %s19
    %s22 = sphi 0, %s20
    %s34 = sphi 0, %s36
    %s37 = sphi 0, %s34
    %s38 = sphi 0, %s37
    %s54 = sphi 0, %s38
    %s60 = sphi 0, %s62
    %s63 = sphi 0, %s60
    %s64 = sphi 0, %s63
    %s80 = sphi 0, %s64
    %s86 = sphi 0, %s88
    %s89 = sphi 0, %s86
    %s90 = sphi 0, %s89
    %s106 = sphi 0, %s90
    %s112 = sphi 0, %s114
    %s115 = sphi 0, %s112
    %s116 = sphi 0, %s115
    %s132 = sphi 0, %s116
  $region4: #{discriminator_forward.10} parent=0 // loop_header_branch
    %13 = sbr.rel (%p11) target = $region8
  $region5: #{discriminator_forward.10} parent=0 // loop_body
    %s15 = ssub.s32 %s10, 1
    %s16 = ssub.s32 %s10, 2
    %s23 = sadd.s32 1, %s18
    %p24 = scmp.ge.s32.totalorder %s23, 1
    %s25 = scalar_select %p24, 0, %s23
    %s26 = sadd.s32 1, %s17
    %s27 = scalar_select %p24, %s26, %s17
    %p28 = scmp.ge.s32.totalorder %s27, 4
    %s29 = scalar_select %p28, 0, %s27
    %s30 = ssub.s32 %s17, %s29
    %s31 = ssub.s32 %s18, %s25
    %s32 = sor.u32 %s30, %s31
    %p33 = scmp.eq.s32.totalorder %s32, 0
    %s35 = sadd.s32 %s34, 1
    %s36 = scalar_select %p33, %s34, %s35
    %p39 = pneg %p33
    %p40 = scmp.eq.s32.totalorder %s10, 3
    %p41 = por %p39, %p40
    %p42 = scmp.ne.s32.totalorder %s34, %s37
    %p43 = scmp.eq.s32.totalorder %s10, 0
    %p44 = por %p42, %p43
    %p45 = scmp.ne.s32.totalorder %s34, %s37
    %p46 = scmp.eq.s32.totalorder %s15, 3
    %p47 = por %p45, %p46
    %p48 = scmp.ne.s32.totalorder %s37, %s38
    %p49 = scmp.eq.s32.totalorder %s15, 0
    %p50 = por %p48, %p49
    %p51 = scmp.ne.s32.totalorder %s37, %s38
    %p52 = scmp.eq.s32.totalorder %s16, 3
    %p53 = por %p51, %p52
    %p55 = scmp.ne.s32.totalorder %s38, %s54
    %p56 = scmp.eq.s32.totalorder %s16, 0
    %p57 = por %p55, %p56
    %s58 = ssub.s32 %s18, %s25
    %p59 = scmp.eq.s32.totalorder %s58, 0
    %s61 = sadd.s32 %s60, 1
    %s62 = scalar_select %p59, %s60, %s61
    %p65 = pneg %p59
    %p66 = scmp.eq.s32.totalorder %s10, 3
    %p67 = por %p65, %p66
    %p68 = scmp.ne.s32.totalorder %s60, %s63
    %p69 = scmp.eq.s32.totalorder %s10, 0
    %p70 = por %p68, %p69
    %p71 = scmp.ne.s32.totalorder %s60, %s63
    %p72 = scmp.eq.s32.totalorder %s15, 3
    %p73 = por %p71, %p72
    %p74 = scmp.ne.s32.totalorder %s63, %s64
    %p75 = scmp.eq.s32.totalorder %s15, 0
    %p76 = por %p74, %p75
    %p77 = scmp.ne.s32.totalorder %s63, %s64
    %p78 = scmp.eq.s32.totalorder %s16, 3
    %p79 = por %p77, %p78
    %p81 = scmp.ne.s32.totalorder %s64, %s80
    %p82 = scmp.eq.s32.totalorder %s16, 0
    %p83 = por %p81, %p82
    %s84 = ssub.s32 %s17, %s29
    %p85 = scmp.eq.s32.totalorder %s84, 0
    %s87 = sadd.s32 %s86, 1
    %s88 = scalar_select %p85, %s86, %s87
    %p91 = pneg %p85
    %p92 = scmp.eq.s32.totalorder %s10, 3
    %p93 = por %p91, %p92
    %p94 = scmp.ne.s32.totalorder %s86, %s89
    %p95 = scmp.eq.s32.totalorder %s10, 0
    %p96 = por %p94, %p95
    %p97 = scmp.ne.s32.totalorder %s86, %s89
    %p98 = scmp.eq.s32.totalorder %s15, 3
    %p99 = por %p97, %p98
    %p100 = scmp.ne.s32.totalorder %s89, %s90
    %p101 = scmp.eq.s32.totalorder %s15, 0
    %p102 = por %p100, %p101
    %p103 = scmp.ne.s32.totalorder %s89, %s90
    %p104 = scmp.eq.s32.totalorder %s16, 3
    %p105 = por %p103, %p104
    %p107 = scmp.ne.s32.totalorder %s90, %s106
    %p108 = scmp.eq.s32.totalorder %s16, 0
    %p109 = por %p107, %p108
    %s110 = ssub.s32 %s17, %s29
    %p111 = scmp.eq.s32.totalorder %s110, 0
    %s113 = sadd.s32 %s112, 1
    %s114 = scalar_select %p111, %s112, %s113
    %p117 = pneg %p111
    %p118 = scmp.eq.s32.totalorder %s10, 3
    %p119 = por %p117, %p118
    %p120 = scmp.ne.s32.totalorder %s112, %s115
    %p121 = scmp.eq.s32.totalorder %s10, 0
    %p122 = por %p120, %p121
    %p123 = scmp.ne.s32.totalorder %s112, %s115
    %p124 = scmp.eq.s32.totalorder %s15, 3
    %p125 = por %p123, %p124
    %p126 = scmp.ne.s32.totalorder %s115, %s116
    %p127 = scmp.eq.s32.totalorder %s15, 0
    %p128 = por %p126, %p127
    %p129 = scmp.ne.s32.totalorder %s115, %s116
    %p130 = scmp.eq.s32.totalorder %s16, 3
    %p131 = por %p129, %p130
    %p133 = scmp.ne.s32.totalorder %s116, %s132
    %p134 = scmp.eq.s32.totalorder %s16, 0
    %p135 = por %p133, %p134
    %p136 = scmp.le.s32.totalorder 1, %s10
    %p137 = scmp.lt.s32.totalorder %s10, 5
    %p138 = pnand %p136, %p137
    %p139 = pneg %p138
    // Predicated region
    $region9: #{discriminator_forward.10} parent=5 // pred_check
      _
    $region10: #{discriminator_forward.10} parent=5 // pred_check_branch
      %141 = sbr.rel (%p138) target = $region12
    $region11: #{discriminator_forward.10} parent=5 // pred_region
      %s142 = ssub.s32 %s10, 1
      // Predicated region
      $region13: #{discriminator_forward.10} parent=11 // pred_check
        %p143 = pneg %p76
      $region14: #{discriminator_forward.10} parent=11 // pred_check_branch
        %145 = sbr.rel (%p143) target = $region16
      $region15: #{discriminator_forward.10} parent=11 // pred_region
        %s146 = smul.u32 32, %s20
        %p147 = scmp.lt.s32.totalorder %s146, 31
        %s148 = scalar_select %p147, %s146, 31
        %s149 = smul.addr %s148, 4
        %s150 = scalar_lea.vmem %s1, %s149
        %s151 = smul.u32 32, %s20
      $region16: #{discriminator_forward.10} parent=11 // pred_fallthru
        _
    $region12: #{discriminator_forward.10} parent=5 // pred_fallthru
      _
    %p152 = scmp.lt.s32.totalorder %s10, 4
    // Predicated region
    $region17: #{discriminator_forward.10} parent=5 // pred_check
      %p153 = pneg %p152
    $region18: #{discriminator_forward.10} parent=5 // pred_check_branch
      %155 = sbr.rel (%p153) target = $region20
    $region19: #{discriminator_forward.10} parent=5 // pred_region
      // Predicated region
      $region21: #{discriminator_forward.10} parent=19 // pred_check
        %p156 = pneg %p44
      $region22: #{discriminator_forward.10} parent=19 // pred_check_branch
        %158 = sbr.rel (%p156) target = $region24
      $region23: #{discriminator_forward.10} parent=19 // pred_region
        %s159 = smul.u32 4, %s17
        %s160 = smul.u32 2, %s18
        %p161 = scmp.lt.s32.totalorder %s159, 15
        %s162 = scalar_select %p161, %s159, 15
        %p163 = scmp.lt.s32.totalorder %s160, 1
        %s164 = scalar_select %p163, %s160, 1
        %s165 = smul.addr %s162, 2
        %s166 = sadd.s32 %s164, %s165
        %s167 = smul.addr %s166, 4
        %s168 = scalar_lea.vmem %s0, %s167
        %s169 = smul.u32 4, %s17
        %s170 = smul.u32 2, %s18
      $region24: #{discriminator_forward.10} parent=19 // pred_fallthru
        _
    $region20: #{discriminator_forward.10} parent=5 // pred_fallthru
      _
    %p171 = scmp.le.s32.totalorder 1, %s10
    %p172 = scmp.lt.s32.totalorder %s10, 5
    %p173 = pnand %p171, %p172
    %p174 = pneg %p173
    // Predicated region
    $region25: #{discriminator_forward.10} parent=5 // pred_check
      _
    $region26: #{discriminator_forward.10} parent=5 // pred_check_branch
      %176 = sbr.rel (%p173) target = $region28
    $region27: #{discriminator_forward.10} parent=5 // pred_region
      %s177 = ssub.s32 %s10, 1
      %s178 = smul.u32 4, %s19
      %s179 = smul.u32 2, %s20
      %p180 = scmp.lt.s32.totalorder %s178, 15
      %s181 = scalar_select %p180, %s178, 15
      %p182 = scmp.lt.s32.totalorder %s179, 1
      %s183 = scalar_select %p182, %s179, 1
      %s184 = smul.addr %s181, 2
      %s185 = sadd.s32 %s183, %s184
      %s186 = smul.addr %s185, 4
      %s187 = scalar_lea.vmem %s0, %s186
      %p188 = pneg %p50
      %p189 = pneg %p47
      %s190 = smul.u32 32, %s20
      %p191 = scmp.lt.s32.totalorder %s190, 31
      %s192 = scalar_select %p191, %s190, 31
      %s193 = smul.addr %s192, 4
      %s194 = scalar_lea.vmem %s1, %s193
      %p195 = pneg %p76
      %p196 = pneg %p73
      %p197 = pneg %p102
      %p198 = pneg %p99
      %s199 = smul.u32 4, %s19
      %p200 = scmp.lt.s32.totalorder %s199, 15
      %s201 = scalar_select %p200, %s199, 15
      %s202 = smul.addr %s201, 8
      %s203 = scalar_lea.vmem %s2, %s202
      %p204 = pneg %p128
      %p205 = pneg %p125
      %p206 = scmp.lt.s32.totalorder %s19, 3
      %s207 = scalar_select %p206, %s19, 3
      %s208 = smul.addr %s207, 2
      %s209 = scalar_lea.vmem %s3, %s208
      %s210 = smul.u32 4, %s19
      %s211 = smul.u32 2, %s20
      %p212 = scmp.lt.s32.totalorder %s210, 15
      %s213 = scalar_select %p212, %s210, 15
      %p214 = scmp.lt.s32.totalorder %s211, 1
      %s215 = scalar_select %p214, %s211, 1
      %s216 = smul.addr %s213, 2
      %s217 = sadd.s32 %s215, %s216
      %s218 = smul.addr %s217, 4
      %s219 = scalar_lea.vmem %s0, %s218
      %s220 = smul.u32 4, %s19
      %s221 = smul.u32 2, %s20
      %s222 = smul.u32 32, %s20
      %p223 = scmp.lt.s32.totalorder %s222, 31
      %s224 = scalar_select %p223, %s222, 31
      %s225 = smul.addr %s224, 4
      %s226 = scalar_lea.vmem %s1, %s225
      %s227 = smul.u32 32, %s20
      %s228 = smul.u32 4, %s19
      %p229 = scmp.lt.s32.totalorder %s228, 15
      %s230 = scalar_select %p229, %s228, 15
      %s231 = smul.addr %s230, 8
      %s232 = scalar_lea.vmem %s2, %s231
      %s233 = smul.u32 4, %s19
      %p234 = scmp.lt.s32.totalorder %s19, 3
      %s235 = scalar_select %p234, %s19, 3
      %s236 = smul.addr %s235, 2
      %s237 = scalar_lea.vmem %s3, %s236
      %v238 = vld [vmem:[%s219] sm:$0xff]
      %v239 = vld [vmem:[%s219 + $0x8] sm:$0xff]
      %v240 = vld [vmem:[%s219 + $0x10] sm:$0xff]
      %v241 = vld [vmem:[%s219 + $0x18] sm:$0xff]
      %v242 = vld [vmem:[%s226] sm:$0xf]
      %v243 = vld [vmem:[%s226 + $0x4] sm:$0xf]
      %v244 = vld [vmem:[%s226 + $0x8] sm:$0xf]
      %v245 = vld [vmem:[%s226 + $0xc] sm:$0xf]
      %v246 = vld [vmem:[%s226 + $0x10] sm:$0xf]
      %v247 = vld [vmem:[%s226 + $0x14] sm:$0xf]
      %v248 = vld [vmem:[%s226 + $0x18] sm:$0xf]
      %v249 = vld [vmem:[%s226 + $0x1c] sm:$0xf]
      %v250 = vld [vmem:[%s226 + $0x20] sm:$0xf]
      %v251 = vld [vmem:[%s226 + $0x24] sm:$0xf]
      %v252 = vld [vmem:[%s226 + $0x28] sm:$0xf]
      %v253 = vld [vmem:[%s226 + $0x2c] sm:$0xf]
      %v254 = vld [vmem:[%s226 + $0x30] sm:$0xf]
      %v255 = vld [vmem:[%s226 + $0x34] sm:$0xf]
      %v256 = vld [vmem:[%s226 + $0x38] sm:$0xf]
      %v257 = vld [vmem:[%s226 + $0x3c] sm:$0xf]
      %v258 = vld [vmem:[%s226 + $0x40] sm:$0xf]
      %v259 = vld [vmem:[%s226 + $0x44] sm:$0xf]
      %v260 = vld [vmem:[%s226 + $0x48] sm:$0xf]
      %v261 = vld [vmem:[%s226 + $0x4c] sm:$0xf]
      %v262 = vld [vmem:[%s226 + $0x50] sm:$0xf]
      %v263 = vld [vmem:[%s226 + $0x54] sm:$0xf]
      %v264 = vld [vmem:[%s226 + $0x58] sm:$0xf]
      %v265 = vld [vmem:[%s226 + $0x5c] sm:$0xf]
      %v266 = vld [vmem:[%s226 + $0x60] sm:$0xf]
      %v267 = vld [vmem:[%s226 + $0x64] sm:$0xf]
      %v268 = vld [vmem:[%s226 + $0x68] sm:$0xf]
      %v269 = vld [vmem:[%s226 + $0x6c] sm:$0xf]
      %v270 = vld [vmem:[%s226 + $0x70] sm:$0xf]
      %v271 = vld [vmem:[%s226 + $0x74] sm:$0xf]
      %v272 = vld [vmem:[%s226 + $0x78] sm:$0xf]
      %v273 = vld [vmem:[%s226 + $0x7c] sm:$0xf]
      %v278 = vunpack.c.l.b16 %v238
      %v279 = vunpack.c.h.b16 %v238
      %v280 = vunpack.c.l.b16 %v239
      %v281 = vunpack.c.h.b16 %v239
      %v282 = vunpack.c.l.b16 %v240
      %v283 = vunpack.c.h.b16 %v240
      %v284 = vunpack.c.l.b16 %v241
      %v285 = vunpack.c.h.b16 %v241
      %v286 = vpack.c.b16 %v280, %v278
      %v287 = vpack.c.b16 %v281, %v279
      %v288 = vpack.c.b16 %v284, %v282
      %v289 = vpack.c.b16 %v285, %v283
      %v326 = vunpack.c.l.b16 %v242
      %v327 = vunpack.c.l.b16 %v243
      %v328 = vunpack.c.l.b16 %v244
      %v329 = vunpack.c.l.b16 %v245
      %v330 = vunpack.c.l.b16 %v246
      %v331 = vunpack.c.l.b16 %v247
      %v332 = vunpack.c.l.b16 %v248
      %v333 = vunpack.c.l.b16 %v249
      %v334 = vunpack.c.l.b16 %v250
      %v335 = vunpack.c.l.b16 %v251
      %v336 = vunpack.c.l.b16 %v252
      %v337 = vunpack.c.l.b16 %v253
      %v338 = vunpack.c.l.b16 %v254
      %v339 = vunpack.c.l.b16 %v255
      %v340 = vunpack.c.l.b16 %v256
      %v341 = vunpack.c.l.b16 %v257
      %v342 = vunpack.c.l.b16 %v258
      %v343 = vunpack.c.l.b16 %v259
      %v344 = vunpack.c.l.b16 %v260
      %v345 = vunpack.c.l.b16 %v261
      %v346 = vunpack.c.l.b16 %v262
      %v347 = vunpack.c.l.b16 %v263
      %v348 = vunpack.c.l.b16 %v264
      %v349 = vunpack.c.l.b16 %v265
      %v350 = vunpack.c.l.b16 %v266
      %v351 = vunpack.c.l.b16 %v267
      %v352 = vunpack.c.l.b16 %v268
      %v353 = vunpack.c.l.b16 %v269
      %v354 = vunpack.c.l.b16 %v270
      %v355 = vunpack.c.l.b16 %v271
      %v356 = vunpack.c.l.b16 %v272
      %v357 = vunpack.c.l.b16 %v273
      %v358 = vpack.c.b16 %v327, %v326
      %v359 = vpack.c.b16 %v329, %v328
      %v360 = vpack.c.b16 %v331, %v330
      %v361 = vpack.c.b16 %v333, %v332
      %v362 = vpack.c.b16 %v335, %v334
      %v363 = vpack.c.b16 %v337, %v336
      %v364 = vpack.c.b16 %v339, %v338
      %v365 = vpack.c.b16 %v341, %v340
      %v366 = vpack.c.b16 %v343, %v342
      %v367 = vpack.c.b16 %v345, %v344
      %v368 = vpack.c.b16 %v347, %v346
      %v369 = vpack.c.b16 %v349, %v348
      %v370 = vpack.c.b16 %v351, %v350
      %v371 = vpack.c.b16 %v353, %v352
      %v372 = vpack.c.b16 %v355, %v354
      %v373 = vpack.c.b16 %v357, %v356
      %390 = vmatpush.bf16.msra.mxu0 %v365
      %391 = vmatpush.bf16.msra.mxu0 %v364
      %392 = vmatpush.bf16.msra.mxu0 %v363
      %393 = vmatpush.bf16.msra.mxu0 %v362
      %394 = vmatpush.bf16.msra.mxu0 %v361
      %395 = vmatpush.bf16.msra.mxu0 %v360
      %396 = vmatpush.bf16.msra.mxu0 %v359
      %397 = vmatpush.bf16.msra.mxu0 %v358
      %398 = vmatmul.bf16.gmra.mxu0 %v286
      %v399 = vpop.f32.mrf.mxu0
      %v400 = vadd.f32 0.0, %v399
      %v401 = vpop.f32.mrf.mxu0
      %v402 = vadd.f32 0.0, %v401
      %403 = vmatmul.bf16.gmra.mxu0 %v288
      %v404 = vpop.f32.mrf.mxu0
      %v405 = vadd.f32 0.0, %v404
      %v406 = vpop.f32.mrf.mxu0
      %v407 = vadd.f32 0.0, %v406
      %408 = vdwg.mxu0
      %409 = vmatpush.bf16.msra.mxu0 %v373
      %410 = vmatpush.bf16.msra.mxu0 %v372
      %411 = vmatpush.bf16.msra.mxu0 %v371
      %412 = vmatpush.bf16.msra.mxu0 %v370
      %413 = vmatpush.bf16.msra.mxu0 %v369
      %414 = vmatpush.bf16.msra.mxu0 %v368
      %415 = vmatpush.bf16.msra.mxu0 %v367
      %416 = vmatpush.bf16.msra.mxu0 %v366
      %417 = vmatmul.bf16.gmra.mxu0 %v287
      %v418 = vpop.f32.mrf.mxu0
      %v419 = vadd.f32 %v400, %v418
      %v420 = vpop.f32.mrf.mxu0
      %v421 = vadd.f32 %v402, %v420
      %422 = vmatmul.bf16.gmra.mxu0 %v289
      %v423 = vpop.f32.mrf.mxu0
      %v424 = vadd.f32 %v405, %v423
      %v425 = vpop.f32.mrf.mxu0
      %v426 = vadd.f32 %v407, %v425
      %427 = vdwg.mxu0
      %v428 = vadd.f32 %v419, %v421
      %v429 = vadd.f32 %v428, %v424
      %v430 = vadd.f32 %v429, %v426
      %v431 = vrot.slane %v430, 4
      %v432 = vadd.f32 %v430, %v431
      %v433 = vrot.slane %v432, 2
      %v434 = vadd.f32 %v432, %v433
      %v435 = vrot.slane %v434, 1
      %v436 = vadd.f32 %v434, %v435
      %437 = vst [vmem:[%s237] sm:$0x1] %v436
      %v438 = vmul.f32 %v419, %v419
      %v439 = vmul.f32 %v421, %v421
      %v440 = vmul.f32 %v424, %v424
      %v441 = vmul.f32 %v426, %v426
      %v442 = vadd.f32 %v438, %v439
      %v443 = vadd.f32 %v442, %v440
      %v444 = vadd.f32 %v443, %v441
      %v445 = vrot.slane %v444, 4
      %v446 = vadd.f32 %v444, %v445
      %v447 = vrot.slane %v446, 2
      %v448 = vadd.f32 %v446, %v447
      %v449 = vrot.slane %v448, 1
      %v450 = vadd.f32 %v448, %v449
      %451 = vst [vmem:[%s237 + $0x1] sm:$0x1] %v450
      %452 = vst [vmem:[%s232] sm:$0xff] %v419
      %453 = vst [vmem:[%s232 + $0x8] sm:$0xff] %v421
      %454 = vst [vmem:[%s232 + $0x10] sm:$0xff] %v424
      %455 = vst [vmem:[%s232 + $0x18] sm:$0xff] %v426
      %s456 = smul.u32 4, %s19
      %p457 = scmp.lt.s32.totalorder %s456, 15
      %s458 = scalar_select %p457, %s456, 15
      %s459 = smul.addr %s458, 8
      %s460 = scalar_lea.vmem %s2, %s459
      %p461 = scmp.lt.s32.totalorder %s19, 3
      %s462 = scalar_select %p461, %s19, 3
      %s463 = smul.addr %s462, 2
      %s464 = scalar_lea.vmem %s3, %s463
      // Predicated region
      $region29: #{discriminator_forward.10} parent=27 // pred_check
        %p465 = pneg %p99
      $region30: #{discriminator_forward.10} parent=27 // pred_check_branch
        %467 = sbr.rel (%p465) target = $region32
      $region31: #{discriminator_forward.10} parent=27 // pred_region
        %s468 = smul.u32 4, %s19
      $region32: #{discriminator_forward.10} parent=27 // pred_fallthru
        _
      // Predicated region
      $region33: #{discriminator_forward.10} parent=27 // pred_check
        %p469 = pneg %p125
      $region34: #{discriminator_forward.10} parent=27 // pred_check_branch
        %471 = sbr.rel (%p469) target = $region36
      $region35: #{discriminator_forward.10} parent=27 // pred_region
        _
      $region36: #{discriminator_forward.10} parent=27 // pred_fallthru
        _
    $region28: #{discriminator_forward.10} parent=5 // pred_fallthru
      _
    %p472 = scmp.le.s32.totalorder 2, %s10
    // Predicated region
    $region37: #{discriminator_forward.10} parent=5 // pred_check
      %p473 = pneg %p472
    $region38: #{discriminator_forward.10} parent=5 // pred_check_branch
      %475 = sbr.rel (%p473) target = $region40
    $region39: #{discriminator_forward.10} parent=5 // pred_region
      %s476 = ssub.s32 %s10, 2
      // Predicated region
      $region41: #{discriminator_forward.10} parent=39 // pred_check
        %p477 = pneg %p105
      $region42: #{discriminator_forward.10} parent=39 // pred_check_branch
        %479 = sbr.rel (%p477) target = $region44
      $region43: #{discriminator_forward.10} parent=39 // pred_region
        %s480 = smul.u32 4, %s21
        %p481 = scmp.lt.s32.totalorder %s480, 15
        %s482 = scalar_select %p481, %s480, 15
        %s483 = smul.addr %s482, 8
        %s484 = scalar_lea.vmem %s2, %s483
      $region44: #{discriminator_forward.10} parent=39 // pred_fallthru
        _
      // Predicated region
      $region45: #{discriminator_forward.10} parent=39 // pred_check
        %p485 = pneg %p131
      $region46: #{discriminator_forward.10} parent=39 // pred_check_branch
        %487 = sbr.rel (%p485) target = $region48
      $region47: #{discriminator_forward.10} parent=39 // pred_region
        %p488 = scmp.lt.s32.totalorder %s21, 3
        %s489 = scalar_select %p488, %s21, 3
        %s490 = smul.addr %s489, 2
        %s491 = scalar_lea.vmem %s3, %s490
      $region48: #{discriminator_forward.10} parent=39 // pred_fallthru
        _
    $region40: #{discriminator_forward.10} parent=5 // pred_fallthru
      _
  $region6: #{discriminator_forward.10} parent=0 // loop_footer
    %s14 = sadd.s32 1, %s10
  $region7: #{discriminator_forward.10} parent=0 // loop_footer_branch
    %9 = sbr.rel target = $region3
  $region8: #{discriminator_forward.10} parent=0 // loop_exit
    _

// kernel: discriminator_forward.11
$region0: #{discriminator_forward.11}
  #allocation0 [shape = 'u32[]', space=smem, size = 0x4, offset = 0x4, fixed_abs, tag = 'smem constant byte address 0x4 - core index']
  #allocation1 [shape = 'u32[72,128]{1,0:T(1,128)}', space=vmem, size = 0x9000, scoped, tag = 'internal scratch']
  %s0 = inlined_call_operand.vmem [shape: f32[128,128], index: 0, kind: input, shape index: {}]
  %s1 = inlined_call_operand.vmem [shape: f32[1,128], index: 1, kind: input, shape index: {}]
  %s2 = inlined_call_operand.vmem [shape: f32[1,128], index: 2, kind: input, shape index: {}]
  %s3 = inlined_call_operand.vmem [shape: bf16[128,128], index: 3, kind: output, shape index: {}]
  %s4 = sld [smem:[#allocation0]]
  $region45: #{discriminator_forward.11} parent=0
    _
  %s6 = ssub.s32 1, %s4
  %s7 = scalar_select 0, %s6, %s4
  loop: start=0, step=1, limit=6
  $region2: #{discriminator_forward.11} parent=0 // loop_pre_header
    _
  $region3: #{discriminator_forward.11} parent=0 // loop_header
    %s9 = sphi 0, %s13
    %p10 = scmp.ge.s32.totalorder %s9, 6
    %s19 = sphi 0, %s21
    %s22 = sphi 0, %s19
    %s23 = sphi 0, %s22
    %s39 = sphi 0, %s23
    %s43 = sphi 0, %s43
    %s45 = sphi 0, %s43
    %s46 = sphi 0, %s45
    %s60 = sphi 0, %s46
    %s64 = sphi 0, %s64
    %s66 = sphi 0, %s64
    %s67 = sphi 0, %s66
    %s81 = sphi 0, %s67
    %s87 = sphi 0, %s89
    %s90 = sphi 0, %s87
    %s91 = sphi 0, %s90
    %s107 = sphi 0, %s91
  $region4: #{discriminator_forward.11} parent=0 // loop_header_branch
    %12 = sbr.rel (%p10) target = $region8
  $region5: #{discriminator_forward.11} parent=0 // loop_body
    %s14 = ssub.s32 %s9, 1
    %s15 = ssub.s32 %s9, 2
    %s16 = sadd.s32 %s9, 1
    %s17 = ssub.s32 %s9, %s16
    %p18 = scmp.eq.s32.totalorder %s17, 0
    %s20 = sadd.s32 %s19, 1
    %s21 = scalar_select %p18, %s19, %s20
    %p24 = pneg %p18
    %p25 = scmp.eq.s32.totalorder %s9, 3
    %p26 = por %p24, %p25
    %p27 = scmp.ne.s32.totalorder %s19, %s22
    %p28 = scmp.eq.s32.totalorder %s9, 0
    %p29 = por %p27, %p28
    %p30 = scmp.ne.s32.totalorder %s19, %s22
    %p31 = scmp.eq.s32.totalorder %s14, 3
    %p32 = por %p30, %p31
    %p33 = scmp.ne.s32.totalorder %s22, %s23
    %p34 = scmp.eq.s32.totalorder %s14, 0
    %p35 = por %p33, %p34
    %p36 = scmp.ne.s32.totalorder %s22, %s23
    %p37 = scmp.eq.s32.totalorder %s15, 3
    %p38 = por %p36, %p37
    %p40 = scmp.ne.s32.totalorder %s23, %s39
    %p41 = scmp.eq.s32.totalorder %s15, 0
    %p42 = por %p40, %p41
    %s44 = sadd.s32 %s43, 1
    %p47 = scmp.eq.s32.totalorder %s9, 3
    %p48 = scmp.ne.s32.totalorder %s43, %s45
    %p49 = scmp.eq.s32.totalorder %s9, 0
    %p50 = por %p48, %p49
    %p51 = scmp.ne.s32.totalorder %s43, %s45
    %p52 = scmp.eq.s32.totalorder %s14, 3
    %p53 = por %p51, %p52
    %p54 = scmp.ne.s32.totalorder %s45, %s46
    %p55 = scmp.eq.s32.totalorder %s14, 0
    %p56 = por %p54, %p55
    %p57 = scmp.ne.s32.totalorder %s45, %s46
    %p58 = scmp.eq.s32.totalorder %s15, 3
    %p59 = por %p57, %p58
    %p61 = scmp.ne.s32.totalorder %s46, %s60
    %p62 = scmp.eq.s32.totalorder %s15, 0
    %p63 = por %p61, %p62
    %s65 = sadd.s32 %s64, 1
    %p68 = scmp.eq.s32.totalorder %s9, 3
    %p69 = scmp.ne.s32.totalorder %s64, %s66
    %p70 = scmp.eq.s32.totalorder %s9, 0
    %p71 = por %p69, %p70
    %p72 = scmp.ne.s32.totalorder %s64, %s66
    %p73 = scmp.eq.s32.totalorder %s14, 3
    %p74 = por %p72, %p73
    %p75 = scmp.ne.s32.totalorder %s66, %s67
    %p76 = scmp.eq.s32.totalorder %s14, 0
    %p77 = por %p75, %p76
    %p78 = scmp.ne.s32.totalorder %s66, %s67
    %p79 = scmp.eq.s32.totalorder %s15, 3
    %p80 = por %p78, %p79
    %p82 = scmp.ne.s32.totalorder %s67, %s81
    %p83 = scmp.eq.s32.totalorder %s15, 0
    %p84 = por %p82, %p83
    %s85 = ssub.s32 %s9, %s16
    %p86 = scmp.eq.s32.totalorder %s85, 0
    %s88 = sadd.s32 %s87, 1
    %s89 = scalar_select %p86, %s87, %s88
    %p92 = pneg %p86
    %p93 = scmp.eq.s32.totalorder %s9, 3
    %p94 = por %p92, %p93
    %p95 = scmp.ne.s32.totalorder %s87, %s90
    %p96 = scmp.eq.s32.totalorder %s9, 0
    %p97 = por %p95, %p96
    %p98 = scmp.ne.s32.totalorder %s87, %s90
    %p99 = scmp.eq.s32.totalorder %s14, 3
    %p100 = por %p98, %p99
    %p101 = scmp.ne.s32.totalorder %s90, %s91
    %p102 = scmp.eq.s32.totalorder %s14, 0
    %p103 = por %p101, %p102
    %p104 = scmp.ne.s32.totalorder %s90, %s91
    %p105 = scmp.eq.s32.totalorder %s15, 3
    %p106 = por %p104, %p105
    %p108 = scmp.ne.s32.totalorder %s91, %s107
    %p109 = scmp.eq.s32.totalorder %s15, 0
    %p110 = por %p108, %p109
    %p111 = scmp.le.s32.totalorder 1, %s9
    %p112 = scmp.lt.s32.totalorder %s9, 5
    %p113 = pnand %p111, %p112
    %p114 = pneg %p113
    // Predicated region
    $region9: #{discriminator_forward.11} parent=5 // pred_check
      _
    $region10: #{discriminator_forward.11} parent=5 // pred_check_branch
      %116 = sbr.rel (%p113) target = $region12
    $region11: #{discriminator_forward.11} parent=5 // pred_region
      %s117 = ssub.s32 %s9, 1
      // Predicated region
      $region13: #{discriminator_forward.11} parent=11 // pred_check
        %p118 = pneg %p56
      $region14: #{discriminator_forward.11} parent=11 // pred_check_branch
        %120 = sbr.rel (%p118) target = $region16
      $region15: #{discriminator_forward.11} parent=11 // pred_region
        _
      $region16: #{discriminator_forward.11} parent=11 // pred_fallthru
        _
      // Predicated region
      $region17: #{discriminator_forward.11} parent=11 // pred_check
        %p121 = pneg %p77
      $region18: #{discriminator_forward.11} parent=11 // pred_check_branch
        %123 = sbr.rel (%p121) target = $region20
      $region19: #{discriminator_forward.11} parent=11 // pred_region
        _
      $region20: #{discriminator_forward.11} parent=11 // pred_fallthru
        _
    $region12: #{discriminator_forward.11} parent=5 // pred_fallthru
      _
    %p124 = scmp.lt.s32.totalorder %s9, 4
    // Predicated region
    $region21: #{discriminator_forward.11} parent=5 // pred_check
      %p125 = pneg %p124
    $region22: #{discriminator_forward.11} parent=5 // pred_check_branch
      %127 = sbr.rel (%p125) target = $region24
    $region23: #{discriminator_forward.11} parent=5 // pred_region
      // Predicated region
      $region25: #{discriminator_forward.11} parent=23 // pred_check
        %p128 = pneg %p29
      $region26: #{discriminator_forward.11} parent=23 // pred_check_branch
        %130 = sbr.rel (%p128) target = $region28
      $region27: #{discriminator_forward.11} parent=23 // pred_region
        %s131 = smul.u32 4, %s9
        %p132 = scmp.lt.s32.totalorder %s131, 15
        %s133 = scalar_select %p132, %s131, 15
        %s134 = smul.addr %s133, 8
        %s135 = scalar_lea.vmem %s0, %s134
        %s136 = smul.u32 4, %s9
      $region28: #{discriminator_forward.11} parent=23 // pred_fallthru
        _
    $region24: #{discriminator_forward.11} parent=5 // pred_fallthru
      _
    %p137 = scmp.le.s32.totalorder 1, %s9
    %p138 = scmp.lt.s32.totalorder %s9, 5
    %p139 = pnand %p137, %p138
    %p140 = pneg %p139
    // Predicated region
    $region29: #{discriminator_forward.11} parent=5 // pred_check
      _
    $region30: #{discriminator_forward.11} parent=5 // pred_check_branch
      %142 = sbr.rel (%p139) target = $region32
    $region31: #{discriminator_forward.11} parent=5 // pred_region
      %s143 = ssub.s32 %s9, 1
      %s144 = smul.u32 4, %s14
      %p145 = scmp.lt.s32.totalorder %s144, 15
      %s146 = scalar_select %p145, %s144, 15
      %s147 = smul.addr %s146, 8
      %s148 = scalar_lea.vmem %s0, %s147
      %p149 = pneg %p35
      %p150 = pneg %p32
      %p151 = pneg %p56
      %p152 = pneg %p53
      %p153 = pneg %p77
      %p154 = pneg %p74
      %p155 = pneg %p103
      %p156 = pneg %p100
      %s157 = smul.u32 4, %s14
      %p158 = scmp.lt.s32.totalorder %s157, 15
      %s159 = scalar_select %p158, %s157, 15
      %s160 = smul.addr %s159, 4
      %s161 = scalar_lea.vmem %s3, %s160
      %s162 = smul.u32 4, %s14
      %p163 = scmp.lt.s32.totalorder %s162, 15
      %s164 = scalar_select %p163, %s162, 15
      %s165 = smul.addr %s164, 8
      %s166 = scalar_lea.vmem %s0, %s165
      %s167 = smul.u32 4, %s14
      %s168 = smul.u32 4, %s14
      %p169 = scmp.lt.s32.totalorder %s168, 15
      %s170 = scalar_select %p169, %s168, 15
      %s171 = smul.addr %s170, 4
      %s172 = scalar_lea.vmem %s3, %s171
      %s173 = smul.u32 4, %s14
      %v174 = vld [vmem:[%s166] sm:$0xff]
      %v175 = vld [vmem:[%s166 + $0x8] sm:$0xff]
      %v176 = vld [vmem:[%s166 + $0x10] sm:$0xff]
      %v177 = vld [vmem:[%s166 + $0x18] sm:$0xff]
      %v178 = vld [vmem:[%s1] sm:$0x1]
      %v180 = vperm.slane %v178, 0
      %v182 = vmul.f32 %v174, %v180
      %v183 = vmul.f32 %v175, %v180
      %v184 = vmul.f32 %v176, %v180
      %v185 = vmul.f32 %v177, %v180
      %v186 = vld [vmem:[%s2] sm:$0x1]
      %v188 = vperm.slane %v186, 0
      %v190 = vadd.f32 %v182, %v188
      %v191 = vadd.f32 %v183, %v188
      %v192 = vadd.f32 %v184, %v188
      %v193 = vadd.f32 %v185, %v188
      %v194 = vmul.f32 %v190, 0.2
      %v195 = vmul.f32 %v191, 0.2
      %v196 = vmul.f32 %v192, 0.2
      %v197 = vmul.f32 %v193, 0.2
      %v198 = vmax.f32 %v190, %v194
      %v199 = vmax.f32 %v191, %v195
      %v200 = vmax.f32 %v192, %v196
      %v201 = vmax.f32 %v193, %v197
      %v202 = vpack.c.bf16 %v198, %v198
      %v203 = vpack.c.bf16 %v199, %v199
      %v204 = vpack.c.bf16 %v200, %v200
      %v205 = vpack.c.bf16 %v201, %v201
      %206 = vst [vmem:[%s172] sm:$0xf] %v202
      %207 = vst [vmem:[%s172 + $0x4] sm:$0xf] %v203
      %208 = vst [vmem:[%s172 + $0x8] sm:$0xf] %v204
      %209 = vst [vmem:[%s172 + $0xc] sm:$0xf] %v205
      %s210 = smul.u32 4, %s14
      %p211 = scmp.lt.s32.totalorder %s210, 15
      %s212 = scalar_select %p211, %s210, 15
      %s213 = smul.addr %s212, 4
      %s214 = scalar_lea.vmem %s3, %s213
      // Predicated region
      $region33: #{discriminator_forward.11} parent=31 // pred_check
        %p215 = pneg %p100
      $region34: #{discriminator_forward.11} parent=31 // pred_check_branch
        %217 = sbr.rel (%p215) target = $region36
      $region35: #{discriminator_forward.11} parent=31 // pred_region
        %s218 = smul.u32 4, %s14
      $region36: #{discriminator_forward.11} parent=31 // pred_fallthru
        _
    $region32: #{discriminator_forward.11} parent=5 // pred_fallthru
      _
    %p219 = scmp.le.s32.totalorder 2, %s9
    // Predicated region
    $region37: #{discriminator_forward.11} parent=5 // pred_check
      %p220 = pneg %p219
    $region38: #{discriminator_forward.11} parent=5 // pred_check_branch
      %222 = sbr.rel (%p220) target = $region40
    $region39: #{discriminator_forward.11} parent=5 // pred_region
      %s223 = ssub.s32 %s9, 2
      // Predicated region
      $region41: #{discriminator_forward.11} parent=39 // pred_check
        %p224 = pneg %p106
      $region42: #{discriminator_forward.11} parent=39 // pred_check_branch
        %226 = sbr.rel (%p224) target = $region44
      $region43: #{discriminator_forward.11} parent=39 // pred_region
        %s227 = smul.u32 4, %s15
        %p228 = scmp.lt.s32.totalorder %s227, 15
        %s229 = scalar_select %p228, %s227, 15
        %s230 = smul.addr %s229, 4
        %s231 = scalar_lea.vmem %s3, %s230
      $region44: #{discriminator_forward.11} parent=39 // pred_fallthru
        _
    $region40: #{discriminator_forward.11} parent=5 // pred_fallthru
      _
  $region6: #{discriminator_forward.11} parent=0 // loop_footer
    %s13 = sadd.s32 1, %s9
  $region7: #{discriminator_forward.11} parent=0 // loop_footer_branch
    %8 = sbr.rel target = $region3
  $region8: #{discriminator_forward.11} parent=0 // loop_exit
    _

// kernel: discriminator_forward.13
$region0: #{discriminator_forward.13}
  #allocation0 [shape = 'u32[]', space=smem, size = 0x4, offset = 0x4, fixed_abs, tag = 'smem constant byte address 0x4 - core index']
  #allocation1 [shape = 'u32[72,128]{1,0:T(1,128)}', space=vmem, size = 0x9000, scoped, tag = 'internal scratch']
  %s0 = inlined_call_operand.vmem [shape: f32[32,128], index: 0, kind: input, shape index: {}]
  %s1 = inlined_call_operand.vmem [shape: f32[1,128], index: 1, kind: input, shape index: {}]
  %s2 = inlined_call_operand.vmem [shape: f32[1,128], index: 2, kind: input, shape index: {}]
  %s3 = inlined_call_operand.vmem [shape: bf16[32,128], index: 3, kind: output, shape index: {}]
  %s4 = sld [smem:[#allocation0]]
  $region45: #{discriminator_forward.13} parent=0
    _
  %s6 = ssub.s32 1, %s4
  %s7 = scalar_select 0, %s6, %s4
  loop: start=0, step=1, limit=4
  $region2: #{discriminator_forward.13} parent=0 // loop_pre_header
    _
  $region3: #{discriminator_forward.13} parent=0 // loop_header
    %s9 = sphi 0, %s13
    %p10 = scmp.ge.s32.totalorder %s9, 4
    %s19 = sphi 0, %s21
    %s22 = sphi 0, %s19
    %s23 = sphi 0, %s22
    %s39 = sphi 0, %s23
    %s43 = sphi 0, %s43
    %s45 = sphi 0, %s43
    %s46 = sphi 0, %s45
    %s60 = sphi 0, %s46
    %s64 = sphi 0, %s64
    %s66 = sphi 0, %s64
    %s67 = sphi 0, %s66
    %s81 = sphi 0, %s67
    %s87 = sphi 0, %s89
    %s90 = sphi 0, %s87
    %s91 = sphi 0, %s90
    %s107 = sphi 0, %s91
  $region4: #{discriminator_forward.13} parent=0 // loop_header_branch
    %12 = sbr.rel (%p10) target = $region8
  $region5: #{discriminator_forward.13} parent=0 // loop_body
    %s14 = ssub.s32 %s9, 1
    %s15 = ssub.s32 %s9, 2
    %s16 = sadd.s32 %s9, 1
    %s17 = ssub.s32 %s9, %s16
    %p18 = scmp.eq.s32.totalorder %s17, 0
    %s20 = sadd.s32 %s19, 1
    %s21 = scalar_select %p18, %s19, %s20
    %p24 = pneg %p18
    %p25 = scmp.eq.s32.totalorder %s9, 1
    %p26 = por %p24, %p25
    %p27 = scmp.ne.s32.totalorder %s19, %s22
    %p28 = scmp.eq.s32.totalorder %s9, 0
    %p29 = por %p27, %p28
    %p30 = scmp.ne.s32.totalorder %s19, %s22
    %p31 = scmp.eq.s32.totalorder %s14, 1
    %p32 = por %p30, %p31
    %p33 = scmp.ne.s32.totalorder %s22, %s23
    %p34 = scmp.eq.s32.totalorder %s14, 0
    %p35 = por %p33, %p34
    %p36 = scmp.ne.s32.totalorder %s22, %s23
    %p37 = scmp.eq.s32.totalorder %s15, 1
    %p38 = por %p36, %p37
    %p40 = scmp.ne.s32.totalorder %s23, %s39
    %p41 = scmp.eq.s32.totalorder %s15, 0
    %p42 = por %p40, %p41
    %s44 = sadd.s32 %s43, 1
    %p47 = scmp.eq.s32.totalorder %s9, 1
    %p48 = scmp.ne.s32.totalorder %s43, %s45
    %p49 = scmp.eq.s32.totalorder %s9, 0
    %p50 = por %p48, %p49
    %p51 = scmp.ne.s32.totalorder %s43, %s45
    %p52 = scmp.eq.s32.totalorder %s14, 1
    %p53 = por %p51, %p52
    %p54 = scmp.ne.s32.totalorder %s45, %s46
    %p55 = scmp.eq.s32.totalorder %s14, 0
    %p56 = por %p54, %p55
    %p57 = scmp.ne.s32.totalorder %s45, %s46
    %p58 = scmp.eq.s32.totalorder %s15, 1
    %p59 = por %p57, %p58
    %p61 = scmp.ne.s32.totalorder %s46, %s60
    %p62 = scmp.eq.s32.totalorder %s15, 0
    %p63 = por %p61, %p62
    %s65 = sadd.s32 %s64, 1
    %p68 = scmp.eq.s32.totalorder %s9, 1
    %p69 = scmp.ne.s32.totalorder %s64, %s66
    %p70 = scmp.eq.s32.totalorder %s9, 0
    %p71 = por %p69, %p70
    %p72 = scmp.ne.s32.totalorder %s64, %s66
    %p73 = scmp.eq.s32.totalorder %s14, 1
    %p74 = por %p72, %p73
    %p75 = scmp.ne.s32.totalorder %s66, %s67
    %p76 = scmp.eq.s32.totalorder %s14, 0
    %p77 = por %p75, %p76
    %p78 = scmp.ne.s32.totalorder %s66, %s67
    %p79 = scmp.eq.s32.totalorder %s15, 1
    %p80 = por %p78, %p79
    %p82 = scmp.ne.s32.totalorder %s67, %s81
    %p83 = scmp.eq.s32.totalorder %s15, 0
    %p84 = por %p82, %p83
    %s85 = ssub.s32 %s9, %s16
    %p86 = scmp.eq.s32.totalorder %s85, 0
    %s88 = sadd.s32 %s87, 1
    %s89 = scalar_select %p86, %s87, %s88
    %p92 = pneg %p86
    %p93 = scmp.eq.s32.totalorder %s9, 1
    %p94 = por %p92, %p93
    %p95 = scmp.ne.s32.totalorder %s87, %s90
    %p96 = scmp.eq.s32.totalorder %s9, 0
    %p97 = por %p95, %p96
    %p98 = scmp.ne.s32.totalorder %s87, %s90
    %p99 = scmp.eq.s32.totalorder %s14, 1
    %p100 = por %p98, %p99
    %p101 = scmp.ne.s32.totalorder %s90, %s91
    %p102 = scmp.eq.s32.totalorder %s14, 0
    %p103 = por %p101, %p102
    %p104 = scmp.ne.s32.totalorder %s90, %s91
    %p105 = scmp.eq.s32.totalorder %s15, 1
    %p106 = por %p104, %p105
    %p108 = scmp.ne.s32.totalorder %s91, %s107
    %p109 = scmp.eq.s32.totalorder %s15, 0
    %p110 = por %p108, %p109
    %p111 = scmp.le.s32.totalorder 1, %s9
    %p112 = scmp.lt.s32.totalorder %s9, 3
    %p113 = pnand %p111, %p112
    %p114 = pneg %p113
    // Predicated region
    $region9: #{discriminator_forward.13} parent=5 // pred_check
      _
    $region10: #{discriminator_forward.13} parent=5 // pred_check_branch
      %116 = sbr.rel (%p113) target = $region12
    $region11: #{discriminator_forward.13} parent=5 // pred_region
      %s117 = ssub.s32 %s9, 1
      // Predicated region
      $region13: #{discriminator_forward.13} parent=11 // pred_check
        %p118 = pneg %p56
      $region14: #{discriminator_forward.13} parent=11 // pred_check_branch
        %120 = sbr.rel (%p118) target = $region16
      $region15: #{discriminator_forward.13} parent=11 // pred_region
        _
      $region16: #{discriminator_forward.13} parent=11 // pred_fallthru
        _
      // Predicated region
      $region17: #{discriminator_forward.13} parent=11 // pred_check
        %p121 = pneg %p77
      $region18: #{discriminator_forward.13} parent=11 // pred_check_branch
        %123 = sbr.rel (%p121) target = $region20
      $region19: #{discriminator_forward.13} parent=11 // pred_region
        _
      $region20: #{discriminator_forward.13} parent=11 // pred_fallthru
        _
    $region12: #{discriminator_forward.13} parent=5 // pred_fallthru
      _
    %p124 = scmp.lt.s32.totalorder %s9, 2
    // Predicated region
    $region21: #{discriminator_forward.13} parent=5 // pred_check
      %p125 = pneg %p124
    $region22: #{discriminator_forward.13} parent=5 // pred_check_branch
      %127 = sbr.rel (%p125) target = $region24
    $region23: #{discriminator_forward.13} parent=5 // pred_region
      // Predicated region
      $region25: #{discriminator_forward.13} parent=23 // pred_check
        %p128 = pneg %p29
      $region26: #{discriminator_forward.13} parent=23 // pred_check_branch
        %130 = sbr.rel (%p128) target = $region28
      $region27: #{discriminator_forward.13} parent=23 // pred_region
        %s131 = smul.u32 2, %s9
        %p132 = scmp.lt.s32.totalorder %s131, 3
        %s133 = scalar_select %p132, %s131, 3
        %s134 = smul.addr %s133, 8
        %s135 = scalar_lea.vmem %s0, %s134
        %s136 = smul.u32 2, %s9
      $region28: #{discriminator_forward.13} parent=23 // pred_fallthru
        _
    $region24: #{discriminator_forward.13} parent=5 // pred_fallthru
      _
    %p137 = scmp.le.s32.totalorder 1, %s9
    %p138 = scmp.lt.s32.totalorder %s9, 3
    %p139 = pnand %p137, %p138
    %p140 = pneg %p139
    // Predicated region
    $region29: #{discriminator_forward.13} parent=5 // pred_check
      _
    $region30: #{discriminator_forward.13} parent=5 // pred_check_branch
      %142 = sbr.rel (%p139) target = $region32
    $region31: #{discriminator_forward.13} parent=5 // pred_region
      %s143 = ssub.s32 %s9, 1
      %s144 = smul.u32 2, %s14
      %p145 = scmp.lt.s32.totalorder %s144, 3
      %s146 = scalar_select %p145, %s144, 3
      %s147 = smul.addr %s146, 8
      %s148 = scalar_lea.vmem %s0, %s147
      %p149 = pneg %p35
      %p150 = pneg %p32
      %p151 = pneg %p56
      %p152 = pneg %p53
      %p153 = pneg %p77
      %p154 = pneg %p74
      %p155 = pneg %p103
      %p156 = pneg %p100
      %s157 = smul.u32 2, %s14
      %p158 = scmp.lt.s32.totalorder %s157, 3
      %s159 = scalar_select %p158, %s157, 3
      %s160 = smul.addr %s159, 4
      %s161 = scalar_lea.vmem %s3, %s160
      %s162 = smul.u32 2, %s14
      %p163 = scmp.lt.s32.totalorder %s162, 3
      %s164 = scalar_select %p163, %s162, 3
      %s165 = smul.addr %s164, 8
      %s166 = scalar_lea.vmem %s0, %s165
      %s167 = smul.u32 2, %s14
      %s168 = smul.u32 2, %s14
      %p169 = scmp.lt.s32.totalorder %s168, 3
      %s170 = scalar_select %p169, %s168, 3
      %s171 = smul.addr %s170, 4
      %s172 = scalar_lea.vmem %s3, %s171
      %s173 = smul.u32 2, %s14
      %v174 = vld [vmem:[%s166] sm:$0xff]
      %v175 = vld [vmem:[%s166 + $0x8] sm:$0xff]
      %v176 = vld [vmem:[%s1] sm:$0x1]
      %v178 = vperm.slane %v176, 0
      %v180 = vmul.f32 %v174, %v178
      %v181 = vmul.f32 %v175, %v178
      %v182 = vld [vmem:[%s2] sm:$0x1]
      %v184 = vperm.slane %v182, 0
      %v186 = vadd.f32 %v180, %v184
      %v187 = vadd.f32 %v181, %v184
      %v188 = vmul.f32 %v186, 0.2
      %v189 = vmul.f32 %v187, 0.2
      %v190 = vmax.f32 %v186, %v188
      %v191 = vmax.f32 %v187, %v189
      %v192 = vpack.c.bf16 %v190, %v190
      %v193 = vpack.c.bf16 %v191, %v191
      %194 = vst [vmem:[%s172] sm:$0xf] %v192
      %195 = vst [vmem:[%s172 + $0x4] sm:$0xf] %v193
      %s196 = smul.u32 2, %s14
      %p197 = scmp.lt.s32.totalorder %s196, 3
      %s198 = scalar_select %p197, %s196, 3
      %s199 = smul.addr %s198, 4
      %s200 = scalar_lea.vmem %s3, %s199
      // Predicated region
      $region33: #{discriminator_forward.13} parent=31 // pred_check
        %p201 = pneg %p100
      $region34: #{discriminator_forward.13} parent=31 // pred_check_branch
        %203 = sbr.rel (%p201) target = $region36
      $region35: #{discriminator_forward.13} parent=31 // pred_region
        %s204 = smul.u32 2, %s14
      $region36: #{discriminator_forward.13} parent=31 // pred_fallthru
        _
    $region32: #{discriminator_forward.13} parent=5 // pred_fallthru
      _
    %p205 = scmp.le.s32.totalorder 2, %s9
    // Predicated region
    $region37: #{discriminator_forward.13} parent=5 // pred_check
      %p206 = pneg %p205
    $region38: #{discriminator_forward.13} parent=5 // pred_check_branch
      %208 = sbr.rel (%p206) target = $region40
    $region39: #{discriminator_forward.13} parent=5 // pred_region
      %s209 = ssub.s32 %s9, 2
      // Predicated region
      $region41: #{discriminator_forward.13} parent=39 // pred_check
        %p210 = pneg %p106
      $region42: #{discriminator_forward.13} parent=39 // pred_check_branch
        %212 = sbr.rel (%p210) target = $region44
      $region43: #{discriminator_forward.13} parent=39 // pred_region
        %s213 = smul.u32 2, %s15
        %p214 = scmp.lt.s32.totalorder %s213, 3
        %s215 = scalar_select %p214, %s213, 3
        %s216 = smul.addr %s215, 4
        %s217 = scalar_lea.vmem %s3, %s216
      $region44: #{discriminator_forward.13} parent=39 // pred_fallthru
        _
    $region40: #{discriminator_forward.13} parent=5 // pred_fallthru
      _
  $region6: #{discriminator_forward.13} parent=0 // loop_footer
    %s13 = sadd.s32 1, %s9
  $region7: #{discriminator_forward.13} parent=0 // loop_footer_branch
    %8 = sbr.rel target = $region3
  $region8: #{discriminator_forward.13} parent=0 // loop_exit
    _

// kernel: discriminator_forward.12
$region0: #{discriminator_forward.12}
  #allocation0 [shape = 'u32[]', space=smem, size = 0x4, offset = 0x4, fixed_abs, tag = 'smem constant byte address 0x4 - core index']
  #allocation1 [shape = 'u32[72,128]{1,0:T(1,128)}', space=vmem, size = 0x9000, scoped, tag = 'internal scratch']
  %s0 = inlined_call_operand.vmem [shape: bf16[32,512], index: 0, kind: input, shape index: {}]
  %s1 = inlined_call_operand.vmem [shape: bf16[512,128], index: 1, kind: input, shape index: {}]
  %s2 = inlined_call_operand.vmem [shape: f32[32,128], index: 2, kind: output, shape index: {0}]
  %s3 = inlined_call_operand.vmem [shape: f32[2,2,128], index: 3, kind: output, shape index: {1}]
  %4 = xla_tuple %s2, %s3
  %s5 = sld [smem:[#allocation0]]
  $region49: #{discriminator_forward.12} parent=0
    _
  %s7 = ssub.s32 1, %s5
  %s8 = scalar_select 0, %s7, %s5
  loop: start=0, step=1, limit=4
  $region2: #{discriminator_forward.12} parent=0 // loop_pre_header
    _
  $region3: #{discriminator_forward.12} parent=0 // loop_header
    %s10 = sphi 0, %s14
    %p11 = scmp.ge.s32.totalorder %s10, 4
    %s17 = sphi 0, %s29
    %s18 = sphi 0, %s25
    %s19 = sphi 0, %s17
    %s20 = sphi 0, %s18
    %s21 = sphi 0, %s19
    %s22 = sphi 0, %s20
    %s34 = sphi 0, %s36
    %s37 = sphi 0, %s34
    %s38 = sphi 0, %s37
    %s54 = sphi 0, %s38
    %s60 = sphi 0, %s62
    %s63 = sphi 0, %s60
    %s64 = sphi 0, %s63
    %s80 = sphi 0, %s64
    %s86 = sphi 0, %s88
    %s89 = sphi 0, %s86
    %s90 = sphi 0, %s89
    %s106 = sphi 0, %s90
    %s112 = sphi 0, %s114
    %s115 = sphi 0, %s112
    %s116 = sphi 0, %s115
    %s132 = sphi 0, %s116
  $region4: #{discriminator_forward.12} parent=0 // loop_header_branch
    %13 = sbr.rel (%p11) target = $region8
  $region5: #{discriminator_forward.12} parent=0 // loop_body
    %s15 = ssub.s32 %s10, 1
    %s16 = ssub.s32 %s10, 2
    %s23 = sadd.s32 1, %s18
    %p24 = scmp.ge.s32.totalorder %s23, 1
    %s25 = scalar_select %p24, 0, %s23
    %s26 = sadd.s32 1, %s17
    %s27 = scalar_select %p24, %s26, %s17
    %p28 = scmp.ge.s32.totalorder %s27, 2
    %s29 = scalar_select %p28, 0, %s27
    %s30 = ssub.s32 %s17, %s29
    %s31 = ssub.s32 %s18, %s25
    %s32 = sor.u32 %s30, %s31
    %p33 = scmp.eq.s32.totalorder %s32, 0
    %s35 = sadd.s32 %s34, 1
    %s36 = scalar_select %p33, %s34, %s35
    %p39 = pneg %p33
    %p40 = scmp.eq.s32.totalorder %s10, 1
    %p41 = por %p39, %p40
    %p42 = scmp.ne.s32.totalorder %s34, %s37
    %p43 = scmp.eq.s32.totalorder %s10, 0
    %p44 = por %p42, %p43
    %p45 = scmp.ne.s32.totalorder %s34, %s37
    %p46 = scmp.eq.s32.totalorder %s15, 1
    %p47 = por %p45, %p46
    %p48 = scmp.ne.s32.totalorder %s37, %s38
    %p49 = scmp.eq.s32.totalorder %s15, 0
    %p50 = por %p48, %p49
    %p51 = scmp.ne.s32.totalorder %s37, %s38
    %p52 = scmp.eq.s32.totalorder %s16, 1
    %p53 = por %p51, %p52
    %p55 = scmp.ne.s32.totalorder %s38, %s54
    %p56 = scmp.eq.s32.totalorder %s16, 0
    %p57 = por %p55, %p56
    %s58 = ssub.s32 %s18, %s25
    %p59 = scmp.eq.s32.totalorder %s58, 0
    %s61 = sadd.s32 %s60, 1
    %s62 = scalar_select %p59, %s60, %s61
    %p65 = pneg %p59
    %p66 = scmp.eq.s32.totalorder %s10, 1
    %p67 = por %p65, %p66
    %p68 = scmp.ne.s32.totalorder %s60, %s63
    %p69 = scmp.eq.s32.totalorder %s10, 0
    %p70 = por %p68, %p69
    %p71 = scmp.ne.s32.totalorder %s60, %s63
    %p72 = scmp.eq.s32.totalorder %s15, 1
    %p73 = por %p71, %p72
    %p74 = scmp.ne.s32.totalorder %s63, %s64
    %p75 = scmp.eq.s32.totalorder %s15, 0
    %p76 = por %p74, %p75
    %p77 = scmp.ne.s32.totalorder %s63, %s64
    %p78 = scmp.eq.s32.totalorder %s16, 1
    %p79 = por %p77, %p78
    %p81 = scmp.ne.s32.totalorder %s64, %s80
    %p82 = scmp.eq.s32.totalorder %s16, 0
    %p83 = por %p81, %p82
    %s84 = ssub.s32 %s17, %s29
    %p85 = scmp.eq.s32.totalorder %s84, 0
    %s87 = sadd.s32 %s86, 1
    %s88 = scalar_select %p85, %s86, %s87
    %p91 = pneg %p85
    %p92 = scmp.eq.s32.totalorder %s10, 1
    %p93 = por %p91, %p92
    %p94 = scmp.ne.s32.totalorder %s86, %s89
    %p95 = scmp.eq.s32.totalorder %s10, 0
    %p96 = por %p94, %p95
    %p97 = scmp.ne.s32.totalorder %s86, %s89
    %p98 = scmp.eq.s32.totalorder %s15, 1
    %p99 = por %p97, %p98
    %p100 = scmp.ne.s32.totalorder %s89, %s90
    %p101 = scmp.eq.s32.totalorder %s15, 0
    %p102 = por %p100, %p101
    %p103 = scmp.ne.s32.totalorder %s89, %s90
    %p104 = scmp.eq.s32.totalorder %s16, 1
    %p105 = por %p103, %p104
    %p107 = scmp.ne.s32.totalorder %s90, %s106
    %p108 = scmp.eq.s32.totalorder %s16, 0
    %p109 = por %p107, %p108
    %s110 = ssub.s32 %s17, %s29
    %p111 = scmp.eq.s32.totalorder %s110, 0
    %s113 = sadd.s32 %s112, 1
    %s114 = scalar_select %p111, %s112, %s113
    %p117 = pneg %p111
    %p118 = scmp.eq.s32.totalorder %s10, 1
    %p119 = por %p117, %p118
    %p120 = scmp.ne.s32.totalorder %s112, %s115
    %p121 = scmp.eq.s32.totalorder %s10, 0
    %p122 = por %p120, %p121
    %p123 = scmp.ne.s32.totalorder %s112, %s115
    %p124 = scmp.eq.s32.totalorder %s15, 1
    %p125 = por %p123, %p124
    %p126 = scmp.ne.s32.totalorder %s115, %s116
    %p127 = scmp.eq.s32.totalorder %s15, 0
    %p128 = por %p126, %p127
    %p129 = scmp.ne.s32.totalorder %s115, %s116
    %p130 = scmp.eq.s32.totalorder %s16, 1
    %p131 = por %p129, %p130
    %p133 = scmp.ne.s32.totalorder %s116, %s132
    %p134 = scmp.eq.s32.totalorder %s16, 0
    %p135 = por %p133, %p134
    %p136 = scmp.le.s32.totalorder 1, %s10
    %p137 = scmp.lt.s32.totalorder %s10, 3
    %p138 = pnand %p136, %p137
    %p139 = pneg %p138
    // Predicated region
    $region9: #{discriminator_forward.12} parent=5 // pred_check
      _
    $region10: #{discriminator_forward.12} parent=5 // pred_check_branch
      %141 = sbr.rel (%p138) target = $region12
    $region11: #{discriminator_forward.12} parent=5 // pred_region
      %s142 = ssub.s32 %s10, 1
      // Predicated region
      $region13: #{discriminator_forward.12} parent=11 // pred_check
        %p143 = pneg %p76
      $region14: #{discriminator_forward.12} parent=11 // pred_check_branch
        %145 = sbr.rel (%p143) target = $region16
      $region15: #{discriminator_forward.12} parent=11 // pred_region
        %s146 = smul.u32 64, %s20
        %p147 = scmp.lt.s32.totalorder %s146, 63
        %s148 = scalar_select %p147, %s146, 63
        %s149 = smul.addr %s148, 4
        %s150 = scalar_lea.vmem %s1, %s149
        %s151 = smul.u32 64, %s20
      $region16: #{discriminator_forward.12} parent=11 // pred_fallthru
        _
    $region12: #{discriminator_forward.12} parent=5 // pred_fallthru
      _
    %p152 = scmp.lt.s32.totalorder %s10, 2
    // Predicated region
    $region17: #{discriminator_forward.12} parent=5 // pred_check
      %p153 = pneg %p152
    $region18: #{discriminator_forward.12} parent=5 // pred_check_branch
      %155 = sbr.rel (%p153) target = $region20
    $region19: #{discriminator_forward.12} parent=5 // pred_region
      // Predicated region
      $region21: #{discriminator_forward.12} parent=19 // pred_check
        %p156 = pneg %p44
      $region22: #{discriminator_forward.12} parent=19 // pred_check_branch
        %158 = sbr.rel (%p156) target = $region24
      $region23: #{discriminator_forward.12} parent=19 // pred_region
        %s159 = smul.u32 2, %s17
        %s160 = smul.u32 4, %s18
        %p161 = scmp.lt.s32.totalorder %s159, 3
        %s162 = scalar_select %p161, %s159, 3
        %p163 = scmp.lt.s32.totalorder %s160, 3
        %s164 = scalar_select %p163, %s160, 3
        %s165 = smul.addr %s162, 4
        %s166 = sadd.s32 %s164, %s165
        %s167 = smul.addr %s166, 4
        %s168 = scalar_lea.vmem %s0, %s167
        %s169 = smul.u32 2, %s17
        %s170 = smul.u32 4, %s18
      $region24: #{discriminator_forward.12} parent=19 // pred_fallthru
        _
    $region20: #{discriminator_forward.12} parent=5 // pred_fallthru
      _
    %p171 = scmp.le.s32.totalorder 1, %s10
    %p172 = scmp.lt.s32.totalorder %s10, 3
    %p173 = pnand %p171, %p172
    %p174 = pneg %p173
    // Predicated region
    $region25: #{discriminator_forward.12} parent=5 // pred_check
      _
    $region26: #{discriminator_forward.12} parent=5 // pred_check_branch
      %176 = sbr.rel (%p173) target = $region28
    $region27: #{discriminator_forward.12} parent=5 // pred_region
      %s177 = ssub.s32 %s10, 1
      %s178 = smul.u32 2, %s19
      %s179 = smul.u32 4, %s20
      %p180 = scmp.lt.s32.totalorder %s178, 3
      %s181 = scalar_select %p180, %s178, 3
      %p182 = scmp.lt.s32.totalorder %s179, 3
      %s183 = scalar_select %p182, %s179, 3
      %s184 = smul.addr %s181, 4
      %s185 = sadd.s32 %s183, %s184
      %s186 = smul.addr %s185, 4
      %s187 = scalar_lea.vmem %s0, %s186
      %p188 = pneg %p50
      %p189 = pneg %p47
      %s190 = smul.u32 64, %s20
      %p191 = scmp.lt.s32.totalorder %s190, 63
      %s192 = scalar_select %p191, %s190, 63
      %s193 = smul.addr %s192, 4
      %s194 = scalar_lea.vmem %s1, %s193
      %p195 = pneg %p76
      %p196 = pneg %p73
      %p197 = pneg %p102
      %p198 = pneg %p99
      %s199 = smul.u32 2, %s19
      %p200 = scmp.lt.s32.totalorder %s199, 3
      %s201 = scalar_select %p200, %s199, 3
      %s202 = smul.addr %s201, 8
      %s203 = scalar_lea.vmem %s2, %s202
      %p204 = pneg %p128
      %p205 = pneg %p125
      %p206 = scmp.lt.s32.totalorder %s19, 1
      %s207 = scalar_select %p206, %s19, 1
      %s208 = smul.addr %s207, 2
      %s209 = scalar_lea.vmem %s3, %s208
      %s210 = smul.u32 2, %s19
      %s211 = smul.u32 4, %s20
      %p212 = scmp.lt.s32.totalorder %s210, 3
      %s213 = scalar_select %p212, %s210, 3
      %p214 = scmp.lt.s32.totalorder %s211, 3
      %s215 = scalar_select %p214, %s211, 3
      %s216 = smul.addr %s213, 4
      %s217 = sadd.s32 %s215, %s216
      %s218 = smul.addr %s217, 4
      %s219 = scalar_lea.vmem %s0, %s218
      %s220 = smul.u32 2, %s19
      %s221 = smul.u32 4, %s20
      %s222 = smul.u32 64, %s20
      %p223 = scmp.lt.s32.totalorder %s222, 63
      %s224 = scalar_select %p223, %s222, 63
      %s225 = smul.addr %s224, 4
      %s226 = scalar_lea.vmem %s1, %s225
      %s227 = smul.u32 64, %s20
      %s228 = smul.u32 2, %s19
      %p229 = scmp.lt.s32.totalorder %s228, 3
      %s230 = scalar_select %p229, %s228, 3
      %s231 = smul.addr %s230, 8
      %s232 = scalar_lea.vmem %s2, %s231
      %s233 = smul.u32 2, %s19
      %p234 = scmp.lt.s32.totalorder %s19, 1
      %s235 = scalar_select %p234, %s19, 1
      %s236 = smul.addr %s235, 2
      %s237 = scalar_lea.vmem %s3, %s236
      %v238 = vld [vmem:[%s219] sm:$0xff]
      %v239 = vld [vmem:[%s219 + $0x8] sm:$0xff]
      %v240 = vld [vmem:[%s219 + $0x10] sm:$0xff]
      %v241 = vld [vmem:[%s219 + $0x18] sm:$0xff]
      %v242 = vld [vmem:[%s226] sm:$0xf]
      %v243 = vld [vmem:[%s226 + $0x4] sm:$0xf]
      %v244 = vld [vmem:[%s226 + $0x8] sm:$0xf]
      %v245 = vld [vmem:[%s226 + $0xc] sm:$0xf]
      %v246 = vld [vmem:[%s226 + $0x10] sm:$0xf]
      %v247 = vld [vmem:[%s226 + $0x14] sm:$0xf]
      %v248 = vld [vmem:[%s226 + $0x18] sm:$0xf]
      %v249 = vld [vmem:[%s226 + $0x1c] sm:$0xf]
      %v250 = vld [vmem:[%s226 + $0x20] sm:$0xf]
      %v251 = vld [vmem:[%s226 + $0x24] sm:$0xf]
      %v252 = vld [vmem:[%s226 + $0x28] sm:$0xf]
      %v253 = vld [vmem:[%s226 + $0x2c] sm:$0xf]
      %v254 = vld [vmem:[%s226 + $0x30] sm:$0xf]
      %v255 = vld [vmem:[%s226 + $0x34] sm:$0xf]
      %v256 = vld [vmem:[%s226 + $0x38] sm:$0xf]
      %v257 = vld [vmem:[%s226 + $0x3c] sm:$0xf]
      %v258 = vld [vmem:[%s226 + $0x40] sm:$0xf]
      %v259 = vld [vmem:[%s226 + $0x44] sm:$0xf]
      %v260 = vld [vmem:[%s226 + $0x48] sm:$0xf]
      %v261 = vld [vmem:[%s226 + $0x4c] sm:$0xf]
      %v262 = vld [vmem:[%s226 + $0x50] sm:$0xf]
      %v263 = vld [vmem:[%s226 + $0x54] sm:$0xf]
      %v264 = vld [vmem:[%s226 + $0x58] sm:$0xf]
      %v265 = vld [vmem:[%s226 + $0x5c] sm:$0xf]
      %v266 = vld [vmem:[%s226 + $0x60] sm:$0xf]
      %v267 = vld [vmem:[%s226 + $0x64] sm:$0xf]
      %v268 = vld [vmem:[%s226 + $0x68] sm:$0xf]
      %v269 = vld [vmem:[%s226 + $0x6c] sm:$0xf]
      %v270 = vld [vmem:[%s226 + $0x70] sm:$0xf]
      %v271 = vld [vmem:[%s226 + $0x74] sm:$0xf]
      %v272 = vld [vmem:[%s226 + $0x78] sm:$0xf]
      %v273 = vld [vmem:[%s226 + $0x7c] sm:$0xf]
      %v274 = vld [vmem:[%s226 + $0x80] sm:$0xf]
      %v275 = vld [vmem:[%s226 + $0x84] sm:$0xf]
      %v276 = vld [vmem:[%s226 + $0x88] sm:$0xf]
      %v277 = vld [vmem:[%s226 + $0x8c] sm:$0xf]
      %v278 = vld [vmem:[%s226 + $0x90] sm:$0xf]
      %v279 = vld [vmem:[%s226 + $0x94] sm:$0xf]
      %v280 = vld [vmem:[%s226 + $0x98] sm:$0xf]
      %v281 = vld [vmem:[%s226 + $0x9c] sm:$0xf]
      %v282 = vld [vmem:[%s226 + $0xa0] sm:$0xf]
      %v283 = vld [vmem:[%s226 + $0xa4] sm:$0xf]
      %v284 = vld [vmem:[%s226 + $0xa8] sm:$0xf]
      %v285 = vld [vmem:[%s226 + $0xac] sm:$0xf]
      %v286 = vld [vmem:[%s226 + $0xb0] sm:$0xf]
      %v287 = vld [vmem:[%s226 + $0xb4] sm:$0xf]
      %v288 = vld [vmem:[%s226 + $0xb8] sm:$0xf]
      %v289 = vld [vmem:[%s226 + $0xbc] sm:$0xf]
      %v290 = vld [vmem:[%s226 + $0xc0] sm:$0xf]
      %v291 = vld [vmem:[%s226 + $0xc4] sm:$0xf]
      %v292 = vld [vmem:[%s226 + $0xc8] sm:$0xf]
      %v293 = vld [vmem:[%s226 + $0xcc] sm:$0xf]
      %v294 = vld [vmem:[%s226 + $0xd0] sm:$0xf]
      %v295 = vld [vmem:[%s226 + $0xd4] sm:$0xf]
      %v296 = vld [vmem:[%s226 + $0xd8] sm:$0xf]
      %v297 = vld [vmem:[%s226 + $0xdc] sm:$0xf]
      %v298 = vld [vmem:[%s226 + $0xe0] sm:$0xf]
      %v299 = vld [vmem:[%s226 + $0xe4] sm:$0xf]
      %v300 = vld [vmem:[%s226 + $0xe8] sm:$0xf]
      %v301 = vld [vmem:[%s226 + $0xec] sm:$0xf]
      %v302 = vld [vmem:[%s226 + $0xf0] sm:$0xf]
      %v303 = vld [vmem:[%s226 + $0xf4] sm:$0xf]
      %v304 = vld [vmem:[%s226 + $0xf8] sm:$0xf]
      %v305 = vld [vmem:[%s226 + $0xfc] sm:$0xf]
      %v310 = vunpack.c.l.b16 %v238
      %v311 = vunpack.c.h.b16 %v238
      %v312 = vunpack.c.l.b16 %v239
      %v313 = vunpack.c.h.b16 %v239
      %v314 = vunpack.c.l.b16 %v240
      %v315 = vunpack.c.h.b16 %v240
      %v316 = vunpack.c.l.b16 %v241
      %v317 = vunpack.c.h.b16 %v241
      %v318 = vpack.c.b16 %v314, %v310
      %v319 = vpack.c.b16 %v315, %v311
      %v320 = vpack.c.b16 %v316, %v312
      %v321 = vpack.c.b16 %v317, %v313
      %v390 = vunpack.c.l.b16 %v242
      %v391 = vunpack.c.l.b16 %v243
      %v392 = vunpack.c.l.b16 %v244
      %v393 = vunpack.c.l.b16 %v245
      %v394 = vunpack.c.l.b16 %v246
      %v395 = vunpack.c.l.b16 %v247
      %v396 = vunpack.c.l.b16 %v248
      %v397 = vunpack.c.l.b16 %v249
      %v398 = vunpack.c.l.b16 %v250
      %v399 = vunpack.c.l.b16 %v251
      %v400 = vunpack.c.l.b16 %v252
      %v401 = vunpack.c.l.b16 %v253
      %v402 = vunpack.c.l.b16 %v254
      %v403 = vunpack.c.l.b16 %v255
      %v404 = vunpack.c.l.b16 %v256
      %v405 = vunpack.c.l.b16 %v257
      %v406 = vunpack.c.l.b16 %v258
      %v407 = vunpack.c.l.b16 %v259
      %v408 = vunpack.c.l.b16 %v260
      %v409 = vunpack.c.l.b16 %v261
      %v410 = vunpack.c.l.b16 %v262
      %v411 = vunpack.c.l.b16 %v263
      %v412 = vunpack.c.l.b16 %v264
      %v413 = vunpack.c.l.b16 %v265
      %v414 = vunpack.c.l.b16 %v266
      %v415 = vunpack.c.l.b16 %v267
      %v416 = vunpack.c.l.b16 %v268
      %v417 = vunpack.c.l.b16 %v269
      %v418 = vunpack.c.l.b16 %v270
      %v419 = vunpack.c.l.b16 %v271
      %v420 = vunpack.c.l.b16 %v272
      %v421 = vunpack.c.l.b16 %v273
      %v422 = vunpack.c.l.b16 %v274
      %v423 = vunpack.c.l.b16 %v275
      %v424 = vunpack.c.l.b16 %v276
      %v425 = vunpack.c.l.b16 %v277
      %v426 = vunpack.c.l.b16 %v278
      %v427 = vunpack.c.l.b16 %v279
      %v428 = vunpack.c.l.b16 %v280
      %v429 = vunpack.c.l.b16 %v281
      %v430 = vunpack.c.l.b16 %v282
      %v431 = vunpack.c.l.b16 %v283
      %v432 = vunpack.c.l.b16 %v284
      %v433 = vunpack.c.l.b16 %v285
      %v434 = vunpack.c.l.b16 %v286
      %v435 = vunpack.c.l.b16 %v287
      %v436 = vunpack.c.l.b16 %v288
      %v437 = vunpack.c.l.b16 %v289
      %v438 = vunpack.c.l.b16 %v290
      %v439 = vunpack.c.l.b16 %v291
      %v440 = vunpack.c.l.b16 %v292
      %v441 = vunpack.c.l.b16 %v293
      %v442 = vunpack.c.l.b16 %v294
      %v443 = vunpack.c.l.b16 %v295
      %v444 = vunpack.c.l.b16 %v296
      %v445 = vunpack.c.l.b16 %v297
      %v446 = vunpack.c.l.b16 %v298
      %v447 = vunpack.c.l.b16 %v299
      %v448 = vunpack.c.l.b16 %v300
      %v449 = vunpack.c.l.b16 %v301
      %v450 = vunpack.c.l.b16 %v302
      %v451 = vunpack.c.l.b16 %v303
      %v452 = vunpack.c.l.b16 %v304
      %v453 = vunpack.c.l.b16 %v305
      %v454 = vpack.c.b16 %v391, %v390
      %v455 = vpack.c.b16 %v393, %v392
      %v456 = vpack.c.b16 %v395, %v394
      %v457 = vpack.c.b16 %v397, %v396
      %v458 = vpack.c.b16 %v399, %v398
      %v459 = vpack.c.b16 %v401, %v400
      %v460 = vpack.c.b16 %v403, %v402
      %v461 = vpack.c.b16 %v405, %v404
      %v462 = vpack.c.b16 %v407, %v406
      %v463 = vpack.c.b16 %v409, %v408
      %v464 = vpack.c.b16 %v411, %v410
      %v465 = vpack.c.b16 %v413, %v412
      %v466 = vpack.c.b16 %v415, %v414
      %v467 = vpack.c.b16 %v417, %v416
      %v468 = vpack.c.b16 %v419, %v418
      %v469 = vpack.c.b16 %v421, %v420
      %v470 = vpack.c.b16 %v423, %v422
      %v471 = vpack.c.b16 %v425, %v424
      %v472 = vpack.c.b16 %v427, %v426
      %v473 = vpack.c.b16 %v429, %v428
      %v474 = vpack.c.b16 %v431, %v430
      %v475 = vpack.c.b16 %v433, %v432
      %v476 = vpack.c.b16 %v435, %v434
      %v477 = vpack.c.b16 %v437, %v436
      %v478 = vpack.c.b16 %v439, %v438
      %v479 = vpack.c.b16 %v441, %v440
      %v480 = vpack.c.b16 %v443, %v442
      %v481 = vpack.c.b16 %v445, %v444
      %v482 = vpack.c.b16 %v447, %v446
      %v483 = vpack.c.b16 %v449, %v448
      %v484 = vpack.c.b16 %v451, %v450
      %v485 = vpack.c.b16 %v453, %v452
      %518 = vmatpush.bf16.msra.mxu0 %v461
      %519 = vmatpush.bf16.msra.mxu0 %v460
      %520 = vmatpush.bf16.msra.mxu0 %v459
      %521 = vmatpush.bf16.msra.mxu0 %v458
      %522 = vmatpush.bf16.msra.mxu0 %v457
      %523 = vmatpush.bf16.msra.mxu0 %v456
      %524 = vmatpush.bf16.msra.mxu0 %v455
      %525 = vmatpush.bf16.msra.mxu0 %v454
      %526 = vmatmul.bf16.gmra.mxu0 %v318
      %v527 = vpop.f32.mrf.mxu0
      %v528 = vadd.f32 0.0, %v527
      %v529 = vpop.f32.mrf.mxu0
      %v530 = vadd.f32 0.0, %v529
      %531 = vdwg.mxu0
      %532 = vmatpush.bf16.msra.mxu0 %v469
      %533 = vmatpush.bf16.msra.mxu0 %v468
      %534 = vmatpush.bf16.msra.mxu0 %v467
      %535 = vmatpush.bf16.msra.mxu0 %v466
      %536 = vmatpush.bf16.msra.mxu0 %v465
      %537 = vmatpush.bf16.msra.mxu0 %v464
      %538 = vmatpush.bf16.msra.mxu0 %v463
      %539 = vmatpush.bf16.msra.mxu0 %v462
      %540 = vmatmul.bf16.gmra.mxu0 %v319
      %v541 = vpop.f32.mrf.mxu0
      %v542 = vadd.f32 %v528, %v541
      %v543 = vpop.f32.mrf.mxu0
      %v544 = vadd.f32 %v530, %v543
      %545 = vdwg.mxu0
      %546 = vmatpush.bf16.msra.mxu0 %v477
      %547 = vmatpush.bf16.msra.mxu0 %v476
      %548 = vmatpush.bf16.msra.mxu0 %v475
      %549 = vmatpush.bf16.msra.mxu0 %v474
      %550 = vmatpush.bf16.msra.mxu0 %v473
      %551 = vmatpush.bf16.msra.mxu0 %v472
      %552 = vmatpush.bf16.msra.mxu0 %v471
      %553 = vmatpush.bf16.msra.mxu0 %v470
      %554 = vmatmul.bf16.gmra.mxu0 %v320
      %v555 = vpop.f32.mrf.mxu0
      %v556 = vadd.f32 %v542, %v555
      %v557 = vpop.f32.mrf.mxu0
      %v558 = vadd.f32 %v544, %v557
      %559 = vdwg.mxu0
      %560 = vmatpush.bf16.msra.mxu0 %v485
      %561 = vmatpush.bf16.msra.mxu0 %v484
      %562 = vmatpush.bf16.msra.mxu0 %v483
      %563 = vmatpush.bf16.msra.mxu0 %v482
      %564 = vmatpush.bf16.msra.mxu0 %v481
      %565 = vmatpush.bf16.msra.mxu0 %v480
      %566 = vmatpush.bf16.msra.mxu0 %v479
      %567 = vmatpush.bf16.msra.mxu0 %v478
      %568 = vmatmul.bf16.gmra.mxu0 %v321
      %v569 = vpop.f32.mrf.mxu0
      %v570 = vadd.f32 %v556, %v569
      %v571 = vpop.f32.mrf.mxu0
      %v572 = vadd.f32 %v558, %v571
      %573 = vdwg.mxu0
      %v574 = vadd.f32 %v570, %v572
      %v575 = vrot.slane %v574, 4
      %v576 = vadd.f32 %v574, %v575
      %v577 = vrot.slane %v576, 2
      %v578 = vadd.f32 %v576, %v577
      %v579 = vrot.slane %v578, 1
      %v580 = vadd.f32 %v578, %v579
      %581 = vst [vmem:[%s237] sm:$0x1] %v580
      %v582 = vmul.f32 %v570, %v570
      %v583 = vmul.f32 %v572, %v572
      %v584 = vadd.f32 %v582, %v583
      %v585 = vrot.slane %v584, 4
      %v586 = vadd.f32 %v584, %v585
      %v587 = vrot.slane %v586, 2
      %v588 = vadd.f32 %v586, %v587
      %v589 = vrot.slane %v588, 1
      %v590 = vadd.f32 %v588, %v589
      %591 = vst [vmem:[%s237 + $0x1] sm:$0x1] %v590
      %592 = vst [vmem:[%s232] sm:$0xff] %v570
      %593 = vst [vmem:[%s232 + $0x8] sm:$0xff] %v572
      %s594 = smul.u32 2, %s19
      %p595 = scmp.lt.s32.totalorder %s594, 3
      %s596 = scalar_select %p595, %s594, 3
      %s597 = smul.addr %s596, 8
      %s598 = scalar_lea.vmem %s2, %s597
      %p599 = scmp.lt.s32.totalorder %s19, 1
      %s600 = scalar_select %p599, %s19, 1
      %s601 = smul.addr %s600, 2
      %s602 = scalar_lea.vmem %s3, %s601
      // Predicated region
      $region29: #{discriminator_forward.12} parent=27 // pred_check
        %p603 = pneg %p99
      $region30: #{discriminator_forward.12} parent=27 // pred_check_branch
        %605 = sbr.rel (%p603) target = $region32
      $region31: #{discriminator_forward.12} parent=27 // pred_region
        %s606 = smul.u32 2, %s19
      $region32: #{discriminator_forward.12} parent=27 // pred_fallthru
        _
      // Predicated region
      $region33: #{discriminator_forward.12} parent=27 // pred_check
        %p607 = pneg %p125
      $region34: #{discriminator_forward.12} parent=27 // pred_check_branch
        %609 = sbr.rel (%p607) target = $region36
      $region35: #{discriminator_forward.12} parent=27 // pred_region
        _
      $region36: #{discriminator_forward.12} parent=27 // pred_fallthru
        _
    $region28: #{discriminator_forward.12} parent=5 // pred_fallthru
      _
    %p610 = scmp.le.s32.totalorder 2, %s10
    // Predicated region
    $region37: #{discriminator_forward.12} parent=5 // pred_check
      %p611 = pneg %p610
    $region38: #{discriminator_forward.12} parent=5 // pred_check_branch
      %613 = sbr.rel (%p611) target = $region40
    $region39: #{discriminator_forward.12} parent=5 // pred_region
      %s614 = ssub.s32 %s10, 2
      // Predicated region
      $region41: #{discriminator_forward.12} parent=39 // pred_check
        %p615 = pneg %p105
      $region42: #{discriminator_forward.12} parent=39 // pred_check_branch
        %617 = sbr.rel (%p615) target = $region44
      $region43: #{discriminator_forward.12} parent=39 // pred_region
        %s618 = smul.u32 2, %s21
        %p619 = scmp.lt.s32.totalorder %s618, 3
        %s620 = scalar_select %p619, %s618, 3
        %s621 = smul.addr %s620, 8
        %s622 = scalar_lea.vmem %s2, %s621
      $region44: #{discriminator_forward.12} parent=39 // pred_fallthru
        _
      // Predicated region
      $region45: #{discriminator_forward.12} parent=39 // pred_check
        %p623 = pneg %p131
      $region46: #{discriminator_forward.12} parent=39 // pred_check_branch
        %625 = sbr.rel (%p623) target = $region48
      $region47: #{discriminator_forward.12} parent=39 // pred_region
        %p626 = scmp.lt.s32.totalorder %s21, 1
        %s627 = scalar_select %p626, %s21, 1
        %s628 = smul.addr %s627, 2
        %s629 = scalar_lea.vmem %s3, %s628
      $region48: #{discriminator_forward.12} parent=39 // pred_fallthru
        _
    $region40: #{discriminator_forward.12} parent=5 // pred_fallthru
      _
  $region6: #{discriminator_forward.12} parent=0 // loop_footer
    %s14 = sadd.s32 1, %s10
  $region7: #{discriminator_forward.12} parent=0 // loop_footer_branch
    %9 = sbr.rel target = $region3
  $region8: #{discriminator_forward.12} parent=0 // loop_exit
    _

</llo_original>
